<compile_context>
chip_gen: v5e
topology: v5e:2x2
jax: 0.10.0
libtpu: 0.0.40
codegen_flags: <defaults>
</compile_context>

<pallas_src>
import jax
import jax.numpy as jnp
from jax.experimental import pallas as pl
from jax.experimental.pallas import tpu as pltpu


N_OUT = 4          # glcc_fc_out output width
N_OUT_PAD = 128    # padded to a full lane width for an unmasked output store


def _round_up(x, m):
    return ((x + m - 1) // m) * m


def _vmem_capacity_bytes():
    try:
        return int(pltpu.get_tpu_info().vmem_capacity_bytes)
    except Exception:
        return 64 * 1024 * 1024   # conservative default (v7x per-core VMEM)


def _pick_tm(m):
    # Largest MXU-friendly row tile (multiple of 128 -> full M-fill on v5e's
    # 128-wide MXU, and a multiple of 16 for bf16 sublane packing), capped at
    # 256 so tm x HIDDEN f32 intermediates stay small within v7x's 64 MiB
    # VMEM.  A grid of 1 on single-core v5e/v6e costs nothing: the grid is a
    # sequential loop, not a parallel launch.
    if m <= 256:
        return _round_up(m, 128)
    return 256


def _pick_tn(hidden, fc2_chunk, vmem_cap):
    """fc2/fc_out HIDDEN-axis chunk. tn == hidden -> fc2 fully resident."""
    if fc2_chunk is not None:
        assert hidden % fc2_chunk == 0
        assert fc2_chunk == hidden or fc2_chunk % 128 == 0
        return fc2_chunk
    # Keep fc2 resident if the (single-buffered) weight uses <= ~1/4 of VMEM
    # (v5e/v6e at HIDDEN=4096: 32 MiB of 128 MiB -> resident); otherwise
    # stream 1024-wide (or smaller) column chunks (v7x: 64 MiB -> stream).
    fc2_bytes = hidden * hidden * 2   # bf16
    if fc2_bytes * 4 <= vmem_cap:
        return hidden
    for tn in (1024, 512, 256, 128):
        if hidden % tn == 0:
            return tn
    return hidden


# ---------------------------------------------------------------------------
# Fused Pallas kernel: conv1(1x1) -> fc1 -> fc2 -> fc_out.
# Grid = (M tiles ["parallel"], HIDDEN chunks ["arbitrary"]).
# ---------------------------------------------------------------------------
def _glcc_fused_kernel(x_ref, w1_ref, b1_ref, w2_ref, b2_ref,
                       w3_ref, b3_ref, w4_ref, b4_ref,
                       o_ref, h1_ref, acc_ref):
    j = pl.program_id(1)

    @pl.when(j == 0)
    def _():
        # glcc_conv1 (1x1 conv == per-pixel channel matmul) + ReLU
        h = jnp.dot(x_ref[...], w1_ref[...], preferred_element_type=jnp.float32)
        h = jnp.maximum(h + b1_ref[...], 0.0).astype(jnp.bfloat16)
        # glcc_fc1 + ReLU (Dropout2d at inference time is identity); the fc1
        # activation tile stays resident in VMEM across all HIDDEN chunks.
        h = jnp.dot(h, w2_ref[...], preferred_element_type=jnp.float32)
        h1_ref[...] = jnp.maximum(h + b2_ref[...], 0.0).astype(jnp.bfloat16)
        acc_ref[...] = jnp.zeros_like(acc_ref)

    # glcc_fc2 column chunk + ReLU (Dropout2d identity), immediately contracted
    # through the matching fc_out row chunk into the f32 accumulator.
    h2 = jnp.dot(h1_ref[...], w3_ref[...], preferred_element_type=jnp.float32)
    h2 = jnp.maximum(h2 + b3_ref[...], 0.0).astype(jnp.bfloat16)
    acc_ref[...] += jnp.dot(h2, w4_ref[...], preferred_element_type=jnp.float32)

    @pl.when(j == pl.num_programs(1) - 1)
    def _():
        o_ref[...] = (acc_ref[...] + b4_ref[...]).astype(o_ref.dtype)


def glcc_head_forward(pooled_feat_g, pooled_feat_l, params, fc2_chunk=None):
    """pooled_feat_*: (R, C_base, P, P) NCHW, like the PyTorch module."""
    # x = torch.cat((pooled_feat_g, pooled_feat_l), dim=0)
    x = jnp.concatenate([pooled_feat_g, pooled_feat_l], axis=0)   # (2R, C, P, P)
    n, c, hh, ww = x.shape

    # NCHW -> NHWC (bf16) -> (M, C): channels last so every layer is a
    # lane-dense MXU matmul.
    # TODO(synk): producing the pooled features channels-last upstream would
    # avoid this extra HBM pass over the activation.
    x = jnp.transpose(x.astype(jnp.bfloat16), (0, 2, 3, 1)).reshape(n * hh * ww, c)
    m = n * hh * ww

    tm = _pick_tm(m)
    m_pad = _round_up(m, tm)
    if m_pad != m:
        x = jnp.pad(x, ((0, m_pad - m), (0, 0)))

    w1, b1 = params["conv1_w"], params["conv1_b"]
    w2, b2 = params["fc1_w"], params["fc1_b"]
    w3, b3 = params["fc2_w"], params["fc2_b"]
    w4, b4 = params["fc_out_w"], params["fc_out_b"]
    c_mid = w1.shape[1]
    hidden = w2.shape[1]

    vmem_cap = _vmem_capacity_bytes()
    tn = _pick_tn(hidden, fc2_chunk, vmem_cap)
    stream = tn != hidden

    # fc_out padded to a full lane width; sliced back to N_OUT after the kernel.
    w4p = jnp.zeros((hidden, N_OUT_PAD), w4.dtype).at[:, :N_OUT].set(w4)
    b4p = jnp.zeros((N_OUT_PAD,), jnp.float32).at[:N_OUT].set(b4)

    # Biases as (1, N) f32; bias-add + ReLU happen in f32 before bf16 downcast.
    b1r = b1.astype(jnp.float32).reshape(1, c_mid)
    b2r = b2.astype(jnp.float32).reshape(1, hidden)
    b3r = b3.astype(jnp.float32).reshape(1, hidden)
    b4r = b4p.reshape(1, N_OUT_PAD)

    # Note: with >1 M tiles on v7x an even tile count keeps both TensorCores
    # equally loaded; at real M (~100+ tiles) the imbalance is negligible.
    grid = (m_pad // tm, hidden // tn)
    # v5e/v6e: ~96 MiB (weights resident); v7x: ~48 MiB (fc2 streamed).
    vmem_limit = int(min(vmem_cap * 3 // 4, 100 * 1024 * 1024))

    def run(single_buffer_weights):
        def const(shape):
            # Grid-invariant blocks: single buffer (halves weight VMEM, the
            # block never changes so double-buffering buys nothing).
            if single_buffer_weights:
                return pl.BlockSpec(shape, lambda i, j: (0, 0),
                                    pipeline_mode=pl.Buffered(1))
            return pl.BlockSpec(shape, lambda i, j: (0, 0))

        if stream:
            # fc2/fc_out chunks change with j: keep default double buffering so
            # the next chunk's DMA overlaps the current chunk's matmuls.
            w3_spec = pl.BlockSpec((hidden, tn), lambda i, j: (0, j))
            b3_spec = pl.BlockSpec((1, tn), lambda i, j: (0, j))
            w4_spec = pl.BlockSpec((tn, N_OUT_PAD), lambda i, j: (j, 0))
        else:
            w3_spec = const((hidden, tn))
            b3_spec = const((1, tn))
            w4_spec = const((tn, N_OUT_PAD))

        return pl.pallas_call(
            _glcc_fused_kernel,
            out_shape=jax.ShapeDtypeStruct((m_pad, N_OUT_PAD), jnp.bfloat16),
            grid_spec=pltpu.PrefetchScalarGridSpec(
                num_scalar_prefetch=0,
                grid=grid,
                in_specs=[
                    pl.BlockSpec((tm, c), lambda i, j: (i, 0)),  # x tile (resident over j)
                    const((c, c_mid)),        # conv1 w
                    const((1, c_mid)),        # conv1 b
                    const((c_mid, hidden)),   # fc1 w
                    const((1, hidden)),       # fc1 b
                    w3_spec,                  # fc2 w (resident or streamed chunk)
                    b3_spec,                  # fc2 b
                    w4_spec,                  # fc_out w
                    const((1, N_OUT_PAD)),    # fc_out b
                ],
                out_specs=pl.BlockSpec((tm, N_OUT_PAD), lambda i, j: (i, 0)),
                scratch_shapes=[
                    pltpu.VMEM((tm, hidden), jnp.bfloat16),    # resident fc1 activation
                    pltpu.VMEM((tm, N_OUT_PAD), jnp.float32),  # fc_out accumulator
                ],
            ),
            compiler_params=pltpu.CompilerParams(
                dimension_semantics=("parallel", "arbitrary"),
                vmem_limit_bytes=vmem_limit,
            ),
        )(x, w1, b1r, w2, b2r, w3, b3r, w4p, b4r)

    try:
        out = run(single_buffer_weights=True)
    except Exception:
        # jax build without BlockSpec(pipeline_mode=pl.Buffered(1)): fall back
        # to default double buffering (identical results, more weight VMEM).
        out = run(single_buffer_weights=False)

    out = out[:m, :N_OUT]
    # back to per-sample spatial map of 4 logits (NHWC)
    return out.reshape(n, hh, ww, N_OUT)


# ---------------------------------------------------------------------------
# Pure-JAX reference (f32 math, same bf16 weights/inputs) for correctness
# ---------------------------------------------------------------------------
def glcc_head_reference(pooled_feat_g, pooled_feat_l, params):
    x = jnp.concatenate([pooled_feat_g, pooled_feat_l], axis=0)
    n, c, hh, ww = x.shape
    x = x.astype(jnp.bfloat16).astype(jnp.float32)
    x = jnp.transpose(x, (0, 2, 3, 1)).reshape(n * hh * ww, c)
    f32 = lambda a: a.astype(jnp.float32)
    x = jnp.maximum(x @ f32(params["conv1_w"]) + f32(params["conv1_b"]), 0.0)
    x = jnp.maximum(x @ f32(params["fc1_w"]) + f32(params["fc1_b"]), 0.0)
    x = jnp.maximum(x @ f32(params["fc2_w"]) + f32(params["fc2_b"]), 0.0)
    x = x @ f32(params["fc_out_w"]) + f32(params["fc_out_b"])
    return x.reshape(n, hh, ww, -1)


# ---------------------------------------------------------------------------
# Deterministic parameter construction (weights bf16, biases f32)
# ---------------------------------------------------------------------------
def make_params(key, c_base, c_mid, hidden, n_out):
    ks = jax.random.split(key, 8)
    std = 0.05
    return {
        # glcc_conv1: Conv2d(c_base, c_mid, 1x1) -> used as (c_base, c_mid)
        "conv1_w": (std * jax.random.normal(ks[0], (c_base, c_mid))).astype(jnp.bfloat16),
        "conv1_b": std * jax.random.normal(ks[1], (c_mid,), jnp.float32),
        # glcc_fc1: Linear(c_mid, hidden)
        "fc1_w": (std * jax.random.normal(ks[2], (c_mid, hidden))).astype(jnp.bfloat16),
        "fc1_b": std * jax.random.normal(ks[3], (hidden,), jnp.float32),
        # glcc_fc2: Linear(hidden, hidden)
        "fc2_w": (std * jax.random.normal(ks[4], (hidden, hidden))).astype(jnp.bfloat16),
        "fc2_b": std * jax.random.normal(ks[5], (hidden,), jnp.float32),
        # glcc_fc_out: Linear(hidden, 4)
        "fc_out_w": (std * jax.random.normal(ks[6], (hidden, n_out))).astype(jnp.bfloat16),
        "fc_out_b": std * jax.random.normal(ks[7], (n_out,), jnp.float32),
    }


if __name__ == "__main__":
    # Scaled-down stand-ins for the real module dims
    # (real: C_BASE=1024, C_MID=512, HIDDEN=4096, N_OUT=4, POOL=cfg.POOLING_SIZE=7)
    C_BASE = 128   # base feature channels
    C_MID = 128    # glcc_conv1 output channels
    HIDDEN = 256   # glcc_fc1/fc2 width
    POOL = 7       # real pooling size -> M = 2R*49 (exercises M padding)

    key = jax.random.PRNGKey(0)
    k_g, k_l, k_p = jax.random.split(key, 3)
    params = make_params(k_p, C_BASE, C_MID, HIDDEN, N_OUT)

    tol = dict(atol=3e-2, rtol=5e-2)   # bf16 kernel math vs f32 reference

    # Config 1: default policy (fc2 resident, single-buffered weights), M=196.
    R = 2
    pooled_g1 = jax.random.normal(k_g, (R, C_BASE, POOL, POOL), jnp.float32)
    pooled_l1 = jax.random.normal(k_l, (R, C_BASE, POOL, POOL), jnp.float32)
    out1 = glcc_head_forward(pooled_g1, pooled_l1, params)
    jax.block_until_ready(out1)
    assert out1.shape == (2 * R, POOL, POOL, N_OUT)
    out1_f32 = out1.astype(jnp.float32)
    assert bool(jnp.all(jnp.isfinite(out1_f32)))
    ref1 = glcc_head_reference(pooled_g1, pooled_l1, params)
    assert bool(jnp.allclose(out1_f32, ref1, **tol))

    # Config 2: forced fc2 streaming (2 HIDDEN chunks) + 2 M tiles: exercises
    # the v7x K-streamed accumulator path and the "parallel" M axis.
    R2 = 4
    k_g2, k_l2 = jax.random.split(jax.random.PRNGKey(1), 2)
    pooled_g2 = jax.random.normal(k_g2, (R2, C_BASE, POOL, POOL), jnp.float32)
    pooled_l2 = jax.random.normal(k_l2, (R2, C_BASE, POOL, POOL), jnp.float32)
    out2 = glcc_head_forward(pooled_g2, pooled_l2, params, fc2_chunk=128)
    jax.block_until_ready(out2)
    assert out2.shape == (2 * R2, POOL, POOL, N_OUT)
    ref2 = glcc_head_reference(pooled_g2, pooled_l2, params)
    assert bool(jnp.allclose(out2.astype(jnp.float32), ref2, **tol))

    print("KERNEL_OK")
</pallas_src>

<mosaic_0001>
module attributes {stable_mosaic.version = 11 : i64} {
  func.func @_glcc_fused_kernel(%arg0: i32, %arg1: i32, %arg2: memref<256x128xbf16, #tpu.memory_space<vmem>>, %arg3: memref<128x128xbf16, #tpu.memory_space<vmem>>, %arg4: memref<1x128xf32, #tpu.memory_space<vmem>>, %arg5: memref<128x256xbf16, #tpu.memory_space<vmem>>, %arg6: memref<1x256xf32, #tpu.memory_space<vmem>>, %arg7: memref<256x256xbf16, #tpu.memory_space<vmem>>, %arg8: memref<1x256xf32, #tpu.memory_space<vmem>>, %arg9: memref<256x128xbf16, #tpu.memory_space<vmem>>, %arg10: memref<1x128xf32, #tpu.memory_space<vmem>>, %arg11: memref<256x128xbf16, #tpu.memory_space<vmem>>, %arg12: memref<256x256xbf16, #tpu.memory_space<vmem>>, %arg13: memref<256x128xf32, #tpu.memory_space<vmem>>) attributes {dimension_semantics = [#tpu.dimension_semantics<parallel>, #tpu.dimension_semantics<arbitrary>], iteration_bounds = array<i64: 1, 1>, scalar_prefetch = 0 : i64, scratch_operands = 2 : i64, tpu.core_type = #tpu.core_type<tc>, window_params = [{transform_indices = @transform_0, window_bounds = array<i64: 256, 128>}, {pipeline_mode = #tpu.pipeline_mode<synchronous>, transform_indices = @transform_1, window_bounds = array<i64: 128, 128>}, {pipeline_mode = #tpu.pipeline_mode<synchronous>, transform_indices = @transform_2, window_bounds = array<i64: 1, 128>}, {pipeline_mode = #tpu.pipeline_mode<synchronous>, transform_indices = @transform_3, window_bounds = array<i64: 128, 256>}, {pipeline_mode = #tpu.pipeline_mode<synchronous>, transform_indices = @transform_4, window_bounds = array<i64: 1, 256>}, {pipeline_mode = #tpu.pipeline_mode<synchronous>, transform_indices = @transform_5, window_bounds = array<i64: 256, 256>}, {pipeline_mode = #tpu.pipeline_mode<synchronous>, transform_indices = @transform_6, window_bounds = array<i64: 1, 256>}, {pipeline_mode = #tpu.pipeline_mode<synchronous>, transform_indices = @transform_7, window_bounds = array<i64: 256, 128>}, {pipeline_mode = #tpu.pipeline_mode<synchronous>, transform_indices = @transform_8, window_bounds = array<i64: 1, 128>}, {transform_indices = @transform_9, window_bounds = array<i64: 256, 128>}]} {
    %c0_i32 = arith.constant 0 : i32
    %0 = arith.cmpi eq, %arg1, %c0_i32 : i32
    %1 = arith.extui %0 : i1 to i32
    %c0_i32_0 = arith.constant 0 : i32
    %2 = arith.cmpi ne, %1, %c0_i32_0 : i32
    scf.if %2 {
      %c0_16 = arith.constant 0 : index
      %c0_17 = arith.constant 0 : index
      %20 = vector.load %arg2[%c0_16, %c0_17] : memref<256x128xbf16, #tpu.memory_space<vmem>>, vector<256x128xbf16>
      %c0_18 = arith.constant 0 : index
      %c0_19 = arith.constant 0 : index
      %21 = vector.load %arg3[%c0_18, %c0_19] : memref<128x128xbf16, #tpu.memory_space<vmem>>, vector<128x128xbf16>
      %cst_20 = arith.constant dense<0.000000e+00> : vector<256x128xf32>
      %22 = tpu.matmul %20, %21, %cst_20 {dimension_numbers = #tpu.dot_dimension_numbers<[1], [0], [0], [1], [0, 0, 1, 1], [], []>} : vector<256x128xbf16>, vector<128x128xbf16>, vector<256x128xf32> -> vector<256x128xf32>
      %c0_21 = arith.constant 0 : index
      %c0_22 = arith.constant 0 : index
      %23 = vector.load %arg4[%c0_21, %c0_22] : memref<1x128xf32, #tpu.memory_space<vmem>>, vector<1x128xf32>
      %24 = vector.broadcast %23 : vector<1x128xf32> to vector<256x128xf32>
      %25 = arith.addf %22, %24 : vector<256x128xf32>
      %cst_23 = arith.constant 0.000000e+00 : f32
      %26 = vector.broadcast %cst_23 : f32 to vector<256x128xf32>
      %27 = arith.maximumf %25, %26 : vector<256x128xf32>
      %28 = arith.truncf %27 : vector<256x128xf32> to vector<256x128xbf16>
      %c0_24 = arith.constant 0 : index
      %c0_25 = arith.constant 0 : index
      %29 = vector.load %arg5[%c0_24, %c0_25] : memref<128x256xbf16, #tpu.memory_space<vmem>>, vector<128x256xbf16>
      %cst_26 = arith.constant dense<0.000000e+00> : vector<256x256xf32>
      %30 = tpu.matmul %28, %29, %cst_26 {dimension_numbers = #tpu.dot_dimension_numbers<[1], [0], [0], [1], [0, 0, 1, 1], [], []>} : vector<256x128xbf16>, vector<128x256xbf16>, vector<256x256xf32> -> vector<256x256xf32>
      %c0_27 = arith.constant 0 : index
      %c0_28 = arith.constant 0 : index
      %31 = vector.load %arg6[%c0_27, %c0_28] : memref<1x256xf32, #tpu.memory_space<vmem>>, vector<1x256xf32>
      %32 = vector.broadcast %31 : vector<1x256xf32> to vector<256x256xf32>
      %33 = arith.addf %30, %32 : vector<256x256xf32>
      %cst_29 = arith.constant 0.000000e+00 : f32
      %34 = vector.broadcast %cst_29 : f32 to vector<256x256xf32>
      %35 = arith.maximumf %33, %34 : vector<256x256xf32>
      %36 = arith.truncf %35 : vector<256x256xf32> to vector<256x256xbf16>
      %c0_30 = arith.constant 0 : index
      %c0_31 = arith.constant 0 : index
      %37 = vector.load %arg12[%c0_30, %c0_31] : memref<256x256xbf16, #tpu.memory_space<vmem>>, vector<256x256xbf16>
      tpu.vector_store %arg12[%c0_30, %c0_31], %36 {strides = array<i32>} : memref<256x256xbf16, #tpu.memory_space<vmem>>, vector<256x256xbf16>,
      %cst_32 = arith.constant 0.000000e+00 : f32
      %38 = vector.broadcast %cst_32 : f32 to vector<256x128xf32>
      %c0_33 = arith.constant 0 : index
      %c0_34 = arith.constant 0 : index
      %39 = vector.load %arg13[%c0_33, %c0_34] : memref<256x128xf32, #tpu.memory_space<vmem>>, vector<256x128xf32>
      tpu.vector_store %arg13[%c0_33, %c0_34], %38 {strides = array<i32>} : memref<256x128xf32, #tpu.memory_space<vmem>>, vector<256x128xf32>,
    } else {
    }
    %c0 = arith.constant 0 : index
    %c0_1 = arith.constant 0 : index
    %3 = vector.load %arg12[%c0, %c0_1] : memref<256x256xbf16, #tpu.memory_space<vmem>>, vector<256x256xbf16>
    %c0_2 = arith.constant 0 : index
    %c0_3 = arith.constant 0 : index
    %4 = vector.load %arg7[%c0_2, %c0_3] : memref<256x256xbf16, #tpu.memory_space<vmem>>, vector<256x256xbf16>
    %cst = arith.constant dense<0.000000e+00> : vector<256x256xf32>
    %5 = tpu.matmul %3, %4, %cst {dimension_numbers = #tpu.dot_dimension_numbers<[1], [0], [0], [1], [0, 0, 1, 1], [], []>} : vector<256x256xbf16>, vector<256x256xbf16>, vector<256x256xf32> -> vector<256x256xf32>
    %c0_4 = arith.constant 0 : index
    %c0_5 = arith.constant 0 : index
    %6 = vector.load %arg8[%c0_4, %c0_5] : memref<1x256xf32, #tpu.memory_space<vmem>>, vector<1x256xf32>
    %7 = vector.broadcast %6 : vector<1x256xf32> to vector<256x256xf32>
    %8 = arith.addf %5, %7 : vector<256x256xf32>
    %cst_6 = arith.constant 0.000000e+00 : f32
    %9 = vector.broadcast %cst_6 : f32 to vector<256x256xf32>
    %10 = arith.maximumf %8, %9 : vector<256x256xf32>
    %11 = arith.truncf %10 : vector<256x256xf32> to vector<256x256xbf16>
    %c0_7 = arith.constant 0 : index
    %c0_8 = arith.constant 0 : index
    %12 = vector.load %arg13[%c0_7, %c0_8] : memref<256x128xf32, #tpu.memory_space<vmem>>, vector<256x128xf32>
    %c0_9 = arith.constant 0 : index
    %c0_10 = arith.constant 0 : index
    %13 = vector.load %arg9[%c0_9, %c0_10] : memref<256x128xbf16, #tpu.memory_space<vmem>>, vector<256x128xbf16>
    %cst_11 = arith.constant dense<0.000000e+00> : vector<256x128xf32>
    %14 = tpu.matmul %11, %13, %cst_11 {dimension_numbers = #tpu.dot_dimension_numbers<[1], [0], [0], [1], [0, 0, 1, 1], [], []>} : vector<256x256xbf16>, vector<256x128xbf16>, vector<256x128xf32> -> vector<256x128xf32>
    %15 = arith.addf %12, %14 : vector<256x128xf32>
    %c0_12 = arith.constant 0 : index
    %c0_13 = arith.constant 0 : index
    %16 = vector.load %arg13[%c0_12, %c0_13] : memref<256x128xf32, #tpu.memory_space<vmem>>, vector<256x128xf32>
    tpu.vector_store %arg13[%c0_12, %c0_13], %15 {strides = array<i32>} : memref<256x128xf32, #tpu.memory_space<vmem>>, vector<256x128xf32>,
    %c0_i32_14 = arith.constant 0 : i32
    %17 = arith.cmpi eq, %arg1, %c0_i32_14 : i32
    %18 = arith.extui %17 : i1 to i32
    %c0_i32_15 = arith.constant 0 : i32
    %19 = arith.cmpi ne, %18, %c0_i32_15 : i32
    scf.if %19 {
      %c0_16 = arith.constant 0 : index
      %c0_17 = arith.constant 0 : index
      %20 = vector.load %arg13[%c0_16, %c0_17] : memref<256x128xf32, #tpu.memory_space<vmem>>, vector<256x128xf32>
      %c0_18 = arith.constant 0 : index
      %c0_19 = arith.constant 0 : index
      %21 = vector.load %arg10[%c0_18, %c0_19] : memref<1x128xf32, #tpu.memory_space<vmem>>, vector<1x128xf32>
      %22 = vector.broadcast %21 : vector<1x128xf32> to vector<256x128xf32>
      %23 = arith.addf %20, %22 : vector<256x128xf32>
      %24 = arith.truncf %23 : vector<256x128xf32> to vector<256x128xbf16>
      %c0_20 = arith.constant 0 : index
      %c0_21 = arith.constant 0 : index
      %25 = vector.load %arg11[%c0_20, %c0_21] : memref<256x128xbf16, #tpu.memory_space<vmem>>, vector<256x128xbf16>
      tpu.vector_store %arg11[%c0_20, %c0_21], %24 {strides = array<i32>} : memref<256x128xbf16, #tpu.memory_space<vmem>>, vector<256x128xbf16>,
    } else {
    }
    return
  }
  func.func @transform_0(%arg0: i32, %arg1: i32) -> (i32, i32) {
    %c0_i32 = arith.constant 0 : i32
    %c0_i32_0 = arith.constant 0 : i32
    return %arg0, %c0_i32 : i32, i32
  }
  func.func @transform_1(%arg0: i32, %arg1: i32) -> (i32, i32) {
    %c0_i32 = arith.constant 0 : i32
    %c0_i32_0 = arith.constant 0 : i32
    %c0_i32_1 = arith.constant 0 : i32
    return %c0_i32, %c0_i32_0 : i32, i32
  }
  func.func @transform_2(%arg0: i32, %arg1: i32) -> (i32, i32) {
    %c0_i32 = arith.constant 0 : i32
    %c0_i32_0 = arith.constant 0 : i32
    %c0_i32_1 = arith.constant 0 : i32
    return %c0_i32, %c0_i32_0 : i32, i32
  }
  func.func @transform_3(%arg0: i32, %arg1: i32) -> (i32, i32) {
    %c0_i32 = arith.constant 0 : i32
    %c0_i32_0 = arith.constant 0 : i32
    %c0_i32_1 = arith.constant 0 : i32
    return %c0_i32, %c0_i32_0 : i32, i32
  }
  func.func @transform_4(%arg0: i32, %arg1: i32) -> (i32, i32) {
    %c0_i32 = arith.constant 0 : i32
    %c0_i32_0 = arith.constant 0 : i32
    %c0_i32_1 = arith.constant 0 : i32
    return %c0_i32, %c0_i32_0 : i32, i32
  }
  func.func @transform_5(%arg0: i32, %arg1: i32) -> (i32, i32) {
    %c0_i32 = arith.constant 0 : i32
    %c0_i32_0 = arith.constant 0 : i32
    %c0_i32_1 = arith.constant 0 : i32
    return %c0_i32, %c0_i32_0 : i32, i32
  }
  func.func @transform_6(%arg0: i32, %arg1: i32) -> (i32, i32) {
    %c0_i32 = arith.constant 0 : i32
    %c0_i32_0 = arith.constant 0 : i32
    %c0_i32_1 = arith.constant 0 : i32
    return %c0_i32, %c0_i32_0 : i32, i32
  }
  func.func @transform_7(%arg0: i32, %arg1: i32) -> (i32, i32) {
    %c0_i32 = arith.constant 0 : i32
    %c0_i32_0 = arith.constant 0 : i32
    %c0_i32_1 = arith.constant 0 : i32
    return %c0_i32, %c0_i32_0 : i32, i32
  }
  func.func @transform_8(%arg0: i32, %arg1: i32) -> (i32, i32) {
    %c0_i32 = arith.constant 0 : i32
    %c0_i32_0 = arith.constant 0 : i32
    %c0_i32_1 = arith.constant 0 : i32
    return %c0_i32, %c0_i32_0 : i32, i32
  }
  func.func @transform_9(%arg0: i32, %arg1: i32) -> (i32, i32) {
    %c0_i32 = arith.constant 0 : i32
    %c0_i32_0 = arith.constant 0 : i32
    return %arg0, %c0_i32 : i32, i32
  }
}

module attributes {stable_mosaic.version = 11 : i64} {
  func.func @_glcc_fused_kernel(%arg0: i32, %arg1: i32, %arg2: memref<256x128xbf16, #tpu.memory_space<vmem>>, %arg3: memref<128x128xbf16, #tpu.memory_space<vmem>>, %arg4: memref<1x128xf32, #tpu.memory_space<vmem>>, %arg5: memref<128x256xbf16, #tpu.memory_space<vmem>>, %arg6: memref<1x256xf32, #tpu.memory_space<vmem>>, %arg7: memref<256x256xbf16, #tpu.memory_space<vmem>>, %arg8: memref<1x256xf32, #tpu.memory_space<vmem>>, %arg9: memref<256x128xbf16, #tpu.memory_space<vmem>>, %arg10: memref<1x128xf32, #tpu.memory_space<vmem>>, %arg11: memref<256x128xbf16, #tpu.memory_space<vmem>>, %arg12: memref<256x256xbf16, #tpu.memory_space<vmem>>, %arg13: memref<256x128xf32, #tpu.memory_space<vmem>>) attributes {dimension_semantics = [#tpu.dimension_semantics<parallel>, #tpu.dimension_semantics<arbitrary>], iteration_bounds = array<i64: 1, 1>, scalar_prefetch = 0 : i64, scratch_operands = 2 : i64, tpu.core_type = #tpu.core_type<tc>, window_params = [{transform_indices = @transform_0, window_bounds = array<i64: 256, 128>}, {pipeline_mode = #tpu.pipeline_mode<synchronous>, transform_indices = @transform_1, window_bounds = array<i64: 128, 128>}, {pipeline_mode = #tpu.pipeline_mode<synchronous>, transform_indices = @transform_2, window_bounds = array<i64: 1, 128>}, {pipeline_mode = #tpu.pipeline_mode<synchronous>, transform_indices = @transform_3, window_bounds = array<i64: 128, 256>}, {pipeline_mode = #tpu.pipeline_mode<synchronous>, transform_indices = @transform_4, window_bounds = array<i64: 1, 256>}, {pipeline_mode = #tpu.pipeline_mode<synchronous>, transform_indices = @transform_5, window_bounds = array<i64: 256, 256>}, {pipeline_mode = #tpu.pipeline_mode<synchronous>, transform_indices = @transform_6, window_bounds = array<i64: 1, 256>}, {pipeline_mode = #tpu.pipeline_mode<synchronous>, transform_indices = @transform_7, window_bounds = array<i64: 256, 128>}, {pipeline_mode = #tpu.pipeline_mode<synchronous>, transform_indices = @transform_8, window_bounds = array<i64: 1, 128>}, {transform_indices = @transform_9, window_bounds = array<i64: 256, 128>}]} {
    %c0_i32 = arith.constant 0 : i32
    %0 = arith.cmpi eq, %arg1, %c0_i32 : i32
    %1 = arith.extui %0 : i1 to i32
    %c0_i32_0 = arith.constant 0 : i32
    %2 = arith.cmpi ne, %1, %c0_i32_0 : i32
    scf.if %2 {
      %c0_16 = arith.constant 0 : index
      %c0_17 = arith.constant 0 : index
      %20 = vector.load %arg2[%c0_16, %c0_17] : memref<256x128xbf16, #tpu.memory_space<vmem>>, vector<256x128xbf16>
      %c0_18 = arith.constant 0 : index
      %c0_19 = arith.constant 0 : index
      %21 = vector.load %arg3[%c0_18, %c0_19] : memref<128x128xbf16, #tpu.memory_space<vmem>>, vector<128x128xbf16>
      %cst_20 = arith.constant dense<0.000000e+00> : vector<256x128xf32>
      %22 = tpu.matmul %20, %21, %cst_20 {dimension_numbers = #tpu.dot_dimension_numbers<[1], [0], [0], [1], [0, 0, 1, 1], [], []>} : vector<256x128xbf16>, vector<128x128xbf16>, vector<256x128xf32> -> vector<256x128xf32>
      %c0_21 = arith.constant 0 : index
      %c0_22 = arith.constant 0 : index
      %23 = vector.load %arg4[%c0_21, %c0_22] : memref<1x128xf32, #tpu.memory_space<vmem>>, vector<1x128xf32>
      %24 = vector.broadcast %23 : vector<1x128xf32> to vector<256x128xf32>
      %25 = arith.addf %22, %24 : vector<256x128xf32>
      %cst_23 = arith.constant 0.000000e+00 : f32
      %26 = vector.broadcast %cst_23 : f32 to vector<256x128xf32>
      %27 = arith.maximumf %25, %26 : vector<256x128xf32>
      %28 = arith.truncf %27 : vector<256x128xf32> to vector<256x128xbf16>
      %c0_24 = arith.constant 0 : index
      %c0_25 = arith.constant 0 : index
      %29 = vector.load %arg5[%c0_24, %c0_25] : memref<128x256xbf16, #tpu.memory_space<vmem>>, vector<128x256xbf16>
      %cst_26 = arith.constant dense<0.000000e+00> : vector<256x256xf32>
      %30 = tpu.matmul %28, %29, %cst_26 {dimension_numbers = #tpu.dot_dimension_numbers<[1], [0], [0], [1], [0, 0, 1, 1], [], []>} : vector<256x128xbf16>, vector<128x256xbf16>, vector<256x256xf32> -> vector<256x256xf32>
      %c0_27 = arith.constant 0 : index
      %c0_28 = arith.constant 0 : index
      %31 = vector.load %arg6[%c0_27, %c0_28] : memref<1x256xf32, #tpu.memory_space<vmem>>, vector<1x256xf32>
      %32 = vector.broadcast %31 : vector<1x256xf32> to vector<256x256xf32>
      %33 = arith.addf %30, %32 : vector<256x256xf32>
      %cst_29 = arith.constant 0.000000e+00 : f32
      %34 = vector.broadcast %cst_29 : f32 to vector<256x256xf32>
      %35 = arith.maximumf %33, %34 : vector<256x256xf32>
      %36 = arith.truncf %35 : vector<256x256xf32> to vector<256x256xbf16>
      %c0_30 = arith.constant 0 : index
      %c0_31 = arith.constant 0 : index
      %37 = vector.load %arg12[%c0_30, %c0_31] : memref<256x256xbf16, #tpu.memory_space<vmem>>, vector<256x256xbf16>
      tpu.vector_store %arg12[%c0_30, %c0_31], %36 {strides = array<i32>} : memref<256x256xbf16, #tpu.memory_space<vmem>>, vector<256x256xbf16>,
      %cst_32 = arith.constant 0.000000e+00 : f32
      %38 = vector.broadcast %cst_32 : f32 to vector<256x128xf32>
      %c0_33 = arith.constant 0 : index
      %c0_34 = arith.constant 0 : index
      %39 = vector.load %arg13[%c0_33, %c0_34] : memref<256x128xf32, #tpu.memory_space<vmem>>, vector<256x128xf32>
      tpu.vector_store %arg13[%c0_33, %c0_34], %38 {strides = array<i32>} : memref<256x128xf32, #tpu.memory_space<vmem>>, vector<256x128xf32>,
    } else {
    }
    %c0 = arith.constant 0 : index
    %c0_1 = arith.constant 0 : index
    %3 = vector.load %arg12[%c0, %c0_1] : memref<256x256xbf16, #tpu.memory_space<vmem>>, vector<256x256xbf16>
    %c0_2 = arith.constant 0 : index
    %c0_3 = arith.constant 0 : index
    %4 = vector.load %arg7[%c0_2, %c0_3] : memref<256x256xbf16, #tpu.memory_space<vmem>>, vector<256x256xbf16>
    %cst = arith.constant dense<0.000000e+00> : vector<256x256xf32>
    %5 = tpu.matmul %3, %4, %cst {dimension_numbers = #tpu.dot_dimension_numbers<[1], [0], [0], [1], [0, 0, 1, 1], [], []>} : vector<256x256xbf16>, vector<256x256xbf16>, vector<256x256xf32> -> vector<256x256xf32>
    %c0_4 = arith.constant 0 : index
    %c0_5 = arith.constant 0 : index
    %6 = vector.load %arg8[%c0_4, %c0_5] : memref<1x256xf32, #tpu.memory_space<vmem>>, vector<1x256xf32>
    %7 = vector.broadcast %6 : vector<1x256xf32> to vector<256x256xf32>
    %8 = arith.addf %5, %7 : vector<256x256xf32>
    %cst_6 = arith.constant 0.000000e+00 : f32
    %9 = vector.broadcast %cst_6 : f32 to vector<256x256xf32>
    %10 = arith.maximumf %8, %9 : vector<256x256xf32>
    %11 = arith.truncf %10 : vector<256x256xf32> to vector<256x256xbf16>
    %c0_7 = arith.constant 0 : index
    %c0_8 = arith.constant 0 : index
    %12 = vector.load %arg13[%c0_7, %c0_8] : memref<256x128xf32, #tpu.memory_space<vmem>>, vector<256x128xf32>
    %c0_9 = arith.constant 0 : index
    %c0_10 = arith.constant 0 : index
    %13 = vector.load %arg9[%c0_9, %c0_10] : memref<256x128xbf16, #tpu.memory_space<vmem>>, vector<256x128xbf16>
    %cst_11 = arith.constant dense<0.000000e+00> : vector<256x128xf32>
    %14 = tpu.matmul %11, %13, %cst_11 {dimension_numbers = #tpu.dot_dimension_numbers<[1], [0], [0], [1], [0, 0, 1, 1], [], []>} : vector<256x256xbf16>, vector<256x128xbf16>, vector<256x128xf32> -> vector<256x128xf32>
    %15 = arith.addf %12, %14 : vector<256x128xf32>
    %c0_12 = arith.constant 0 : index
    %c0_13 = arith.constant 0 : index
    %16 = vector.load %arg13[%c0_12, %c0_13] : memref<256x128xf32, #tpu.memory_space<vmem>>, vector<256x128xf32>
    tpu.vector_store %arg13[%c0_12, %c0_13], %15 {strides = array<i32>} : memref<256x128xf32, #tpu.memory_space<vmem>>, vector<256x128xf32>,
    %c0_i32_14 = arith.constant 0 : i32
    %17 = arith.cmpi eq, %arg1, %c0_i32_14 : i32
    %18 = arith.extui %17 : i1 to i32
    %c0_i32_15 = arith.constant 0 : i32
    %19 = arith.cmpi ne, %18, %c0_i32_15 : i32
    scf.if %19 {
      %c0_16 = arith.constant 0 : index
      %c0_17 = arith.constant 0 : index
      %20 = vector.load %arg13[%c0_16, %c0_17] : memref<256x128xf32, #tpu.memory_space<vmem>>, vector<256x128xf32>
      %c0_18 = arith.constant 0 : index
      %c0_19 = arith.constant 0 : index
      %21 = vector.load %arg10[%c0_18, %c0_19] : memref<1x128xf32, #tpu.memory_space<vmem>>, vector<1x128xf32>
      %22 = vector.broadcast %21 : vector<1x128xf32> to vector<256x128xf32>
      %23 = arith.addf %20, %22 : vector<256x128xf32>
      %24 = arith.truncf %23 : vector<256x128xf32> to vector<256x128xbf16>
      %c0_20 = arith.constant 0 : index
      %c0_21 = arith.constant 0 : index
      %25 = vector.load %arg11[%c0_20, %c0_21] : memref<256x128xbf16, #tpu.memory_space<vmem>>, vector<256x128xbf16>
      tpu.vector_store %arg11[%c0_20, %c0_21], %24 {strides = array<i32>} : memref<256x128xbf16, #tpu.memory_space<vmem>>, vector<256x128xbf16>,
    } else {
    }
    return
  }
  func.func @transform_0(%arg0: i32, %arg1: i32) -> (i32, i32) {
    %c0_i32 = arith.constant 0 : i32
    %c0_i32_0 = arith.constant 0 : i32
    return %arg0, %c0_i32 : i32, i32
  }
  func.func @transform_1(%arg0: i32, %arg1: i32) -> (i32, i32) {
    %c0_i32 = arith.constant 0 : i32
    %c0_i32_0 = arith.constant 0 : i32
    %c0_i32_1 = arith.constant 0 : i32
    return %c0_i32, %c0_i32_0 : i32, i32
  }
  func.func @transform_2(%arg0: i32, %arg1: i32) -> (i32, i32) {
    %c0_i32 = arith.constant 0 : i32
    %c0_i32_0 = arith.constant 0 : i32
    %c0_i32_1 = arith.constant 0 : i32
    return %c0_i32, %c0_i32_0 : i32, i32
  }
  func.func @transform_3(%arg0: i32, %arg1: i32) -> (i32, i32) {
    %c0_i32 = arith.constant 0 : i32
    %c0_i32_0 = arith.constant 0 : i32
    %c0_i32_1 = arith.constant 0 : i32
    return %c0_i32, %c0_i32_0 : i32, i32
  }
  func.func @transform_4(%arg0: i32, %arg1: i32) -> (i32, i32) {
    %c0_i32 = arith.constant 0 : i32
    %c0_i32_0 = arith.constant 0 : i32
    %c0_i32_1 = arith.constant 0 : i32
    return %c0_i32, %c0_i32_0 : i32, i32
  }
  func.func @transform_5(%arg0: i32, %arg1: i32) -> (i32, i32) {
    %c0_i32 = arith.constant 0 : i32
    %c0_i32_0 = arith.constant 0 : i32
    %c0_i32_1 = arith.constant 0 : i32
    return %c0_i32, %c0_i32_0 : i32, i32
  }
  func.func @transform_6(%arg0: i32, %arg1: i32) -> (i32, i32) {
    %c0_i32 = arith.constant 0 : i32
    %c0_i32_0 = arith.constant 0 : i32
    %c0_i32_1 = arith.constant 0 : i32
    return %c0_i32, %c0_i32_0 : i32, i32
  }
  func.func @transform_7(%arg0: i32, %arg1: i32) -> (i32, i32) {
    %c0_i32 = arith.constant 0 : i32
    %c0_i32_0 = arith.constant 0 : i32
    %c0_i32_1 = arith.constant 0 : i32
    return %c0_i32, %c0_i32_0 : i32, i32
  }
  func.func @transform_8(%arg0: i32, %arg1: i32) -> (i32, i32) {
    %c0_i32 = arith.constant 0 : i32
    %c0_i32_0 = arith.constant 0 : i32
    %c0_i32_1 = arith.constant 0 : i32
    return %c0_i32, %c0_i32_0 : i32, i32
  }
  func.func @transform_9(%arg0: i32, %arg1: i32) -> (i32, i32) {
    %c0_i32 = arith.constant 0 : i32
    %c0_i32_0 = arith.constant 0 : i32
    return %arg0, %c0_i32 : i32, i32
  }
}

</mosaic_0001>

<llo_original>
// kernel: tpu_custom_call.1
$region0: #{tpu_custom_call.1}
  #allocation0 [shape = 'u32[]', space=smem, size = 0x4, offset = 0x4, fixed_abs, tag = 'smem constant byte address 0x4 - core index']
  #allocation1 [shape = 'u32[72,128]{1,0:T(1,128)}', space=vmem, size = 0x9000, scoped, tag = 'internal scratch']
  #allocation2 [shape = 'bf16[256,256]{1,0:T(8,128)(2,1)}', space=vmem, size = 0x20000, scoped, tag = 'scratch operand']
  #allocation3 [shape = 'f32[256,128]{1,0:T(8,128)}', space=vmem, size = 0x20000, scoped, tag = 'scratch operand']
  %s0 = inlined_call_operand.hbm [shape: bf16[256,128], index: 0, kind: input, shape index: {}]
  %s1 = inlined_call_operand.hbm [shape: bf16[128,128], index: 1, kind: input, shape index: {}]
  %s2 = inlined_call_operand.hbm [shape: f32[1,128], index: 2, kind: input, shape index: {}]
  %s3 = inlined_call_operand.hbm [shape: bf16[128,256], index: 3, kind: input, shape index: {}]
  %s4 = inlined_call_operand.vmem [shape: f32[1,256], index: 4, kind: input, shape index: {}]
  %s5 = inlined_call_operand.hbm [shape: bf16[256,256], index: 5, kind: input, shape index: {}]
  %s6 = inlined_call_operand.vmem [shape: f32[1,256], index: 6, kind: input, shape index: {}]
  %s7 = inlined_call_operand.hbm [shape: bf16[256,128], index: 7, kind: input, shape index: {}]
  %s8 = inlined_call_operand.vmem [shape: f32[1,128], index: 8, kind: input, shape index: {}]
  %s9 = inlined_call_operand.hbm [shape: bf16[256,128], index: 9, kind: output, shape index: {}]
  %s10 = sld [smem:[#allocation0]]
  $region78: #{tpu_custom_call.1} parent=0
    _
  %s12 = ssub.s32 1, %s10
  %s13 = scalar_select 0, %s12, %s10
  $region1: #{tpu_custom_call.1} parent=0
    #allocation4 [shape = 'u8[65536]{0}', space=vmem, size = 0x10000, scoped, tag = 'input window, operand 0, single buffered']
    #allocation5 [shape = 's32[1]{0}', space=sflag, size = 0x4, scoped, tag = 'scoped memory for tpu_custom_call.1']
    #allocation6 [shape = 's32[1]{0}', space=sflag, size = 0x4, scoped, tag = 'scoped memory for tpu_custom_call.1']
    #allocation7 [shape = 'u8[32768]{0}', space=vmem, size = 0x8000, scoped, tag = 'input window, operand 1, single buffered']
    #allocation8 [shape = 's32[1]{0}', space=sflag, size = 0x4, scoped, tag = 'scoped memory for tpu_custom_call.1']
    #allocation9 [shape = 'u8[512]{0}', space=vmem, size = 0x400, scoped, tag = 'input window, operand 2, single buffered']
    #allocation10 [shape = 'u8[65536]{0}', space=vmem, size = 0x10000, scoped, tag = 'input window, operand 3, single buffered']
    #allocation11 [shape = 's32[1]{0}', space=sflag, size = 0x4, scoped, tag = 'scoped memory for tpu_custom_call.1']
    #allocation12 [shape = 'u8[131072]{0}', space=vmem, size = 0x20000, scoped, tag = 'input window, operand 5, single buffered']
    #allocation13 [shape = 'u8[65536]{0}', space=vmem, size = 0x10000, scoped, tag = 'input window, operand 7, single buffered']
    #allocation14 [shape = 's32[1]{0}', space=sflag, size = 0x4, scoped, tag = 'scoped memory for tpu_custom_call.1']
    #allocation15 [shape = 'u8[65536]{0}', space=vmem, size = 0x10000, scoped, tag = 'output window, operand 0, single buffered']
    %14 = vsyncpa [#allocation5], 0
    %15 = vsyncpa [#allocation8], 0
    %16 = vsyncpa [#allocation11], 0
    %17 = vsyncpa [#allocation14], 0
    %18 = vsyncpa [#allocation6], 0
    // Predicated region
    $region2: #{tpu_custom_call.1} parent=1 // pred_check
      _
    $region3: #{tpu_custom_call.1} parent=1 // pred_check_branch
      %20 = sbr.rel (0) target = $region5
    $region4: #{tpu_custom_call.1} parent=1 // pred_region
      %22 = vsyncadd [#allocation5], 0
      %s23 = sshll.u32 %s0, 4
      %s24 = int_to_ptr.hbm [resolvable:$true] %s23
      %s25 = sshll.u32 [#allocation4], 4
      %s26 = int_to_ptr.vmem [resolvable:$true] %s25
      %31 = dma.hbm_to_vmem [thread:$0]  %s24, 2048, %s26, [#allocation5], 64, 64, 4
    $region5: #{tpu_custom_call.1} parent=1 // pred_fallthru
      _
    // Predicated region
    $region6: #{tpu_custom_call.1} parent=1 // pred_check
      _
    $region7: #{tpu_custom_call.1} parent=1 // pred_check_branch
      %33 = sbr.rel (0) target = $region9
    $region8: #{tpu_custom_call.1} parent=1 // pred_region
      %35 = vsyncadd [#allocation8], 0
      %s36 = sshll.u32 %s1, 4
      %s37 = int_to_ptr.hbm [resolvable:$true] %s36
      %s38 = sshll.u32 [#allocation7], 4
      %s39 = int_to_ptr.vmem [resolvable:$true] %s38
      %44 = dma.hbm_to_vmem [thread:$0]  %s37, 1024, %s39, [#allocation8], 64, 64, 4
    $region9: #{tpu_custom_call.1} parent=1 // pred_fallthru
      _
    // Predicated region
    $region10: #{tpu_custom_call.1} parent=1 // pred_check
      _
    $region11: #{tpu_custom_call.1} parent=1 // pred_check_branch
      %46 = sbr.rel (0) target = $region13
    $region12: #{tpu_custom_call.1} parent=1 // pred_region
      %48 = vsyncadd [#allocation8], 0
      %s50 = sshll.u32 %s2, 4
      %s51 = int_to_ptr.hbm [resolvable:$true] %s50
      %s52 = sshll.u32 [#allocation9], 4
      %s53 = int_to_ptr.vmem [resolvable:$true] %s52
      %55 = dma.hbm_to_vmem [thread:$0]  %s51, 16, %s53, [#allocation8]
    $region13: #{tpu_custom_call.1} parent=1 // pred_fallthru
      _
    // Predicated region
    $region14: #{tpu_custom_call.1} parent=1 // pred_check
      _
    $region15: #{tpu_custom_call.1} parent=1 // pred_check_branch
      %57 = sbr.rel (0) target = $region17
    $region16: #{tpu_custom_call.1} parent=1 // pred_region
      %59 = vsyncadd [#allocation11], 0
      %s60 = sshll.u32 %s3, 4
      %s61 = int_to_ptr.hbm [resolvable:$true] %s60
      %s62 = sshll.u32 [#allocation10], 4
      %s63 = int_to_ptr.vmem [resolvable:$true] %s62
      %68 = dma.hbm_to_vmem [thread:$0]  %s61, 2048, %s63, [#allocation11], 128, 128, 8
    $region17: #{tpu_custom_call.1} parent=1 // pred_fallthru
      _
    // Predicated region
    $region18: #{tpu_custom_call.1} parent=1 // pred_check
      _
    $region19: #{tpu_custom_call.1} parent=1 // pred_check_branch
      %70 = sbr.rel (0) target = $region21
    $region20: #{tpu_custom_call.1} parent=1 // pred_region
      _
    $region21: #{tpu_custom_call.1} parent=1 // pred_fallthru
      _
    // Predicated region
    $region22: #{tpu_custom_call.1} parent=1 // pred_check
      _
    $region23: #{tpu_custom_call.1} parent=1 // pred_check_branch
      %72 = sbr.rel (0) target = $region25
    $region24: #{tpu_custom_call.1} parent=1 // pred_region
      %74 = vsyncadd [#allocation11], 0
      %s75 = sshll.u32 %s5, 4
      %s76 = int_to_ptr.hbm [resolvable:$true] %s75
      %s77 = sshll.u32 [#allocation12], 4
      %s78 = int_to_ptr.vmem [resolvable:$true] %s77
      %83 = dma.hbm_to_vmem [thread:$0]  %s76, 4096, %s78, [#allocation11], 128, 128, 8
    $region25: #{tpu_custom_call.1} parent=1 // pred_fallthru
      _
    // Predicated region
    $region26: #{tpu_custom_call.1} parent=1 // pred_check
      _
    $region27: #{tpu_custom_call.1} parent=1 // pred_check_branch
      %85 = sbr.rel (0) target = $region29
    $region28: #{tpu_custom_call.1} parent=1 // pred_region
      _
    $region29: #{tpu_custom_call.1} parent=1 // pred_fallthru
      _
    // Predicated region
    $region30: #{tpu_custom_call.1} parent=1 // pred_check
      _
    $region31: #{tpu_custom_call.1} parent=1 // pred_check_branch
      %87 = sbr.rel (0) target = $region33
    $region32: #{tpu_custom_call.1} parent=1 // pred_region
      %89 = vsyncadd [#allocation14], 0
      %s90 = sshll.u32 %s7, 4
      %s91 = int_to_ptr.hbm [resolvable:$true] %s90
      %s92 = sshll.u32 [#allocation13], 4
      %s93 = int_to_ptr.vmem [resolvable:$true] %s92
      %98 = dma.hbm_to_vmem [thread:$0]  %s91, 2048, %s93, [#allocation14], 64, 64, 4
    $region33: #{tpu_custom_call.1} parent=1 // pred_fallthru
      _
    // Predicated region
    $region34: #{tpu_custom_call.1} parent=1 // pred_check
      _
    $region35: #{tpu_custom_call.1} parent=1 // pred_check_branch
      %100 = sbr.rel (0) target = $region37
    $region36: #{tpu_custom_call.1} parent=1 // pred_region
      _
    $region37: #{tpu_custom_call.1} parent=1 // pred_fallthru
      _
    // Predicated region
    $region38: #{tpu_custom_call.1} parent=1 // pred_check
      _
    $region39: #{tpu_custom_call.1} parent=1 // pred_check_branch
      %102 = sbr.rel (0) target = $region41
    $region40: #{tpu_custom_call.1} parent=1 // pred_region
      %104 = dma.done [#allocation5], 2048
    $region41: #{tpu_custom_call.1} parent=1 // pred_fallthru
      _
    // Predicated region
    $region42: #{tpu_custom_call.1} parent=1 // pred_check
      _
    $region43: #{tpu_custom_call.1} parent=1 // pred_check_branch
      %106 = sbr.rel (0) target = $region45
    $region44: #{tpu_custom_call.1} parent=1 // pred_region
      %108 = dma.done [#allocation8], 1024
    $region45: #{tpu_custom_call.1} parent=1 // pred_fallthru
      _
    // Predicated region
    $region46: #{tpu_custom_call.1} parent=1 // pred_check
      _
    $region47: #{tpu_custom_call.1} parent=1 // pred_check_branch
      %110 = sbr.rel (0) target = $region49
    $region48: #{tpu_custom_call.1} parent=1 // pred_region
      %112 = dma.done [#allocation8], 16
    $region49: #{tpu_custom_call.1} parent=1 // pred_fallthru
      _
    // Predicated region
    $region50: #{tpu_custom_call.1} parent=1 // pred_check
      _
    $region51: #{tpu_custom_call.1} parent=1 // pred_check_branch
      %114 = sbr.rel (0) target = $region53
    $region52: #{tpu_custom_call.1} parent=1 // pred_region
      %116 = dma.done [#allocation11], 2048
    $region53: #{tpu_custom_call.1} parent=1 // pred_fallthru
      _
    // Predicated region
    $region54: #{tpu_custom_call.1} parent=1 // pred_check
      _
    $region55: #{tpu_custom_call.1} parent=1 // pred_check_branch
      %118 = sbr.rel (0) target = $region57
    $region56: #{tpu_custom_call.1} parent=1 // pred_region
      %120 = dma.done [#allocation11], 4096
    $region57: #{tpu_custom_call.1} parent=1 // pred_fallthru
      _
    // Predicated region
    $region58: #{tpu_custom_call.1} parent=1 // pred_check
      _
    $region59: #{tpu_custom_call.1} parent=1 // pred_check_branch
      %122 = sbr.rel (0) target = $region61
    $region60: #{tpu_custom_call.1} parent=1 // pred_region
      %124 = dma.done [#allocation14], 2048
    $region61: #{tpu_custom_call.1} parent=1 // pred_fallthru
      _
    %p125 = scmp.eq.s32.totalorder 0, 0
    // Predicated region
    $region62: #{tpu_custom_call.1} parent=1 // pred_check
      %p126 = pneg %p125
    $region63: #{tpu_custom_call.1} parent=1 // pred_check_branch
      %128 = sbr.rel (%p126) target = $region65
    $region64: #{tpu_custom_call.1} parent=1 // pred_region
      %v129 = vld [vmem:[#allocation4] sm:$0xf]
      %v130 = vld [vmem:[#allocation4 + $0x4] sm:$0xf]
      %v131 = vld [vmem:[#allocation4 + $0x8] sm:$0xf]
      %v132 = vld [vmem:[#allocation4 + $0xc] sm:$0xf]
      %v133 = vld [vmem:[#allocation4 + $0x10] sm:$0xf]
      %v134 = vld [vmem:[#allocation4 + $0x14] sm:$0xf]
      %v135 = vld [vmem:[#allocation4 + $0x18] sm:$0xf]
      %v136 = vld [vmem:[#allocation4 + $0x1c] sm:$0xf]
      %v137 = vld [vmem:[#allocation4 + $0x20] sm:$0xf]
      %v138 = vld [vmem:[#allocation4 + $0x24] sm:$0xf]
      %v139 = vld [vmem:[#allocation4 + $0x28] sm:$0xf]
      %v140 = vld [vmem:[#allocation4 + $0x2c] sm:$0xf]
      %v141 = vld [vmem:[#allocation4 + $0x30] sm:$0xf]
      %v142 = vld [vmem:[#allocation4 + $0x34] sm:$0xf]
      %v143 = vld [vmem:[#allocation4 + $0x38] sm:$0xf]
      %v144 = vld [vmem:[#allocation4 + $0x3c] sm:$0xf]
      %v145 = vld [vmem:[#allocation4 + $0x40] sm:$0xf]
      %v146 = vld [vmem:[#allocation4 + $0x44] sm:$0xf]
      %v147 = vld [vmem:[#allocation4 + $0x48] sm:$0xf]
      %v148 = vld [vmem:[#allocation4 + $0x4c] sm:$0xf]
      %v149 = vld [vmem:[#allocation4 + $0x50] sm:$0xf]
      %v150 = vld [vmem:[#allocation4 + $0x54] sm:$0xf]
      %v151 = vld [vmem:[#allocation4 + $0x58] sm:$0xf]
      %v152 = vld [vmem:[#allocation4 + $0x5c] sm:$0xf]
      %v153 = vld [vmem:[#allocation4 + $0x60] sm:$0xf]
      %v154 = vld [vmem:[#allocation4 + $0x64] sm:$0xf]
      %v155 = vld [vmem:[#allocation4 + $0x68] sm:$0xf]
      %v156 = vld [vmem:[#allocation4 + $0x6c] sm:$0xf]
      %v157 = vld [vmem:[#allocation4 + $0x70] sm:$0xf]
      %v158 = vld [vmem:[#allocation4 + $0x74] sm:$0xf]
      %v159 = vld [vmem:[#allocation4 + $0x78] sm:$0xf]
      %v160 = vld [vmem:[#allocation4 + $0x7c] sm:$0xf]
      %v161 = vld [vmem:[#allocation7] sm:$0xf]
      %v162 = vld [vmem:[#allocation7 + $0x4] sm:$0xf]
      %v163 = vld [vmem:[#allocation7 + $0x8] sm:$0xf]
      %v164 = vld [vmem:[#allocation7 + $0xc] sm:$0xf]
      %v165 = vld [vmem:[#allocation7 + $0x10] sm:$0xf]
      %v166 = vld [vmem:[#allocation7 + $0x14] sm:$0xf]
      %v167 = vld [vmem:[#allocation7 + $0x18] sm:$0xf]
      %v168 = vld [vmem:[#allocation7 + $0x1c] sm:$0xf]
      %v169 = vld [vmem:[#allocation7 + $0x20] sm:$0xf]
      %v170 = vld [vmem:[#allocation7 + $0x24] sm:$0xf]
      %v171 = vld [vmem:[#allocation7 + $0x28] sm:$0xf]
      %v172 = vld [vmem:[#allocation7 + $0x2c] sm:$0xf]
      %v173 = vld [vmem:[#allocation7 + $0x30] sm:$0xf]
      %v174 = vld [vmem:[#allocation7 + $0x34] sm:$0xf]
      %v175 = vld [vmem:[#allocation7 + $0x38] sm:$0xf]
      %v176 = vld [vmem:[#allocation7 + $0x3c] sm:$0xf]
      %v177 = vld [vmem:[#allocation9] sm:$0x1]
      %v179 = vperm.slane %v177, 0
      %v213 = vunpack.c.l.b16 %v129
      %v214 = vunpack.c.l.b16 %v130
      %v215 = vunpack.c.l.b16 %v131
      %v216 = vunpack.c.l.b16 %v132
      %v217 = vunpack.c.l.b16 %v133
      %v218 = vunpack.c.l.b16 %v134
      %v219 = vunpack.c.l.b16 %v135
      %v220 = vunpack.c.l.b16 %v136
      %v221 = vunpack.c.l.b16 %v137
      %v222 = vunpack.c.l.b16 %v138
      %v223 = vunpack.c.l.b16 %v139
      %v224 = vunpack.c.l.b16 %v140
      %v225 = vunpack.c.l.b16 %v141
      %v226 = vunpack.c.l.b16 %v142
      %v227 = vunpack.c.l.b16 %v143
      %v228 = vunpack.c.l.b16 %v144
      %v229 = vunpack.c.l.b16 %v145
      %v230 = vunpack.c.l.b16 %v146
      %v231 = vunpack.c.l.b16 %v147
      %v232 = vunpack.c.l.b16 %v148
      %v233 = vunpack.c.l.b16 %v149
      %v234 = vunpack.c.l.b16 %v150
      %v235 = vunpack.c.l.b16 %v151
      %v236 = vunpack.c.l.b16 %v152
      %v237 = vunpack.c.l.b16 %v153
      %v238 = vunpack.c.l.b16 %v154
      %v239 = vunpack.c.l.b16 %v155
      %v240 = vunpack.c.l.b16 %v156
      %v241 = vunpack.c.l.b16 %v157
      %v242 = vunpack.c.l.b16 %v158
      %v243 = vunpack.c.l.b16 %v159
      %v244 = vunpack.c.l.b16 %v160
      %v245 = vpack.c.b16 %v214, %v213
      %v246 = vpack.c.b16 %v216, %v215
      %v247 = vpack.c.b16 %v218, %v217
      %v248 = vpack.c.b16 %v220, %v219
      %v249 = vpack.c.b16 %v222, %v221
      %v250 = vpack.c.b16 %v224, %v223
      %v251 = vpack.c.b16 %v226, %v225
      %v252 = vpack.c.b16 %v228, %v227
      %v253 = vpack.c.b16 %v230, %v229
      %v254 = vpack.c.b16 %v232, %v231
      %v255 = vpack.c.b16 %v234, %v233
      %v256 = vpack.c.b16 %v236, %v235
      %v257 = vpack.c.b16 %v238, %v237
      %v258 = vpack.c.b16 %v240, %v239
      %v259 = vpack.c.b16 %v242, %v241
      %v260 = vpack.c.b16 %v244, %v243
      %v293 = vunpack.c.l.b16 %v161
      %v294 = vunpack.c.l.b16 %v162
      %v295 = vunpack.c.l.b16 %v163
      %v296 = vunpack.c.l.b16 %v164
      %v297 = vunpack.c.l.b16 %v165
      %v298 = vunpack.c.l.b16 %v166
      %v299 = vunpack.c.l.b16 %v167
      %v300 = vunpack.c.l.b16 %v168
      %v301 = vunpack.c.l.b16 %v169
      %v302 = vunpack.c.l.b16 %v170
      %v303 = vunpack.c.l.b16 %v171
      %v304 = vunpack.c.l.b16 %v172
      %v305 = vunpack.c.l.b16 %v173
      %v306 = vunpack.c.l.b16 %v174
      %v307 = vunpack.c.l.b16 %v175
      %v308 = vunpack.c.l.b16 %v176
      %v309 = vpack.c.b16 %v294, %v293
      %v310 = vpack.c.b16 %v296, %v295
      %v311 = vpack.c.b16 %v298, %v297
      %v312 = vpack.c.b16 %v300, %v299
      %v313 = vpack.c.b16 %v302, %v301
      %v314 = vpack.c.b16 %v304, %v303
      %v315 = vpack.c.b16 %v306, %v305
      %v316 = vpack.c.b16 %v308, %v307
      %325 = vmatpush.bf16.msra.mxu0 %v316
      %326 = vmatpush.bf16.msra.mxu0 %v315
      %327 = vmatpush.bf16.msra.mxu0 %v314
      %328 = vmatpush.bf16.msra.mxu0 %v313
      %329 = vmatpush.bf16.msra.mxu0 %v312
      %330 = vmatpush.bf16.msra.mxu0 %v311
      %331 = vmatpush.bf16.msra.mxu0 %v310
      %332 = vmatpush.bf16.msra.mxu0 %v309
      %333 = vmatmul.bf16.gmra.mxu0 %v245
      %v334 = vpop.f32.mrf.mxu0
      %v335 = vadd.f32 %v179, %v334
      %v336 = vpop.f32.mrf.mxu0
      %v337 = vadd.f32 %v179, %v336
      %338 = vmatmul.bf16.gmra.mxu0 %v246
      %v339 = vpop.f32.mrf.mxu0
      %v340 = vadd.f32 %v179, %v339
      %v341 = vpop.f32.mrf.mxu0
      %v342 = vadd.f32 %v179, %v341
      %343 = vmatmul.bf16.gmra.mxu0 %v247
      %v344 = vpop.f32.mrf.mxu0
      %v345 = vadd.f32 %v179, %v344
      %v346 = vpop.f32.mrf.mxu0
      %v347 = vadd.f32 %v179, %v346
      %348 = vmatmul.bf16.gmra.mxu0 %v248
      %v349 = vpop.f32.mrf.mxu0
      %v350 = vadd.f32 %v179, %v349
      %v351 = vpop.f32.mrf.mxu0
      %v352 = vadd.f32 %v179, %v351
      %353 = vmatmul.bf16.gmra.mxu0 %v249
      %v354 = vpop.f32.mrf.mxu0
      %v355 = vadd.f32 %v179, %v354
      %v356 = vpop.f32.mrf.mxu0
      %v357 = vadd.f32 %v179, %v356
      %358 = vmatmul.bf16.gmra.mxu0 %v250
      %v359 = vpop.f32.mrf.mxu0
      %v360 = vadd.f32 %v179, %v359
      %v361 = vpop.f32.mrf.mxu0
      %v362 = vadd.f32 %v179, %v361
      %363 = vmatmul.bf16.gmra.mxu0 %v251
      %v364 = vpop.f32.mrf.mxu0
      %v365 = vadd.f32 %v179, %v364
      %v366 = vpop.f32.mrf.mxu0
      %v367 = vadd.f32 %v179, %v366
      %368 = vmatmul.bf16.gmra.mxu0 %v252
      %v369 = vpop.f32.mrf.mxu0
      %v370 = vadd.f32 %v179, %v369
      %v371 = vpop.f32.mrf.mxu0
      %v372 = vadd.f32 %v179, %v371
      %373 = vmatmul.bf16.gmra.mxu0 %v253
      %v374 = vpop.f32.mrf.mxu0
      %v375 = vadd.f32 %v179, %v374
      %v376 = vpop.f32.mrf.mxu0
      %v377 = vadd.f32 %v179, %v376
      %378 = vmatmul.bf16.gmra.mxu0 %v254
      %v379 = vpop.f32.mrf.mxu0
      %v380 = vadd.f32 %v179, %v379
      %v381 = vpop.f32.mrf.mxu0
      %v382 = vadd.f32 %v179, %v381
      %383 = vmatmul.bf16.gmra.mxu0 %v255
      %v384 = vpop.f32.mrf.mxu0
      %v385 = vadd.f32 %v179, %v384
      %v386 = vpop.f32.mrf.mxu0
      %v387 = vadd.f32 %v179, %v386
      %388 = vmatmul.bf16.gmra.mxu0 %v256
      %v389 = vpop.f32.mrf.mxu0
      %v390 = vadd.f32 %v179, %v389
      %v391 = vpop.f32.mrf.mxu0
      %v392 = vadd.f32 %v179, %v391
      %393 = vmatmul.bf16.gmra.mxu0 %v257
      %v394 = vpop.f32.mrf.mxu0
      %v395 = vadd.f32 %v179, %v394
      %v396 = vpop.f32.mrf.mxu0
      %v397 = vadd.f32 %v179, %v396
      %398 = vmatmul.bf16.gmra.mxu0 %v258
      %v399 = vpop.f32.mrf.mxu0
      %v400 = vadd.f32 %v179, %v399
      %v401 = vpop.f32.mrf.mxu0
      %v402 = vadd.f32 %v179, %v401
      %403 = vmatmul.bf16.gmra.mxu0 %v259
      %v404 = vpop.f32.mrf.mxu0
      %v405 = vadd.f32 %v179, %v404
      %v406 = vpop.f32.mrf.mxu0
      %v407 = vadd.f32 %v179, %v406
      %408 = vmatmul.bf16.gmra.mxu0 %v260
      %v409 = vpop.f32.mrf.mxu0
      %v410 = vadd.f32 %v179, %v409
      %v411 = vpop.f32.mrf.mxu0
      %v412 = vadd.f32 %v179, %v411
      %413 = vdwg.mxu0
      %v414 = vmax.f32 %v335, 0.0
      %v415 = vmax.f32 %v337, 0.0
      %v416 = vmax.f32 %v340, 0.0
      %v417 = vmax.f32 %v342, 0.0
      %v418 = vmax.f32 %v345, 0.0
      %v419 = vmax.f32 %v347, 0.0
      %v420 = vmax.f32 %v350, 0.0
      %v421 = vmax.f32 %v352, 0.0
      %v422 = vmax.f32 %v355, 0.0
      %v423 = vmax.f32 %v357, 0.0
      %v424 = vmax.f32 %v360, 0.0
      %v425 = vmax.f32 %v362, 0.0
      %v426 = vmax.f32 %v365, 0.0
      %v427 = vmax.f32 %v367, 0.0
      %v428 = vmax.f32 %v370, 0.0
      %v429 = vmax.f32 %v372, 0.0
      %v430 = vmax.f32 %v375, 0.0
      %v431 = vmax.f32 %v377, 0.0
      %v432 = vmax.f32 %v380, 0.0
      %v433 = vmax.f32 %v382, 0.0
      %v434 = vmax.f32 %v385, 0.0
      %v435 = vmax.f32 %v387, 0.0
      %v436 = vmax.f32 %v390, 0.0
      %v437 = vmax.f32 %v392, 0.0
      %v438 = vmax.f32 %v395, 0.0
      %v439 = vmax.f32 %v397, 0.0
      %v440 = vmax.f32 %v400, 0.0
      %v441 = vmax.f32 %v402, 0.0
      %v442 = vmax.f32 %v405, 0.0
      %v443 = vmax.f32 %v407, 0.0
      %v444 = vmax.f32 %v410, 0.0
      %v445 = vmax.f32 %v412, 0.0
      %v446 = vpack.c.bf16 %v415, %v414
      %v447 = vpack.c.bf16 %v417, %v416
      %v448 = vpack.c.bf16 %v419, %v418
      %v449 = vpack.c.bf16 %v421, %v420
      %v450 = vpack.c.bf16 %v423, %v422
      %v451 = vpack.c.bf16 %v425, %v424
      %v452 = vpack.c.bf16 %v427, %v426
      %v453 = vpack.c.bf16 %v429, %v428
      %v454 = vpack.c.bf16 %v431, %v430
      %v455 = vpack.c.bf16 %v433, %v432
      %v456 = vpack.c.bf16 %v435, %v434
      %v457 = vpack.c.bf16 %v437, %v436
      %v458 = vpack.c.bf16 %v439, %v438
      %v459 = vpack.c.bf16 %v441, %v440
      %v460 = vpack.c.bf16 %v443, %v442
      %v461 = vpack.c.bf16 %v445, %v444
      %v462 = vld [vmem:[#allocation10] sm:$0xff]
      %v463 = vld [vmem:[#allocation10 + $0x8] sm:$0xff]
      %v464 = vld [vmem:[#allocation10 + $0x10] sm:$0xff]
      %v465 = vld [vmem:[#allocation10 + $0x18] sm:$0xff]
      %v466 = vld [vmem:[#allocation10 + $0x20] sm:$0xff]
      %v467 = vld [vmem:[#allocation10 + $0x28] sm:$0xff]
      %v468 = vld [vmem:[#allocation10 + $0x30] sm:$0xff]
      %v469 = vld [vmem:[#allocation10 + $0x38] sm:$0xff]
      %v470 = vld [vmem:[#allocation10 + $0x40] sm:$0xff]
      %v471 = vld [vmem:[#allocation10 + $0x48] sm:$0xff]
      %v472 = vld [vmem:[#allocation10 + $0x50] sm:$0xff]
      %v473 = vld [vmem:[#allocation10 + $0x58] sm:$0xff]
      %v474 = vld [vmem:[#allocation10 + $0x60] sm:$0xff]
      %v475 = vld [vmem:[#allocation10 + $0x68] sm:$0xff]
      %v476 = vld [vmem:[#allocation10 + $0x70] sm:$0xff]
      %v477 = vld [vmem:[#allocation10 + $0x78] sm:$0xff]
      %v478 = vld [vmem:[%s4] sm:$0x3]
      %v480 = vperm.slane %v478, 0
      %v481 = vperm.slane %v478, 1
      %v500 = vunpack.c.l.b16 %v462
      %v501 = vunpack.c.h.b16 %v462
      %v502 = vunpack.c.l.b16 %v463
      %v503 = vunpack.c.h.b16 %v463
      %v504 = vunpack.c.l.b16 %v464
      %v505 = vunpack.c.h.b16 %v464
      %v506 = vunpack.c.l.b16 %v465
      %v507 = vunpack.c.h.b16 %v465
      %v508 = vunpack.c.l.b16 %v466
      %v509 = vunpack.c.h.b16 %v466
      %v510 = vunpack.c.l.b16 %v467
      %v511 = vunpack.c.h.b16 %v467
      %v512 = vunpack.c.l.b16 %v468
      %v513 = vunpack.c.h.b16 %v468
      %v514 = vunpack.c.l.b16 %v469
      %v515 = vunpack.c.h.b16 %v469
      %v516 = vunpack.c.l.b16 %v470
      %v517 = vunpack.c.h.b16 %v470
      %v518 = vunpack.c.l.b16 %v471
      %v519 = vunpack.c.h.b16 %v471
      %v520 = vunpack.c.l.b16 %v472
      %v521 = vunpack.c.h.b16 %v472
      %v522 = vunpack.c.l.b16 %v473
      %v523 = vunpack.c.h.b16 %v473
      %v524 = vunpack.c.l.b16 %v474
      %v525 = vunpack.c.h.b16 %v474
      %v526 = vunpack.c.l.b16 %v475
      %v527 = vunpack.c.h.b16 %v475
      %v528 = vunpack.c.l.b16 %v476
      %v529 = vunpack.c.h.b16 %v476
      %v530 = vunpack.c.l.b16 %v477
      %v531 = vunpack.c.h.b16 %v477
      %v532 = vpack.c.b16 %v502, %v500
      %v533 = vpack.c.b16 %v503, %v501
      %v534 = vpack.c.b16 %v506, %v504
      %v535 = vpack.c.b16 %v507, %v505
      %v536 = vpack.c.b16 %v510, %v508
      %v537 = vpack.c.b16 %v511, %v509
      %v538 = vpack.c.b16 %v514, %v512
      %v539 = vpack.c.b16 %v515, %v513
      %v540 = vpack.c.b16 %v518, %v516
      %v541 = vpack.c.b16 %v519, %v517
      %v542 = vpack.c.b16 %v522, %v520
      %v543 = vpack.c.b16 %v523, %v521
      %v544 = vpack.c.b16 %v526, %v524
      %v545 = vpack.c.b16 %v527, %v525
      %v546 = vpack.c.b16 %v530, %v528
      %v547 = vpack.c.b16 %v531, %v529
      %564 = vmatpush.bf16.msra.mxu0 %v546
      %565 = vmatpush.bf16.msra.mxu0 %v544
      %566 = vmatpush.bf16.msra.mxu0 %v542
      %567 = vmatpush.bf16.msra.mxu0 %v540
      %568 = vmatpush.bf16.msra.mxu0 %v538
      %569 = vmatpush.bf16.msra.mxu0 %v536
      %570 = vmatpush.bf16.msra.mxu0 %v534
      %571 = vmatpush.bf16.msra.mxu0 %v532
      %572 = vmatmul.bf16.gmra.mxu0 %v446
      %v573 = vpop.f32.mrf.mxu0
      %v574 = vadd.f32 %v480, %v573
      %v575 = vpop.f32.mrf.mxu0
      %v576 = vadd.f32 %v480, %v575
      %577 = vmatmul.bf16.gmra.mxu0 %v447
      %v578 = vpop.f32.mrf.mxu0
      %v579 = vadd.f32 %v480, %v578
      %v580 = vpop.f32.mrf.mxu0
      %v581 = vadd.f32 %v480, %v580
      %582 = vmatmul.bf16.gmra.mxu0 %v448
      %v583 = vpop.f32.mrf.mxu0
      %v584 = vadd.f32 %v480, %v583
      %v585 = vpop.f32.mrf.mxu0
      %v586 = vadd.f32 %v480, %v585
      %587 = vmatmul.bf16.gmra.mxu0 %v449
      %v588 = vpop.f32.mrf.mxu0
      %v589 = vadd.f32 %v480, %v588
      %v590 = vpop.f32.mrf.mxu0
      %v591 = vadd.f32 %v480, %v590
      %592 = vmatmul.bf16.gmra.mxu0 %v450
      %v593 = vpop.f32.mrf.mxu0
      %v594 = vadd.f32 %v480, %v593
      %v595 = vpop.f32.mrf.mxu0
      %v596 = vadd.f32 %v480, %v595
      %597 = vmatmul.bf16.gmra.mxu0 %v451
      %v598 = vpop.f32.mrf.mxu0
      %v599 = vadd.f32 %v480, %v598
      %v600 = vpop.f32.mrf.mxu0
      %v601 = vadd.f32 %v480, %v600
      %602 = vmatmul.bf16.gmra.mxu0 %v452
      %v603 = vpop.f32.mrf.mxu0
      %v604 = vadd.f32 %v480, %v603
      %v605 = vpop.f32.mrf.mxu0
      %v606 = vadd.f32 %v480, %v605
      %607 = vmatmul.bf16.gmra.mxu0 %v453
      %v608 = vpop.f32.mrf.mxu0
      %v609 = vadd.f32 %v480, %v608
      %v610 = vpop.f32.mrf.mxu0
      %v611 = vadd.f32 %v480, %v610
      %612 = vmatmul.bf16.gmra.mxu0 %v454
      %v613 = vpop.f32.mrf.mxu0
      %v614 = vadd.f32 %v480, %v613
      %v615 = vpop.f32.mrf.mxu0
      %v616 = vadd.f32 %v480, %v615
      %617 = vmatmul.bf16.gmra.mxu0 %v455
      %v618 = vpop.f32.mrf.mxu0
      %v619 = vadd.f32 %v480, %v618
      %v620 = vpop.f32.mrf.mxu0
      %v621 = vadd.f32 %v480, %v620
      %622 = vmatmul.bf16.gmra.mxu0 %v456
      %v623 = vpop.f32.mrf.mxu0
      %v624 = vadd.f32 %v480, %v623
      %v625 = vpop.f32.mrf.mxu0
      %v626 = vadd.f32 %v480, %v625
      %627 = vmatmul.bf16.gmra.mxu0 %v457
      %v628 = vpop.f32.mrf.mxu0
      %v629 = vadd.f32 %v480, %v628
      %v630 = vpop.f32.mrf.mxu0
      %v631 = vadd.f32 %v480, %v630
      %632 = vmatmul.bf16.gmra.mxu0 %v458
      %v633 = vpop.f32.mrf.mxu0
      %v634 = vadd.f32 %v480, %v633
      %v635 = vpop.f32.mrf.mxu0
      %v636 = vadd.f32 %v480, %v635
      %637 = vmatmul.bf16.gmra.mxu0 %v459
      %v638 = vpop.f32.mrf.mxu0
      %v639 = vadd.f32 %v480, %v638
      %v640 = vpop.f32.mrf.mxu0
      %v641 = vadd.f32 %v480, %v640
      %642 = vmatmul.bf16.gmra.mxu0 %v460
      %v643 = vpop.f32.mrf.mxu0
      %v644 = vadd.f32 %v480, %v643
      %v645 = vpop.f32.mrf.mxu0
      %v646 = vadd.f32 %v480, %v645
      %647 = vmatmul.bf16.gmra.mxu0 %v461
      %v648 = vpop.f32.mrf.mxu0
      %v649 = vadd.f32 %v480, %v648
      %v650 = vpop.f32.mrf.mxu0
      %v651 = vadd.f32 %v480, %v650
      %652 = vdwg.mxu0
      %653 = vmatpush.bf16.msra.mxu0 %v547
      %654 = vmatpush.bf16.msra.mxu0 %v545
      %655 = vmatpush.bf16.msra.mxu0 %v543
      %656 = vmatpush.bf16.msra.mxu0 %v541
      %657 = vmatpush.bf16.msra.mxu0 %v539
      %658 = vmatpush.bf16.msra.mxu0 %v537
      %659 = vmatpush.bf16.msra.mxu0 %v535
      %660 = vmatpush.bf16.msra.mxu0 %v533
      %661 = vmatmul.bf16.gmra.mxu0 %v446
      %v662 = vpop.f32.mrf.mxu0
      %v663 = vadd.f32 %v481, %v662
      %v664 = vpop.f32.mrf.mxu0
      %v665 = vadd.f32 %v481, %v664
      %666 = vmatmul.bf16.gmra.mxu0 %v447
      %v667 = vpop.f32.mrf.mxu0
      %v668 = vadd.f32 %v481, %v667
      %v669 = vpop.f32.mrf.mxu0
      %v670 = vadd.f32 %v481, %v669
      %671 = vmatmul.bf16.gmra.mxu0 %v448
      %v672 = vpop.f32.mrf.mxu0
      %v673 = vadd.f32 %v481, %v672
      %v674 = vpop.f32.mrf.mxu0
      %v675 = vadd.f32 %v481, %v674
      %676 = vmatmul.bf16.gmra.mxu0 %v449
      %v677 = vpop.f32.mrf.mxu0
      %v678 = vadd.f32 %v481, %v677
      %v679 = vpop.f32.mrf.mxu0
      %v680 = vadd.f32 %v481, %v679
      %681 = vmatmul.bf16.gmra.mxu0 %v450
      %v682 = vpop.f32.mrf.mxu0
      %v683 = vadd.f32 %v481, %v682
      %v684 = vpop.f32.mrf.mxu0
      %v685 = vadd.f32 %v481, %v684
      %686 = vmatmul.bf16.gmra.mxu0 %v451
      %v687 = vpop.f32.mrf.mxu0
      %v688 = vadd.f32 %v481, %v687
      %v689 = vpop.f32.mrf.mxu0
      %v690 = vadd.f32 %v481, %v689
      %691 = vmatmul.bf16.gmra.mxu0 %v452
      %v692 = vpop.f32.mrf.mxu0
      %v693 = vadd.f32 %v481, %v692
      %v694 = vpop.f32.mrf.mxu0
      %v695 = vadd.f32 %v481, %v694
      %696 = vmatmul.bf16.gmra.mxu0 %v453
      %v697 = vpop.f32.mrf.mxu0
      %v698 = vadd.f32 %v481, %v697
      %v699 = vpop.f32.mrf.mxu0
      %v700 = vadd.f32 %v481, %v699
      %701 = vmatmul.bf16.gmra.mxu0 %v454
      %v702 = vpop.f32.mrf.mxu0
      %v703 = vadd.f32 %v481, %v702
      %v704 = vpop.f32.mrf.mxu0
      %v705 = vadd.f32 %v481, %v704
      %706 = vmatmul.bf16.gmra.mxu0 %v455
      %v707 = vpop.f32.mrf.mxu0
      %v708 = vadd.f32 %v481, %v707
      %v709 = vpop.f32.mrf.mxu0
      %v710 = vadd.f32 %v481, %v709
      %711 = vmatmul.bf16.gmra.mxu0 %v456
      %v712 = vpop.f32.mrf.mxu0
      %v713 = vadd.f32 %v481, %v712
      %v714 = vpop.f32.mrf.mxu0
      %v715 = vadd.f32 %v481, %v714
      %716 = vmatmul.bf16.gmra.mxu0 %v457
      %v717 = vpop.f32.mrf.mxu0
      %v718 = vadd.f32 %v481, %v717
      %v719 = vpop.f32.mrf.mxu0
      %v720 = vadd.f32 %v481, %v719
      %721 = vmatmul.bf16.gmra.mxu0 %v458
      %v722 = vpop.f32.mrf.mxu0
      %v723 = vadd.f32 %v481, %v722
      %v724 = vpop.f32.mrf.mxu0
      %v725 = vadd.f32 %v481, %v724
      %726 = vmatmul.bf16.gmra.mxu0 %v459
      %v727 = vpop.f32.mrf.mxu0
      %v728 = vadd.f32 %v481, %v727
      %v729 = vpop.f32.mrf.mxu0
      %v730 = vadd.f32 %v481, %v729
      %731 = vmatmul.bf16.gmra.mxu0 %v460
      %v732 = vpop.f32.mrf.mxu0
      %v733 = vadd.f32 %v481, %v732
      %v734 = vpop.f32.mrf.mxu0
      %v735 = vadd.f32 %v481, %v734
      %736 = vmatmul.bf16.gmra.mxu0 %v461
      %v737 = vpop.f32.mrf.mxu0
      %v738 = vadd.f32 %v481, %v737
      %v739 = vpop.f32.mrf.mxu0
      %v740 = vadd.f32 %v481, %v739
      %741 = vdwg.mxu0
      %v742 = vmax.f32 %v574, 0.0
      %v743 = vmax.f32 %v663, 0.0
      %v744 = vmax.f32 %v576, 0.0
      %v745 = vmax.f32 %v665, 0.0
      %v746 = vmax.f32 %v579, 0.0
      %v747 = vmax.f32 %v668, 0.0
      %v748 = vmax.f32 %v581, 0.0
      %v749 = vmax.f32 %v670, 0.0
      %v750 = vmax.f32 %v584, 0.0
      %v751 = vmax.f32 %v673, 0.0
      %v752 = vmax.f32 %v586, 0.0
      %v753 = vmax.f32 %v675, 0.0
      %v754 = vmax.f32 %v589, 0.0
      %v755 = vmax.f32 %v678, 0.0
      %v756 = vmax.f32 %v591, 0.0
      %v757 = vmax.f32 %v680, 0.0
      %v758 = vmax.f32 %v594, 0.0
      %v759 = vmax.f32 %v683, 0.0
      %v760 = vmax.f32 %v596, 0.0
      %v761 = vmax.f32 %v685, 0.0
      %v762 = vmax.f32 %v599, 0.0
      %v763 = vmax.f32 %v688, 0.0
      %v764 = vmax.f32 %v601, 0.0
      %v765 = vmax.f32 %v690, 0.0
      %v766 = vmax.f32 %v604, 0.0
      %v767 = vmax.f32 %v693, 0.0
      %v768 = vmax.f32 %v606, 0.0
      %v769 = vmax.f32 %v695, 0.0
      %v770 = vmax.f32 %v609, 0.0
      %v771 = vmax.f32 %v698, 0.0
      %v772 = vmax.f32 %v611, 0.0
      %v773 = vmax.f32 %v700, 0.0
      %v774 = vmax.f32 %v614, 0.0
      %v775 = vmax.f32 %v703, 0.0
      %v776 = vmax.f32 %v616, 0.0
      %v777 = vmax.f32 %v705, 0.0
      %v778 = vmax.f32 %v619, 0.0
      %v779 = vmax.f32 %v708, 0.0
      %v780 = vmax.f32 %v621, 0.0
      %v781 = vmax.f32 %v710, 0.0
      %v782 = vmax.f32 %v624, 0.0
      %v783 = vmax.f32 %v713, 0.0
      %v784 = vmax.f32 %v626, 0.0
      %v785 = vmax.f32 %v715, 0.0
      %v786 = vmax.f32 %v629, 0.0
      %v787 = vmax.f32 %v718, 0.0
      %v788 = vmax.f32 %v631, 0.0
      %v789 = vmax.f32 %v720, 0.0
      %v790 = vmax.f32 %v634, 0.0
      %v791 = vmax.f32 %v723, 0.0
      %v792 = vmax.f32 %v636, 0.0
      %v793 = vmax.f32 %v725, 0.0
      %v794 = vmax.f32 %v639, 0.0
      %v795 = vmax.f32 %v728, 0.0
      %v796 = vmax.f32 %v641, 0.0
      %v797 = vmax.f32 %v730, 0.0
      %v798 = vmax.f32 %v644, 0.0
      %v799 = vmax.f32 %v733, 0.0
      %v800 = vmax.f32 %v646, 0.0
      %v801 = vmax.f32 %v735, 0.0
      %v802 = vmax.f32 %v649, 0.0
      %v803 = vmax.f32 %v738, 0.0
      %v804 = vmax.f32 %v651, 0.0
      %v805 = vmax.f32 %v740, 0.0
      %v806 = vpack.c.bf16 %v743, %v742
      %v807 = vpack.c.bf16 %v745, %v744
      %v808 = vpack.c.bf16 %v747, %v746
      %v809 = vpack.c.bf16 %v749, %v748
      %v810 = vpack.c.bf16 %v751, %v750
      %v811 = vpack.c.bf16 %v753, %v752
      %v812 = vpack.c.bf16 %v755, %v754
      %v813 = vpack.c.bf16 %v757, %v756
      %v814 = vpack.c.bf16 %v759, %v758
      %v815 = vpack.c.bf16 %v761, %v760
      %v816 = vpack.c.bf16 %v763, %v762
      %v817 = vpack.c.bf16 %v765, %v764
      %v818 = vpack.c.bf16 %v767, %v766
      %v819 = vpack.c.bf16 %v769, %v768
      %v820 = vpack.c.bf16 %v771, %v770
      %v821 = vpack.c.bf16 %v773, %v772
      %v822 = vpack.c.bf16 %v775, %v774
      %v823 = vpack.c.bf16 %v777, %v776
      %v824 = vpack.c.bf16 %v779, %v778
      %v825 = vpack.c.bf16 %v781, %v780
      %v826 = vpack.c.bf16 %v783, %v782
      %v827 = vpack.c.bf16 %v785, %v784
      %v828 = vpack.c.bf16 %v787, %v786
      %v829 = vpack.c.bf16 %v789, %v788
      %v830 = vpack.c.bf16 %v791, %v790
      %v831 = vpack.c.bf16 %v793, %v792
      %v832 = vpack.c.bf16 %v795, %v794
      %v833 = vpack.c.bf16 %v797, %v796
      %v834 = vpack.c.bf16 %v799, %v798
      %v835 = vpack.c.bf16 %v801, %v800
      %v836 = vpack.c.bf16 %v803, %v802
      %v837 = vpack.c.bf16 %v805, %v804
      %838 = vst [vmem:[#allocation2] sm:$0xff] %v806
      %839 = vst [vmem:[#allocation2 + $0x8] sm:$0xff] %v807
      %840 = vst [vmem:[#allocation2 + $0x10] sm:$0xff] %v808
      %841 = vst [vmem:[#allocation2 + $0x18] sm:$0xff] %v809
      %842 = vst [vmem:[#allocation2 + $0x20] sm:$0xff] %v810
      %843 = vst [vmem:[#allocation2 + $0x28] sm:$0xff] %v811
      %844 = vst [vmem:[#allocation2 + $0x30] sm:$0xff] %v812
      %845 = vst [vmem:[#allocation2 + $0x38] sm:$0xff] %v813
      %846 = vst [vmem:[#allocation2 + $0x40] sm:$0xff] %v814
      %847 = vst [vmem:[#allocation2 + $0x48] sm:$0xff] %v815
      %848 = vst [vmem:[#allocation2 + $0x50] sm:$0xff] %v816
      %849 = vst [vmem:[#allocation2 + $0x58] sm:$0xff] %v817
      %850 = vst [vmem:[#allocation2 + $0x60] sm:$0xff] %v818
      %851 = vst [vmem:[#allocation2 + $0x68] sm:$0xff] %v819
      %852 = vst [vmem:[#allocation2 + $0x70] sm:$0xff] %v820
      %853 = vst [vmem:[#allocation2 + $0x78] sm:$0xff] %v821
      %854 = vst [vmem:[#allocation2 + $0x80] sm:$0xff] %v822
      %855 = vst [vmem:[#allocation2 + $0x88] sm:$0xff] %v823
      %856 = vst [vmem:[#allocation2 + $0x90] sm:$0xff] %v824
      %857 = vst [vmem:[#allocation2 + $0x98] sm:$0xff] %v825
      %858 = vst [vmem:[#allocation2 + $0xa0] sm:$0xff] %v826
      %859 = vst [vmem:[#allocation2 + $0xa8] sm:$0xff] %v827
      %860 = vst [vmem:[#allocation2 + $0xb0] sm:$0xff] %v828
      %861 = vst [vmem:[#allocation2 + $0xb8] sm:$0xff] %v829
      %862 = vst [vmem:[#allocation2 + $0xc0] sm:$0xff] %v830
      %863 = vst [vmem:[#allocation2 + $0xc8] sm:$0xff] %v831
      %864 = vst [vmem:[#allocation2 + $0xd0] sm:$0xff] %v832
      %865 = vst [vmem:[#allocation2 + $0xd8] sm:$0xff] %v833
      %866 = vst [vmem:[#allocation2 + $0xe0] sm:$0xff] %v834
      %867 = vst [vmem:[#allocation2 + $0xe8] sm:$0xff] %v835
      %868 = vst [vmem:[#allocation2 + $0xf0] sm:$0xff] %v836
      %869 = vst [vmem:[#allocation2 + $0xf8] sm:$0xff] %v837
      %870 = vst [vmem:[#allocation3] sm:$0xff] 0.0
      %871 = vst [vmem:[#allocation3 + $0x8] sm:$0xff] 0.0
      %872 = vst [vmem:[#allocation3 + $0x10] sm:$0xff] 0.0
      %873 = vst [vmem:[#allocation3 + $0x18] sm:$0xff] 0.0
      %874 = vst [vmem:[#allocation3 + $0x20] sm:$0xff] 0.0
      %875 = vst [vmem:[#allocation3 + $0x28] sm:$0xff] 0.0
      %876 = vst [vmem:[#allocation3 + $0x30] sm:$0xff] 0.0
      %877 = vst [vmem:[#allocation3 + $0x38] sm:$0xff] 0.0
      %878 = vst [vmem:[#allocation3 + $0x40] sm:$0xff] 0.0
      %879 = vst [vmem:[#allocation3 + $0x48] sm:$0xff] 0.0
      %880 = vst [vmem:[#allocation3 + $0x50] sm:$0xff] 0.0
      %881 = vst [vmem:[#allocation3 + $0x58] sm:$0xff] 0.0
      %882 = vst [vmem:[#allocation3 + $0x60] sm:$0xff] 0.0
      %883 = vst [vmem:[#allocation3 + $0x68] sm:$0xff] 0.0
      %884 = vst [vmem:[#allocation3 + $0x70] sm:$0xff] 0.0
      %885 = vst [vmem:[#allocation3 + $0x78] sm:$0xff] 0.0
      %886 = vst [vmem:[#allocation3 + $0x80] sm:$0xff] 0.0
      %887 = vst [vmem:[#allocation3 + $0x88] sm:$0xff] 0.0
      %888 = vst [vmem:[#allocation3 + $0x90] sm:$0xff] 0.0
      %889 = vst [vmem:[#allocation3 + $0x98] sm:$0xff] 0.0
      %890 = vst [vmem:[#allocation3 + $0xa0] sm:$0xff] 0.0
      %891 = vst [vmem:[#allocation3 + $0xa8] sm:$0xff] 0.0
      %892 = vst [vmem:[#allocation3 + $0xb0] sm:$0xff] 0.0
      %893 = vst [vmem:[#allocation3 + $0xb8] sm:$0xff] 0.0
      %894 = vst [vmem:[#allocation3 + $0xc0] sm:$0xff] 0.0
      %895 = vst [vmem:[#allocation3 + $0xc8] sm:$0xff] 0.0
      %896 = vst [vmem:[#allocation3 + $0xd0] sm:$0xff] 0.0
      %897 = vst [vmem:[#allocation3 + $0xd8] sm:$0xff] 0.0
      %898 = vst [vmem:[#allocation3 + $0xe0] sm:$0xff] 0.0
      %899 = vst [vmem:[#allocation3 + $0xe8] sm:$0xff] 0.0
      %900 = vst [vmem:[#allocation3 + $0xf0] sm:$0xff] 0.0
      %901 = vst [vmem:[#allocation3 + $0xf8] sm:$0xff] 0.0
    $region65: #{tpu_custom_call.1} parent=1 // pred_fallthru
      _
    %v902 = vld [vmem:[#allocation2] sm:$0xff]
    %v903 = vld [vmem:[#allocation2 + $0x8] sm:$0xff]
    %v904 = vld [vmem:[#allocation2 + $0x10] sm:$0xff]
    %v905 = vld [vmem:[#allocation2 + $0x18] sm:$0xff]
    %v906 = vld [vmem:[#allocation2 + $0x20] sm:$0xff]
    %v907 = vld [vmem:[#allocation2 + $0x28] sm:$0xff]
    %v908 = vld [vmem:[#allocation2 + $0x30] sm:$0xff]
    %v909 = vld [vmem:[#allocation2 + $0x38] sm:$0xff]
    %v910 = vld [vmem:[#allocation2 + $0x40] sm:$0xff]
    %v911 = vld [vmem:[#allocation2 + $0x48] sm:$0xff]
    %v912 = vld [vmem:[#allocation2 + $0x50] sm:$0xff]
    %v913 = vld [vmem:[#allocation2 + $0x58] sm:$0xff]
    %v914 = vld [vmem:[#allocation2 + $0x60] sm:$0xff]
    %v915 = vld [vmem:[#allocation2 + $0x68] sm:$0xff]
    %v916 = vld [vmem:[#allocation2 + $0x70] sm:$0xff]
    %v917 = vld [vmem:[#allocation2 + $0x78] sm:$0xff]
    %v918 = vld [vmem:[#allocation2 + $0x80] sm:$0xff]
    %v919 = vld [vmem:[#allocation2 + $0x88] sm:$0xff]
    %v920 = vld [vmem:[#allocation2 + $0x90] sm:$0xff]
    %v921 = vld [vmem:[#allocation2 + $0x98] sm:$0xff]
    %v922 = vld [vmem:[#allocation2 + $0xa0] sm:$0xff]
    %v923 = vld [vmem:[#allocation2 + $0xa8] sm:$0xff]
    %v924 = vld [vmem:[#allocation2 + $0xb0] sm:$0xff]
    %v925 = vld [vmem:[#allocation2 + $0xb8] sm:$0xff]
    %v926 = vld [vmem:[#allocation2 + $0xc0] sm:$0xff]
    %v927 = vld [vmem:[#allocation2 + $0xc8] sm:$0xff]
    %v928 = vld [vmem:[#allocation2 + $0xd0] sm:$0xff]
    %v929 = vld [vmem:[#allocation2 + $0xd8] sm:$0xff]
    %v930 = vld [vmem:[#allocation2 + $0xe0] sm:$0xff]
    %v931 = vld [vmem:[#allocation2 + $0xe8] sm:$0xff]
    %v932 = vld [vmem:[#allocation2 + $0xf0] sm:$0xff]
    %v933 = vld [vmem:[#allocation2 + $0xf8] sm:$0xff]
    %v934 = vld [vmem:[#allocation12] sm:$0xff]
    %v935 = vld [vmem:[#allocation12 + $0x8] sm:$0xff]
    %v936 = vld [vmem:[#allocation12 + $0x10] sm:$0xff]
    %v937 = vld [vmem:[#allocation12 + $0x18] sm:$0xff]
    %v938 = vld [vmem:[#allocation12 + $0x20] sm:$0xff]
    %v939 = vld [vmem:[#allocation12 + $0x28] sm:$0xff]
    %v940 = vld [vmem:[#allocation12 + $0x30] sm:$0xff]
    %v941 = vld [vmem:[#allocation12 + $0x38] sm:$0xff]
    %v942 = vld [vmem:[#allocation12 + $0x40] sm:$0xff]
    %v943 = vld [vmem:[#allocation12 + $0x48] sm:$0xff]
    %v944 = vld [vmem:[#allocation12 + $0x50] sm:$0xff]
    %v945 = vld [vmem:[#allocation12 + $0x58] sm:$0xff]
    %v946 = vld [vmem:[#allocation12 + $0x60] sm:$0xff]
    %v947 = vld [vmem:[#allocation12 + $0x68] sm:$0xff]
    %v948 = vld [vmem:[#allocation12 + $0x70] sm:$0xff]
    %v949 = vld [vmem:[#allocation12 + $0x78] sm:$0xff]
    %v950 = vld [vmem:[#allocation12 + $0x80] sm:$0xff]
    %v951 = vld [vmem:[#allocation12 + $0x88] sm:$0xff]
    %v952 = vld [vmem:[#allocation12 + $0x90] sm:$0xff]
    %v953 = vld [vmem:[#allocation12 + $0x98] sm:$0xff]
    %v954 = vld [vmem:[#allocation12 + $0xa0] sm:$0xff]
    %v955 = vld [vmem:[#allocation12 + $0xa8] sm:$0xff]
    %v956 = vld [vmem:[#allocation12 + $0xb0] sm:$0xff]
    %v957 = vld [vmem:[#allocation12 + $0xb8] sm:$0xff]
    %v958 = vld [vmem:[#allocation12 + $0xc0] sm:$0xff]
    %v959 = vld [vmem:[#allocation12 + $0xc8] sm:$0xff]
    %v960 = vld [vmem:[#allocation12 + $0xd0] sm:$0xff]
    %v961 = vld [vmem:[#allocation12 + $0xd8] sm:$0xff]
    %v962 = vld [vmem:[#allocation12 + $0xe0] sm:$0xff]
    %v963 = vld [vmem:[#allocation12 + $0xe8] sm:$0xff]
    %v964 = vld [vmem:[#allocation12 + $0xf0] sm:$0xff]
    %v965 = vld [vmem:[#allocation12 + $0xf8] sm:$0xff]
    %v966 = vld [vmem:[%s6] sm:$0x3]
    %v968 = vperm.slane %v966, 0
    %v969 = vperm.slane %v966, 1
    %v1004 = vunpack.c.l.b16 %v902
    %v1005 = vunpack.c.h.b16 %v902
    %v1006 = vunpack.c.l.b16 %v903
    %v1007 = vunpack.c.h.b16 %v903
    %v1008 = vunpack.c.l.b16 %v904
    %v1009 = vunpack.c.h.b16 %v904
    %v1010 = vunpack.c.l.b16 %v905
    %v1011 = vunpack.c.h.b16 %v905
    %v1012 = vunpack.c.l.b16 %v906
    %v1013 = vunpack.c.h.b16 %v906
    %v1014 = vunpack.c.l.b16 %v907
    %v1015 = vunpack.c.h.b16 %v907
    %v1016 = vunpack.c.l.b16 %v908
    %v1017 = vunpack.c.h.b16 %v908
    %v1018 = vunpack.c.l.b16 %v909
    %v1019 = vunpack.c.h.b16 %v909
    %v1020 = vunpack.c.l.b16 %v910
    %v1021 = vunpack.c.h.b16 %v910
    %v1022 = vunpack.c.l.b16 %v911
    %v1023 = vunpack.c.h.b16 %v911
    %v1024 = vunpack.c.l.b16 %v912
    %v1025 = vunpack.c.h.b16 %v912
    %v1026 = vunpack.c.l.b16 %v913
    %v1027 = vunpack.c.h.b16 %v913
    %v1028 = vunpack.c.l.b16 %v914
    %v1029 = vunpack.c.h.b16 %v914
    %v1030 = vunpack.c.l.b16 %v915
    %v1031 = vunpack.c.h.b16 %v915
    %v1032 = vunpack.c.l.b16 %v916
    %v1033 = vunpack.c.h.b16 %v916
    %v1034 = vunpack.c.l.b16 %v917
    %v1035 = vunpack.c.h.b16 %v917
    %v1036 = vunpack.c.l.b16 %v918
    %v1037 = vunpack.c.h.b16 %v918
    %v1038 = vunpack.c.l.b16 %v919
    %v1039 = vunpack.c.h.b16 %v919
    %v1040 = vunpack.c.l.b16 %v920
    %v1041 = vunpack.c.h.b16 %v920
    %v1042 = vunpack.c.l.b16 %v921
    %v1043 = vunpack.c.h.b16 %v921
    %v1044 = vunpack.c.l.b16 %v922
    %v1045 = vunpack.c.h.b16 %v922
    %v1046 = vunpack.c.l.b16 %v923
    %v1047 = vunpack.c.h.b16 %v923
    %v1048 = vunpack.c.l.b16 %v924
    %v1049 = vunpack.c.h.b16 %v924
    %v1050 = vunpack.c.l.b16 %v925
    %v1051 = vunpack.c.h.b16 %v925
    %v1052 = vunpack.c.l.b16 %v926
    %v1053 = vunpack.c.h.b16 %v926
    %v1054 = vunpack.c.l.b16 %v927
    %v1055 = vunpack.c.h.b16 %v927
    %v1056 = vunpack.c.l.b16 %v928
    %v1057 = vunpack.c.h.b16 %v928
    %v1058 = vunpack.c.l.b16 %v929
    %v1059 = vunpack.c.h.b16 %v929
    %v1060 = vunpack.c.l.b16 %v930
    %v1061 = vunpack.c.h.b16 %v930
    %v1062 = vunpack.c.l.b16 %v931
    %v1063 = vunpack.c.h.b16 %v931
    %v1064 = vunpack.c.l.b16 %v932
    %v1065 = vunpack.c.h.b16 %v932
    %v1066 = vunpack.c.l.b16 %v933
    %v1067 = vunpack.c.h.b16 %v933
    %v1068 = vpack.c.b16 %v1006, %v1004
    %v1069 = vpack.c.b16 %v1007, %v1005
    %v1070 = vpack.c.b16 %v1010, %v1008
    %v1071 = vpack.c.b16 %v1011, %v1009
    %v1072 = vpack.c.b16 %v1014, %v1012
    %v1073 = vpack.c.b16 %v1015, %v1013
    %v1074 = vpack.c.b16 %v1018, %v1016
    %v1075 = vpack.c.b16 %v1019, %v1017
    %v1076 = vpack.c.b16 %v1022, %v1020
    %v1077 = vpack.c.b16 %v1023, %v1021
    %v1078 = vpack.c.b16 %v1026, %v1024
    %v1079 = vpack.c.b16 %v1027, %v1025
    %v1080 = vpack.c.b16 %v1030, %v1028
    %v1081 = vpack.c.b16 %v1031, %v1029
    %v1082 = vpack.c.b16 %v1034, %v1032
    %v1083 = vpack.c.b16 %v1035, %v1033
    %v1084 = vpack.c.b16 %v1038, %v1036
    %v1085 = vpack.c.b16 %v1039, %v1037
    %v1086 = vpack.c.b16 %v1042, %v1040
    %v1087 = vpack.c.b16 %v1043, %v1041
    %v1088 = vpack.c.b16 %v1046, %v1044
    %v1089 = vpack.c.b16 %v1047, %v1045
    %v1090 = vpack.c.b16 %v1050, %v1048
    %v1091 = vpack.c.b16 %v1051, %v1049
    %v1092 = vpack.c.b16 %v1054, %v1052
    %v1093 = vpack.c.b16 %v1055, %v1053
    %v1094 = vpack.c.b16 %v1058, %v1056
    %v1095 = vpack.c.b16 %v1059, %v1057
    %v1096 = vpack.c.b16 %v1062, %v1060
    %v1097 = vpack.c.b16 %v1063, %v1061
    %v1098 = vpack.c.b16 %v1066, %v1064
    %v1099 = vpack.c.b16 %v1067, %v1065
    %v1164 = vunpack.c.l.b16 %v934
    %v1165 = vunpack.c.h.b16 %v934
    %v1166 = vunpack.c.l.b16 %v935
    %v1167 = vunpack.c.h.b16 %v935
    %v1168 = vunpack.c.l.b16 %v936
    %v1169 = vunpack.c.h.b16 %v936
    %v1170 = vunpack.c.l.b16 %v937
    %v1171 = vunpack.c.h.b16 %v937
    %v1172 = vunpack.c.l.b16 %v938
    %v1173 = vunpack.c.h.b16 %v938
    %v1174 = vunpack.c.l.b16 %v939
    %v1175 = vunpack.c.h.b16 %v939
    %v1176 = vunpack.c.l.b16 %v940
    %v1177 = vunpack.c.h.b16 %v940
    %v1178 = vunpack.c.l.b16 %v941
    %v1179 = vunpack.c.h.b16 %v941
    %v1180 = vunpack.c.l.b16 %v942
    %v1181 = vunpack.c.h.b16 %v942
    %v1182 = vunpack.c.l.b16 %v943
    %v1183 = vunpack.c.h.b16 %v943
    %v1184 = vunpack.c.l.b16 %v944
    %v1185 = vunpack.c.h.b16 %v944
    %v1186 = vunpack.c.l.b16 %v945
    %v1187 = vunpack.c.h.b16 %v945
    %v1188 = vunpack.c.l.b16 %v946
    %v1189 = vunpack.c.h.b16 %v946
    %v1190 = vunpack.c.l.b16 %v947
    %v1191 = vunpack.c.h.b16 %v947
    %v1192 = vunpack.c.l.b16 %v948
    %v1193 = vunpack.c.h.b16 %v948
    %v1194 = vunpack.c.l.b16 %v949
    %v1195 = vunpack.c.h.b16 %v949
    %v1196 = vunpack.c.l.b16 %v950
    %v1197 = vunpack.c.h.b16 %v950
    %v1198 = vunpack.c.l.b16 %v951
    %v1199 = vunpack.c.h.b16 %v951
    %v1200 = vunpack.c.l.b16 %v952
    %v1201 = vunpack.c.h.b16 %v952
    %v1202 = vunpack.c.l.b16 %v953
    %v1203 = vunpack.c.h.b16 %v953
    %v1204 = vunpack.c.l.b16 %v954
    %v1205 = vunpack.c.h.b16 %v954
    %v1206 = vunpack.c.l.b16 %v955
    %v1207 = vunpack.c.h.b16 %v955
    %v1208 = vunpack.c.l.b16 %v956
    %v1209 = vunpack.c.h.b16 %v956
    %v1210 = vunpack.c.l.b16 %v957
    %v1211 = vunpack.c.h.b16 %v957
    %v1212 = vunpack.c.l.b16 %v958
    %v1213 = vunpack.c.h.b16 %v958
    %v1214 = vunpack.c.l.b16 %v959
    %v1215 = vunpack.c.h.b16 %v959
    %v1216 = vunpack.c.l.b16 %v960
    %v1217 = vunpack.c.h.b16 %v960
    %v1218 = vunpack.c.l.b16 %v961
    %v1219 = vunpack.c.h.b16 %v961
    %v1220 = vunpack.c.l.b16 %v962
    %v1221 = vunpack.c.h.b16 %v962
    %v1222 = vunpack.c.l.b16 %v963
    %v1223 = vunpack.c.h.b16 %v963
    %v1224 = vunpack.c.l.b16 %v964
    %v1225 = vunpack.c.h.b16 %v964
    %v1226 = vunpack.c.l.b16 %v965
    %v1227 = vunpack.c.h.b16 %v965
    %v1228 = vpack.c.b16 %v1166, %v1164
    %v1229 = vpack.c.b16 %v1167, %v1165
    %v1230 = vpack.c.b16 %v1170, %v1168
    %v1231 = vpack.c.b16 %v1171, %v1169
    %v1232 = vpack.c.b16 %v1174, %v1172
    %v1233 = vpack.c.b16 %v1175, %v1173
    %v1234 = vpack.c.b16 %v1178, %v1176
    %v1235 = vpack.c.b16 %v1179, %v1177
    %v1236 = vpack.c.b16 %v1182, %v1180
    %v1237 = vpack.c.b16 %v1183, %v1181
    %v1238 = vpack.c.b16 %v1186, %v1184
    %v1239 = vpack.c.b16 %v1187, %v1185
    %v1240 = vpack.c.b16 %v1190, %v1188
    %v1241 = vpack.c.b16 %v1191, %v1189
    %v1242 = vpack.c.b16 %v1194, %v1192
    %v1243 = vpack.c.b16 %v1195, %v1193
    %v1244 = vpack.c.b16 %v1198, %v1196
    %v1245 = vpack.c.b16 %v1199, %v1197
    %v1246 = vpack.c.b16 %v1202, %v1200
    %v1247 = vpack.c.b16 %v1203, %v1201
    %v1248 = vpack.c.b16 %v1206, %v1204
    %v1249 = vpack.c.b16 %v1207, %v1205
    %v1250 = vpack.c.b16 %v1210, %v1208
    %v1251 = vpack.c.b16 %v1211, %v1209
    %v1252 = vpack.c.b16 %v1214, %v1212
    %v1253 = vpack.c.b16 %v1215, %v1213
    %v1254 = vpack.c.b16 %v1218, %v1216
    %v1255 = vpack.c.b16 %v1219, %v1217
    %v1256 = vpack.c.b16 %v1222, %v1220
    %v1257 = vpack.c.b16 %v1223, %v1221
    %v1258 = vpack.c.b16 %v1226, %v1224
    %v1259 = vpack.c.b16 %v1227, %v1225
    %1292 = vmatpush.bf16.msra.mxu0 %v1242
    %1293 = vmatpush.bf16.msra.mxu0 %v1240
    %1294 = vmatpush.bf16.msra.mxu0 %v1238
    %1295 = vmatpush.bf16.msra.mxu0 %v1236
    %1296 = vmatpush.bf16.msra.mxu0 %v1234
    %1297 = vmatpush.bf16.msra.mxu0 %v1232
    %1298 = vmatpush.bf16.msra.mxu0 %v1230
    %1299 = vmatpush.bf16.msra.mxu0 %v1228
    %1300 = vmatmul.bf16.gmra.mxu0 %v1068
    %v1301 = vpop.f32.mrf.mxu0
    %v1302 = vadd.f32 %v968, %v1301
    %v1303 = vpop.f32.mrf.mxu0
    %v1304 = vadd.f32 %v968, %v1303
    %1305 = vmatmul.bf16.gmra.mxu0 %v1070
    %v1306 = vpop.f32.mrf.mxu0
    %v1307 = vadd.f32 %v968, %v1306
    %v1308 = vpop.f32.mrf.mxu0
    %v1309 = vadd.f32 %v968, %v1308
    %1310 = vmatmul.bf16.gmra.mxu0 %v1072
    %v1311 = vpop.f32.mrf.mxu0
    %v1312 = vadd.f32 %v968, %v1311
    %v1313 = vpop.f32.mrf.mxu0
    %v1314 = vadd.f32 %v968, %v1313
    %1315 = vmatmul.bf16.gmra.mxu0 %v1074
    %v1316 = vpop.f32.mrf.mxu0
    %v1317 = vadd.f32 %v968, %v1316
    %v1318 = vpop.f32.mrf.mxu0
    %v1319 = vadd.f32 %v968, %v1318
    %1320 = vmatmul.bf16.gmra.mxu0 %v1076
    %v1321 = vpop.f32.mrf.mxu0
    %v1322 = vadd.f32 %v968, %v1321
    %v1323 = vpop.f32.mrf.mxu0
    %v1324 = vadd.f32 %v968, %v1323
    %1325 = vmatmul.bf16.gmra.mxu0 %v1078
    %v1326 = vpop.f32.mrf.mxu0
    %v1327 = vadd.f32 %v968, %v1326
    %v1328 = vpop.f32.mrf.mxu0
    %v1329 = vadd.f32 %v968, %v1328
    %1330 = vmatmul.bf16.gmra.mxu0 %v1080
    %v1331 = vpop.f32.mrf.mxu0
    %v1332 = vadd.f32 %v968, %v1331
    %v1333 = vpop.f32.mrf.mxu0
    %v1334 = vadd.f32 %v968, %v1333
    %1335 = vmatmul.bf16.gmra.mxu0 %v1082
    %v1336 = vpop.f32.mrf.mxu0
    %v1337 = vadd.f32 %v968, %v1336
    %v1338 = vpop.f32.mrf.mxu0
    %v1339 = vadd.f32 %v968, %v1338
    %1340 = vmatmul.bf16.gmra.mxu0 %v1084
    %v1341 = vpop.f32.mrf.mxu0
    %v1342 = vadd.f32 %v968, %v1341
    %v1343 = vpop.f32.mrf.mxu0
    %v1344 = vadd.f32 %v968, %v1343
    %1345 = vmatmul.bf16.gmra.mxu0 %v1086
    %v1346 = vpop.f32.mrf.mxu0
    %v1347 = vadd.f32 %v968, %v1346
    %v1348 = vpop.f32.mrf.mxu0
    %v1349 = vadd.f32 %v968, %v1348
    %1350 = vmatmul.bf16.gmra.mxu0 %v1088
    %v1351 = vpop.f32.mrf.mxu0
    %v1352 = vadd.f32 %v968, %v1351
    %v1353 = vpop.f32.mrf.mxu0
    %v1354 = vadd.f32 %v968, %v1353
    %1355 = vmatmul.bf16.gmra.mxu0 %v1090
    %v1356 = vpop.f32.mrf.mxu0
    %v1357 = vadd.f32 %v968, %v1356
    %v1358 = vpop.f32.mrf.mxu0
    %v1359 = vadd.f32 %v968, %v1358
    %1360 = vmatmul.bf16.gmra.mxu0 %v1092
    %v1361 = vpop.f32.mrf.mxu0
    %v1362 = vadd.f32 %v968, %v1361
    %v1363 = vpop.f32.mrf.mxu0
    %v1364 = vadd.f32 %v968, %v1363
    %1365 = vmatmul.bf16.gmra.mxu0 %v1094
    %v1366 = vpop.f32.mrf.mxu0
    %v1367 = vadd.f32 %v968, %v1366
    %v1368 = vpop.f32.mrf.mxu0
    %v1369 = vadd.f32 %v968, %v1368
    %1370 = vmatmul.bf16.gmra.mxu0 %v1096
    %v1371 = vpop.f32.mrf.mxu0
    %v1372 = vadd.f32 %v968, %v1371
    %v1373 = vpop.f32.mrf.mxu0
    %v1374 = vadd.f32 %v968, %v1373
    %1375 = vmatmul.bf16.gmra.mxu0 %v1098
    %v1376 = vpop.f32.mrf.mxu0
    %v1377 = vadd.f32 %v968, %v1376
    %v1378 = vpop.f32.mrf.mxu0
    %v1379 = vadd.f32 %v968, %v1378
    %1380 = vdwg.mxu0
    %1381 = vmatpush.bf16.msra.mxu0 %v1258
    %1382 = vmatpush.bf16.msra.mxu0 %v1256
    %1383 = vmatpush.bf16.msra.mxu0 %v1254
    %1384 = vmatpush.bf16.msra.mxu0 %v1252
    %1385 = vmatpush.bf16.msra.mxu0 %v1250
    %1386 = vmatpush.bf16.msra.mxu0 %v1248
    %1387 = vmatpush.bf16.msra.mxu0 %v1246
    %1388 = vmatpush.bf16.msra.mxu0 %v1244
    %1389 = vmatmul.bf16.gmra.mxu0 %v1069
    %v1390 = vpop.f32.mrf.mxu0
    %v1391 = vadd.f32 %v1302, %v1390
    %v1392 = vpop.f32.mrf.mxu0
    %v1393 = vadd.f32 %v1304, %v1392
    %1394 = vmatmul.bf16.gmra.mxu0 %v1071
    %v1395 = vpop.f32.mrf.mxu0
    %v1396 = vadd.f32 %v1307, %v1395
    %v1397 = vpop.f32.mrf.mxu0
    %v1398 = vadd.f32 %v1309, %v1397
    %1399 = vmatmul.bf16.gmra.mxu0 %v1073
    %v1400 = vpop.f32.mrf.mxu0
    %v1401 = vadd.f32 %v1312, %v1400
    %v1402 = vpop.f32.mrf.mxu0
    %v1403 = vadd.f32 %v1314, %v1402
    %1404 = vmatmul.bf16.gmra.mxu0 %v1075
    %v1405 = vpop.f32.mrf.mxu0
    %v1406 = vadd.f32 %v1317, %v1405
    %v1407 = vpop.f32.mrf.mxu0
    %v1408 = vadd.f32 %v1319, %v1407
    %1409 = vmatmul.bf16.gmra.mxu0 %v1077
    %v1410 = vpop.f32.mrf.mxu0
    %v1411 = vadd.f32 %v1322, %v1410
    %v1412 = vpop.f32.mrf.mxu0
    %v1413 = vadd.f32 %v1324, %v1412
    %1414 = vmatmul.bf16.gmra.mxu0 %v1079
    %v1415 = vpop.f32.mrf.mxu0
    %v1416 = vadd.f32 %v1327, %v1415
    %v1417 = vpop.f32.mrf.mxu0
    %v1418 = vadd.f32 %v1329, %v1417
    %1419 = vmatmul.bf16.gmra.mxu0 %v1081
    %v1420 = vpop.f32.mrf.mxu0
    %v1421 = vadd.f32 %v1332, %v1420
    %v1422 = vpop.f32.mrf.mxu0
    %v1423 = vadd.f32 %v1334, %v1422
    %1424 = vmatmul.bf16.gmra.mxu0 %v1083
    %v1425 = vpop.f32.mrf.mxu0
    %v1426 = vadd.f32 %v1337, %v1425
    %v1427 = vpop.f32.mrf.mxu0
    %v1428 = vadd.f32 %v1339, %v1427
    %1429 = vmatmul.bf16.gmra.mxu0 %v1085
    %v1430 = vpop.f32.mrf.mxu0
    %v1431 = vadd.f32 %v1342, %v1430
    %v1432 = vpop.f32.mrf.mxu0
    %v1433 = vadd.f32 %v1344, %v1432
    %1434 = vmatmul.bf16.gmra.mxu0 %v1087
    %v1435 = vpop.f32.mrf.mxu0
    %v1436 = vadd.f32 %v1347, %v1435
    %v1437 = vpop.f32.mrf.mxu0
    %v1438 = vadd.f32 %v1349, %v1437
    %1439 = vmatmul.bf16.gmra.mxu0 %v1089
    %v1440 = vpop.f32.mrf.mxu0
    %v1441 = vadd.f32 %v1352, %v1440
    %v1442 = vpop.f32.mrf.mxu0
    %v1443 = vadd.f32 %v1354, %v1442
    %1444 = vmatmul.bf16.gmra.mxu0 %v1091
    %v1445 = vpop.f32.mrf.mxu0
    %v1446 = vadd.f32 %v1357, %v1445
    %v1447 = vpop.f32.mrf.mxu0
    %v1448 = vadd.f32 %v1359, %v1447
    %1449 = vmatmul.bf16.gmra.mxu0 %v1093
    %v1450 = vpop.f32.mrf.mxu0
    %v1451 = vadd.f32 %v1362, %v1450
    %v1452 = vpop.f32.mrf.mxu0
    %v1453 = vadd.f32 %v1364, %v1452
    %1454 = vmatmul.bf16.gmra.mxu0 %v1095
    %v1455 = vpop.f32.mrf.mxu0
    %v1456 = vadd.f32 %v1367, %v1455
    %v1457 = vpop.f32.mrf.mxu0
    %v1458 = vadd.f32 %v1369, %v1457
    %1459 = vmatmul.bf16.gmra.mxu0 %v1097
    %v1460 = vpop.f32.mrf.mxu0
    %v1461 = vadd.f32 %v1372, %v1460
    %v1462 = vpop.f32.mrf.mxu0
    %v1463 = vadd.f32 %v1374, %v1462
    %1464 = vmatmul.bf16.gmra.mxu0 %v1099
    %v1465 = vpop.f32.mrf.mxu0
    %v1466 = vadd.f32 %v1377, %v1465
    %v1467 = vpop.f32.mrf.mxu0
    %v1468 = vadd.f32 %v1379, %v1467
    %1469 = vdwg.mxu0
    %1470 = vmatpush.bf16.msra.mxu0 %v1243
    %1471 = vmatpush.bf16.msra.mxu0 %v1241
    %1472 = vmatpush.bf16.msra.mxu0 %v1239
    %1473 = vmatpush.bf16.msra.mxu0 %v1237
    %1474 = vmatpush.bf16.msra.mxu0 %v1235
    %1475 = vmatpush.bf16.msra.mxu0 %v1233
    %1476 = vmatpush.bf16.msra.mxu0 %v1231
    %1477 = vmatpush.bf16.msra.mxu0 %v1229
    %1478 = vmatmul.bf16.gmra.mxu0 %v1068
    %v1479 = vpop.f32.mrf.mxu0
    %v1480 = vadd.f32 %v969, %v1479
    %v1481 = vpop.f32.mrf.mxu0
    %v1482 = vadd.f32 %v969, %v1481
    %1483 = vmatmul.bf16.gmra.mxu0 %v1070
    %v1484 = vpop.f32.mrf.mxu0
    %v1485 = vadd.f32 %v969, %v1484
    %v1486 = vpop.f32.mrf.mxu0
    %v1487 = vadd.f32 %v969, %v1486
    %1488 = vmatmul.bf16.gmra.mxu0 %v1072
    %v1489 = vpop.f32.mrf.mxu0
    %v1490 = vadd.f32 %v969, %v1489
    %v1491 = vpop.f32.mrf.mxu0
    %v1492 = vadd.f32 %v969, %v1491
    %1493 = vmatmul.bf16.gmra.mxu0 %v1074
    %v1494 = vpop.f32.mrf.mxu0
    %v1495 = vadd.f32 %v969, %v1494
    %v1496 = vpop.f32.mrf.mxu0
    %v1497 = vadd.f32 %v969, %v1496
    %1498 = vmatmul.bf16.gmra.mxu0 %v1076
    %v1499 = vpop.f32.mrf.mxu0
    %v1500 = vadd.f32 %v969, %v1499
    %v1501 = vpop.f32.mrf.mxu0
    %v1502 = vadd.f32 %v969, %v1501
    %1503 = vmatmul.bf16.gmra.mxu0 %v1078
    %v1504 = vpop.f32.mrf.mxu0
    %v1505 = vadd.f32 %v969, %v1504
    %v1506 = vpop.f32.mrf.mxu0
    %v1507 = vadd.f32 %v969, %v1506
    %1508 = vmatmul.bf16.gmra.mxu0 %v1080
    %v1509 = vpop.f32.mrf.mxu0
    %v1510 = vadd.f32 %v969, %v1509
    %v1511 = vpop.f32.mrf.mxu0
    %v1512 = vadd.f32 %v969, %v1511
    %1513 = vmatmul.bf16.gmra.mxu0 %v1082
    %v1514 = vpop.f32.mrf.mxu0
    %v1515 = vadd.f32 %v969, %v1514
    %v1516 = vpop.f32.mrf.mxu0
    %v1517 = vadd.f32 %v969, %v1516
    %1518 = vmatmul.bf16.gmra.mxu0 %v1084
    %v1519 = vpop.f32.mrf.mxu0
    %v1520 = vadd.f32 %v969, %v1519
    %v1521 = vpop.f32.mrf.mxu0
    %v1522 = vadd.f32 %v969, %v1521
    %1523 = vmatmul.bf16.gmra.mxu0 %v1086
    %v1524 = vpop.f32.mrf.mxu0
    %v1525 = vadd.f32 %v969, %v1524
    %v1526 = vpop.f32.mrf.mxu0
    %v1527 = vadd.f32 %v969, %v1526
    %1528 = vmatmul.bf16.gmra.mxu0 %v1088
    %v1529 = vpop.f32.mrf.mxu0
    %v1530 = vadd.f32 %v969, %v1529
    %v1531 = vpop.f32.mrf.mxu0
    %v1532 = vadd.f32 %v969, %v1531
    %1533 = vmatmul.bf16.gmra.mxu0 %v1090
    %v1534 = vpop.f32.mrf.mxu0
    %v1535 = vadd.f32 %v969, %v1534
    %v1536 = vpop.f32.mrf.mxu0
    %v1537 = vadd.f32 %v969, %v1536
    %1538 = vmatmul.bf16.gmra.mxu0 %v1092
    %v1539 = vpop.f32.mrf.mxu0
    %v1540 = vadd.f32 %v969, %v1539
    %v1541 = vpop.f32.mrf.mxu0
    %v1542 = vadd.f32 %v969, %v1541
    %1543 = vmatmul.bf16.gmra.mxu0 %v1094
    %v1544 = vpop.f32.mrf.mxu0
    %v1545 = vadd.f32 %v969, %v1544
    %v1546 = vpop.f32.mrf.mxu0
    %v1547 = vadd.f32 %v969, %v1546
    %1548 = vmatmul.bf16.gmra.mxu0 %v1096
    %v1549 = vpop.f32.mrf.mxu0
    %v1550 = vadd.f32 %v969, %v1549
    %v1551 = vpop.f32.mrf.mxu0
    %v1552 = vadd.f32 %v969, %v1551
    %1553 = vmatmul.bf16.gmra.mxu0 %v1098
    %v1554 = vpop.f32.mrf.mxu0
    %v1555 = vadd.f32 %v969, %v1554
    %v1556 = vpop.f32.mrf.mxu0
    %v1557 = vadd.f32 %v969, %v1556
    %1558 = vdwg.mxu0
    %1559 = vmatpush.bf16.msra.mxu0 %v1259
    %1560 = vmatpush.bf16.msra.mxu0 %v1257
    %1561 = vmatpush.bf16.msra.mxu0 %v1255
    %1562 = vmatpush.bf16.msra.mxu0 %v1253
    %1563 = vmatpush.bf16.msra.mxu0 %v1251
    %1564 = vmatpush.bf16.msra.mxu0 %v1249
    %1565 = vmatpush.bf16.msra.mxu0 %v1247
    %1566 = vmatpush.bf16.msra.mxu0 %v1245
    %1567 = vmatmul.bf16.gmra.mxu0 %v1069
    %v1568 = vpop.f32.mrf.mxu0
    %v1569 = vadd.f32 %v1480, %v1568
    %v1570 = vpop.f32.mrf.mxu0
    %v1571 = vadd.f32 %v1482, %v1570
    %1572 = vmatmul.bf16.gmra.mxu0 %v1071
    %v1573 = vpop.f32.mrf.mxu0
    %v1574 = vadd.f32 %v1485, %v1573
    %v1575 = vpop.f32.mrf.mxu0
    %v1576 = vadd.f32 %v1487, %v1575
    %1577 = vmatmul.bf16.gmra.mxu0 %v1073
    %v1578 = vpop.f32.mrf.mxu0
    %v1579 = vadd.f32 %v1490, %v1578
    %v1580 = vpop.f32.mrf.mxu0
    %v1581 = vadd.f32 %v1492, %v1580
    %1582 = vmatmul.bf16.gmra.mxu0 %v1075
    %v1583 = vpop.f32.mrf.mxu0
    %v1584 = vadd.f32 %v1495, %v1583
    %v1585 = vpop.f32.mrf.mxu0
    %v1586 = vadd.f32 %v1497, %v1585
    %1587 = vmatmul.bf16.gmra.mxu0 %v1077
    %v1588 = vpop.f32.mrf.mxu0
    %v1589 = vadd.f32 %v1500, %v1588
    %v1590 = vpop.f32.mrf.mxu0
    %v1591 = vadd.f32 %v1502, %v1590
    %1592 = vmatmul.bf16.gmra.mxu0 %v1079
    %v1593 = vpop.f32.mrf.mxu0
    %v1594 = vadd.f32 %v1505, %v1593
    %v1595 = vpop.f32.mrf.mxu0
    %v1596 = vadd.f32 %v1507, %v1595
    %1597 = vmatmul.bf16.gmra.mxu0 %v1081
    %v1598 = vpop.f32.mrf.mxu0
    %v1599 = vadd.f32 %v1510, %v1598
    %v1600 = vpop.f32.mrf.mxu0
    %v1601 = vadd.f32 %v1512, %v1600
    %1602 = vmatmul.bf16.gmra.mxu0 %v1083
    %v1603 = vpop.f32.mrf.mxu0
    %v1604 = vadd.f32 %v1515, %v1603
    %v1605 = vpop.f32.mrf.mxu0
    %v1606 = vadd.f32 %v1517, %v1605
    %1607 = vmatmul.bf16.gmra.mxu0 %v1085
    %v1608 = vpop.f32.mrf.mxu0
    %v1609 = vadd.f32 %v1520, %v1608
    %v1610 = vpop.f32.mrf.mxu0
    %v1611 = vadd.f32 %v1522, %v1610
    %1612 = vmatmul.bf16.gmra.mxu0 %v1087
    %v1613 = vpop.f32.mrf.mxu0
    %v1614 = vadd.f32 %v1525, %v1613
    %v1615 = vpop.f32.mrf.mxu0
    %v1616 = vadd.f32 %v1527, %v1615
    %1617 = vmatmul.bf16.gmra.mxu0 %v1089
    %v1618 = vpop.f32.mrf.mxu0
    %v1619 = vadd.f32 %v1530, %v1618
    %v1620 = vpop.f32.mrf.mxu0
    %v1621 = vadd.f32 %v1532, %v1620
    %1622 = vmatmul.bf16.gmra.mxu0 %v1091
    %v1623 = vpop.f32.mrf.mxu0
    %v1624 = vadd.f32 %v1535, %v1623
    %v1625 = vpop.f32.mrf.mxu0
    %v1626 = vadd.f32 %v1537, %v1625
    %1627 = vmatmul.bf16.gmra.mxu0 %v1093
    %v1628 = vpop.f32.mrf.mxu0
    %v1629 = vadd.f32 %v1540, %v1628
    %v1630 = vpop.f32.mrf.mxu0
    %v1631 = vadd.f32 %v1542, %v1630
    %1632 = vmatmul.bf16.gmra.mxu0 %v1095
    %v1633 = vpop.f32.mrf.mxu0
    %v1634 = vadd.f32 %v1545, %v1633
    %v1635 = vpop.f32.mrf.mxu0
    %v1636 = vadd.f32 %v1547, %v1635
    %1637 = vmatmul.bf16.gmra.mxu0 %v1097
    %v1638 = vpop.f32.mrf.mxu0
    %v1639 = vadd.f32 %v1550, %v1638
    %v1640 = vpop.f32.mrf.mxu0
    %v1641 = vadd.f32 %v1552, %v1640
    %1642 = vmatmul.bf16.gmra.mxu0 %v1099
    %v1643 = vpop.f32.mrf.mxu0
    %v1644 = vadd.f32 %v1555, %v1643
    %v1645 = vpop.f32.mrf.mxu0
    %v1646 = vadd.f32 %v1557, %v1645
    %1647 = vdwg.mxu0
    %v1648 = vmax.f32 %v1391, 0.0
    %v1649 = vmax.f32 %v1569, 0.0
    %v1650 = vmax.f32 %v1393, 0.0
    %v1651 = vmax.f32 %v1571, 0.0
    %v1652 = vmax.f32 %v1396, 0.0
    %v1653 = vmax.f32 %v1574, 0.0
    %v1654 = vmax.f32 %v1398, 0.0
    %v1655 = vmax.f32 %v1576, 0.0
    %v1656 = vmax.f32 %v1401, 0.0
    %v1657 = vmax.f32 %v1579, 0.0
    %v1658 = vmax.f32 %v1403, 0.0
    %v1659 = vmax.f32 %v1581, 0.0
    %v1660 = vmax.f32 %v1406, 0.0
    %v1661 = vmax.f32 %v1584, 0.0
    %v1662 = vmax.f32 %v1408, 0.0
    %v1663 = vmax.f32 %v1586, 0.0
    %v1664 = vmax.f32 %v1411, 0.0
    %v1665 = vmax.f32 %v1589, 0.0
    %v1666 = vmax.f32 %v1413, 0.0
    %v1667 = vmax.f32 %v1591, 0.0
    %v1668 = vmax.f32 %v1416, 0.0
    %v1669 = vmax.f32 %v1594, 0.0
    %v1670 = vmax.f32 %v1418, 0.0
    %v1671 = vmax.f32 %v1596, 0.0
    %v1672 = vmax.f32 %v1421, 0.0
    %v1673 = vmax.f32 %v1599, 0.0
    %v1674 = vmax.f32 %v1423, 0.0
    %v1675 = vmax.f32 %v1601, 0.0
    %v1676 = vmax.f32 %v1426, 0.0
    %v1677 = vmax.f32 %v1604, 0.0
    %v1678 = vmax.f32 %v1428, 0.0
    %v1679 = vmax.f32 %v1606, 0.0
    %v1680 = vmax.f32 %v1431, 0.0
    %v1681 = vmax.f32 %v1609, 0.0
    %v1682 = vmax.f32 %v1433, 0.0
    %v1683 = vmax.f32 %v1611, 0.0
    %v1684 = vmax.f32 %v1436, 0.0
    %v1685 = vmax.f32 %v1614, 0.0
    %v1686 = vmax.f32 %v1438, 0.0
    %v1687 = vmax.f32 %v1616, 0.0
    %v1688 = vmax.f32 %v1441, 0.0
    %v1689 = vmax.f32 %v1619, 0.0
    %v1690 = vmax.f32 %v1443, 0.0
    %v1691 = vmax.f32 %v1621, 0.0
    %v1692 = vmax.f32 %v1446, 0.0
    %v1693 = vmax.f32 %v1624, 0.0
    %v1694 = vmax.f32 %v1448, 0.0
    %v1695 = vmax.f32 %v1626, 0.0
    %v1696 = vmax.f32 %v1451, 0.0
    %v1697 = vmax.f32 %v1629, 0.0
    %v1698 = vmax.f32 %v1453, 0.0
    %v1699 = vmax.f32 %v1631, 0.0
    %v1700 = vmax.f32 %v1456, 0.0
    %v1701 = vmax.f32 %v1634, 0.0
    %v1702 = vmax.f32 %v1458, 0.0
    %v1703 = vmax.f32 %v1636, 0.0
    %v1704 = vmax.f32 %v1461, 0.0
    %v1705 = vmax.f32 %v1639, 0.0
    %v1706 = vmax.f32 %v1463, 0.0
    %v1707 = vmax.f32 %v1641, 0.0
    %v1708 = vmax.f32 %v1466, 0.0
    %v1709 = vmax.f32 %v1644, 0.0
    %v1710 = vmax.f32 %v1468, 0.0
    %v1711 = vmax.f32 %v1646, 0.0
    %v1712 = vpack.c.bf16 %v1650, %v1648
    %v1713 = vpack.c.bf16 %v1651, %v1649
    %v1714 = vpack.c.bf16 %v1654, %v1652
    %v1715 = vpack.c.bf16 %v1655, %v1653
    %v1716 = vpack.c.bf16 %v1658, %v1656
    %v1717 = vpack.c.bf16 %v1659, %v1657
    %v1718 = vpack.c.bf16 %v1662, %v1660
    %v1719 = vpack.c.bf16 %v1663, %v1661
    %v1720 = vpack.c.bf16 %v1666, %v1664
    %v1721 = vpack.c.bf16 %v1667, %v1665
    %v1722 = vpack.c.bf16 %v1670, %v1668
    %v1723 = vpack.c.bf16 %v1671, %v1669
    %v1724 = vpack.c.bf16 %v1674, %v1672
    %v1725 = vpack.c.bf16 %v1675, %v1673
    %v1726 = vpack.c.bf16 %v1678, %v1676
    %v1727 = vpack.c.bf16 %v1679, %v1677
    %v1728 = vpack.c.bf16 %v1682, %v1680
    %v1729 = vpack.c.bf16 %v1683, %v1681
    %v1730 = vpack.c.bf16 %v1686, %v1684
    %v1731 = vpack.c.bf16 %v1687, %v1685
    %v1732 = vpack.c.bf16 %v1690, %v1688
    %v1733 = vpack.c.bf16 %v1691, %v1689
    %v1734 = vpack.c.bf16 %v1694, %v1692
    %v1735 = vpack.c.bf16 %v1695, %v1693
    %v1736 = vpack.c.bf16 %v1698, %v1696
    %v1737 = vpack.c.bf16 %v1699, %v1697
    %v1738 = vpack.c.bf16 %v1702, %v1700
    %v1739 = vpack.c.bf16 %v1703, %v1701
    %v1740 = vpack.c.bf16 %v1706, %v1704
    %v1741 = vpack.c.bf16 %v1707, %v1705
    %v1742 = vpack.c.bf16 %v1710, %v1708
    %v1743 = vpack.c.bf16 %v1711, %v1709
    %v1744 = vld [vmem:[#allocation3] sm:$0xff]
    %v1745 = vld [vmem:[#allocation3 + $0x8] sm:$0xff]
    %v1746 = vld [vmem:[#allocation3 + $0x10] sm:$0xff]
    %v1747 = vld [vmem:[#allocation3 + $0x18] sm:$0xff]
    %v1748 = vld [vmem:[#allocation3 + $0x20] sm:$0xff]
    %v1749 = vld [vmem:[#allocation3 + $0x28] sm:$0xff]
    %v1750 = vld [vmem:[#allocation3 + $0x30] sm:$0xff]
    %v1751 = vld [vmem:[#allocation3 + $0x38] sm:$0xff]
    %v1752 = vld [vmem:[#allocation3 + $0x40] sm:$0xff]
    %v1753 = vld [vmem:[#allocation3 + $0x48] sm:$0xff]
    %v1754 = vld [vmem:[#allocation3 + $0x50] sm:$0xff]
    %v1755 = vld [vmem:[#allocation3 + $0x58] sm:$0xff]
    %v1756 = vld [vmem:[#allocation3 + $0x60] sm:$0xff]
    %v1757 = vld [vmem:[#allocation3 + $0x68] sm:$0xff]
    %v1758 = vld [vmem:[#allocation3 + $0x70] sm:$0xff]
    %v1759 = vld [vmem:[#allocation3 + $0x78] sm:$0xff]
    %v1760 = vld [vmem:[#allocation3 + $0x80] sm:$0xff]
    %v1761 = vld [vmem:[#allocation3 + $0x88] sm:$0xff]
    %v1762 = vld [vmem:[#allocation3 + $0x90] sm:$0xff]
    %v1763 = vld [vmem:[#allocation3 + $0x98] sm:$0xff]
    %v1764 = vld [vmem:[#allocation3 + $0xa0] sm:$0xff]
    %v1765 = vld [vmem:[#allocation3 + $0xa8] sm:$0xff]
    %v1766 = vld [vmem:[#allocation3 + $0xb0] sm:$0xff]
    %v1767 = vld [vmem:[#allocation3 + $0xb8] sm:$0xff]
    %v1768 = vld [vmem:[#allocation3 + $0xc0] sm:$0xff]
    %v1769 = vld [vmem:[#allocation3 + $0xc8] sm:$0xff]
    %v1770 = vld [vmem:[#allocation3 + $0xd0] sm:$0xff]
    %v1771 = vld [vmem:[#allocation3 + $0xd8] sm:$0xff]
    %v1772 = vld [vmem:[#allocation3 + $0xe0] sm:$0xff]
    %v1773 = vld [vmem:[#allocation3 + $0xe8] sm:$0xff]
    %v1774 = vld [vmem:[#allocation3 + $0xf0] sm:$0xff]
    %v1775 = vld [vmem:[#allocation3 + $0xf8] sm:$0xff]
    %v1776 = vld [vmem:[#allocation13] sm:$0xf]
    %v1777 = vld [vmem:[#allocation13 + $0x4] sm:$0xf]
    %v1778 = vld [vmem:[#allocation13 + $0x8] sm:$0xf]
    %v1779 = vld [vmem:[#allocation13 + $0xc] sm:$0xf]
    %v1780 = vld [vmem:[#allocation13 + $0x10] sm:$0xf]
    %v1781 = vld [vmem:[#allocation13 + $0x14] sm:$0xf]
    %v1782 = vld [vmem:[#allocation13 + $0x18] sm:$0xf]
    %v1783 = vld [vmem:[#allocation13 + $0x1c] sm:$0xf]
    %v1784 = vld [vmem:[#allocation13 + $0x20] sm:$0xf]
    %v1785 = vld [vmem:[#allocation13 + $0x24] sm:$0xf]
    %v1786 = vld [vmem:[#allocation13 + $0x28] sm:$0xf]
    %v1787 = vld [vmem:[#allocation13 + $0x2c] sm:$0xf]
    %v1788 = vld [vmem:[#allocation13 + $0x30] sm:$0xf]
    %v1789 = vld [vmem:[#allocation13 + $0x34] sm:$0xf]
    %v1790 = vld [vmem:[#allocation13 + $0x38] sm:$0xf]
    %v1791 = vld [vmem:[#allocation13 + $0x3c] sm:$0xf]
    %v1792 = vld [vmem:[#allocation13 + $0x40] sm:$0xf]
    %v1793 = vld [vmem:[#allocation13 + $0x44] sm:$0xf]
    %v1794 = vld [vmem:[#allocation13 + $0x48] sm:$0xf]
    %v1795 = vld [vmem:[#allocation13 + $0x4c] sm:$0xf]
    %v1796 = vld [vmem:[#allocation13 + $0x50] sm:$0xf]
    %v1797 = vld [vmem:[#allocation13 + $0x54] sm:$0xf]
    %v1798 = vld [vmem:[#allocation13 + $0x58] sm:$0xf]
    %v1799 = vld [vmem:[#allocation13 + $0x5c] sm:$0xf]
    %v1800 = vld [vmem:[#allocation13 + $0x60] sm:$0xf]
    %v1801 = vld [vmem:[#allocation13 + $0x64] sm:$0xf]
    %v1802 = vld [vmem:[#allocation13 + $0x68] sm:$0xf]
    %v1803 = vld [vmem:[#allocation13 + $0x6c] sm:$0xf]
    %v1804 = vld [vmem:[#allocation13 + $0x70] sm:$0xf]
    %v1805 = vld [vmem:[#allocation13 + $0x74] sm:$0xf]
    %v1806 = vld [vmem:[#allocation13 + $0x78] sm:$0xf]
    %v1807 = vld [vmem:[#allocation13 + $0x7c] sm:$0xf]
    %v1840 = vunpack.c.l.b16 %v1776
    %v1841 = vunpack.c.l.b16 %v1777
    %v1842 = vunpack.c.l.b16 %v1778
    %v1843 = vunpack.c.l.b16 %v1779
    %v1844 = vunpack.c.l.b16 %v1780
    %v1845 = vunpack.c.l.b16 %v1781
    %v1846 = vunpack.c.l.b16 %v1782
    %v1847 = vunpack.c.l.b16 %v1783
    %v1848 = vunpack.c.l.b16 %v1784
    %v1849 = vunpack.c.l.b16 %v1785
    %v1850 = vunpack.c.l.b16 %v1786
    %v1851 = vunpack.c.l.b16 %v1787
    %v1852 = vunpack.c.l.b16 %v1788
    %v1853 = vunpack.c.l.b16 %v1789
    %v1854 = vunpack.c.l.b16 %v1790
    %v1855 = vunpack.c.l.b16 %v1791
    %v1856 = vunpack.c.l.b16 %v1792
    %v1857 = vunpack.c.l.b16 %v1793
    %v1858 = vunpack.c.l.b16 %v1794
    %v1859 = vunpack.c.l.b16 %v1795
    %v1860 = vunpack.c.l.b16 %v1796
    %v1861 = vunpack.c.l.b16 %v1797
    %v1862 = vunpack.c.l.b16 %v1798
    %v1863 = vunpack.c.l.b16 %v1799
    %v1864 = vunpack.c.l.b16 %v1800
    %v1865 = vunpack.c.l.b16 %v1801
    %v1866 = vunpack.c.l.b16 %v1802
    %v1867 = vunpack.c.l.b16 %v1803
    %v1868 = vunpack.c.l.b16 %v1804
    %v1869 = vunpack.c.l.b16 %v1805
    %v1870 = vunpack.c.l.b16 %v1806
    %v1871 = vunpack.c.l.b16 %v1807
    %v1872 = vpack.c.b16 %v1841, %v1840
    %v1873 = vpack.c.b16 %v1843, %v1842
    %v1874 = vpack.c.b16 %v1845, %v1844
    %v1875 = vpack.c.b16 %v1847, %v1846
    %v1876 = vpack.c.b16 %v1849, %v1848
    %v1877 = vpack.c.b16 %v1851, %v1850
    %v1878 = vpack.c.b16 %v1853, %v1852
    %v1879 = vpack.c.b16 %v1855, %v1854
    %v1880 = vpack.c.b16 %v1857, %v1856
    %v1881 = vpack.c.b16 %v1859, %v1858
    %v1882 = vpack.c.b16 %v1861, %v1860
    %v1883 = vpack.c.b16 %v1863, %v1862
    %v1884 = vpack.c.b16 %v1865, %v1864
    %v1885 = vpack.c.b16 %v1867, %v1866
    %v1886 = vpack.c.b16 %v1869, %v1868
    %v1887 = vpack.c.b16 %v1871, %v1870
    %1904 = vmatpush.bf16.msra.mxu0 %v1879
    %1905 = vmatpush.bf16.msra.mxu0 %v1878
    %1906 = vmatpush.bf16.msra.mxu0 %v1877
    %1907 = vmatpush.bf16.msra.mxu0 %v1876
    %1908 = vmatpush.bf16.msra.mxu0 %v1875
    %1909 = vmatpush.bf16.msra.mxu0 %v1874
    %1910 = vmatpush.bf16.msra.mxu0 %v1873
    %1911 = vmatpush.bf16.msra.mxu0 %v1872
    %1912 = vmatmul.bf16.gmra.mxu0 %v1712
    %v1913 = vpop.f32.mrf.mxu0
    %v1914 = vadd.f32 0.0, %v1913
    %v1915 = vpop.f32.mrf.mxu0
    %v1916 = vadd.f32 0.0, %v1915
    %1917 = vmatmul.bf16.gmra.mxu0 %v1714
    %v1918 = vpop.f32.mrf.mxu0
    %v1919 = vadd.f32 0.0, %v1918
    %v1920 = vpop.f32.mrf.mxu0
    %v1921 = vadd.f32 0.0, %v1920
    %1922 = vmatmul.bf16.gmra.mxu0 %v1716
    %v1923 = vpop.f32.mrf.mxu0
    %v1924 = vadd.f32 0.0, %v1923
    %v1925 = vpop.f32.mrf.mxu0
    %v1926 = vadd.f32 0.0, %v1925
    %1927 = vmatmul.bf16.gmra.mxu0 %v1718
    %v1928 = vpop.f32.mrf.mxu0
    %v1929 = vadd.f32 0.0, %v1928
    %v1930 = vpop.f32.mrf.mxu0
    %v1931 = vadd.f32 0.0, %v1930
    %1932 = vmatmul.bf16.gmra.mxu0 %v1720
    %v1933 = vpop.f32.mrf.mxu0
    %v1934 = vadd.f32 0.0, %v1933
    %v1935 = vpop.f32.mrf.mxu0
    %v1936 = vadd.f32 0.0, %v1935
    %1937 = vmatmul.bf16.gmra.mxu0 %v1722
    %v1938 = vpop.f32.mrf.mxu0
    %v1939 = vadd.f32 0.0, %v1938
    %v1940 = vpop.f32.mrf.mxu0
    %v1941 = vadd.f32 0.0, %v1940
    %1942 = vmatmul.bf16.gmra.mxu0 %v1724
    %v1943 = vpop.f32.mrf.mxu0
    %v1944 = vadd.f32 0.0, %v1943
    %v1945 = vpop.f32.mrf.mxu0
    %v1946 = vadd.f32 0.0, %v1945
    %1947 = vmatmul.bf16.gmra.mxu0 %v1726
    %v1948 = vpop.f32.mrf.mxu0
    %v1949 = vadd.f32 0.0, %v1948
    %v1950 = vpop.f32.mrf.mxu0
    %v1951 = vadd.f32 0.0, %v1950
    %1952 = vmatmul.bf16.gmra.mxu0 %v1728
    %v1953 = vpop.f32.mrf.mxu0
    %v1954 = vadd.f32 0.0, %v1953
    %v1955 = vpop.f32.mrf.mxu0
    %v1956 = vadd.f32 0.0, %v1955
    %1957 = vmatmul.bf16.gmra.mxu0 %v1730
    %v1958 = vpop.f32.mrf.mxu0
    %v1959 = vadd.f32 0.0, %v1958
    %v1960 = vpop.f32.mrf.mxu0
    %v1961 = vadd.f32 0.0, %v1960
    %1962 = vmatmul.bf16.gmra.mxu0 %v1732
    %v1963 = vpop.f32.mrf.mxu0
    %v1964 = vadd.f32 0.0, %v1963
    %v1965 = vpop.f32.mrf.mxu0
    %v1966 = vadd.f32 0.0, %v1965
    %1967 = vmatmul.bf16.gmra.mxu0 %v1734
    %v1968 = vpop.f32.mrf.mxu0
    %v1969 = vadd.f32 0.0, %v1968
    %v1970 = vpop.f32.mrf.mxu0
    %v1971 = vadd.f32 0.0, %v1970
    %1972 = vmatmul.bf16.gmra.mxu0 %v1736
    %v1973 = vpop.f32.mrf.mxu0
    %v1974 = vadd.f32 0.0, %v1973
    %v1975 = vpop.f32.mrf.mxu0
    %v1976 = vadd.f32 0.0, %v1975
    %1977 = vmatmul.bf16.gmra.mxu0 %v1738
    %v1978 = vpop.f32.mrf.mxu0
    %v1979 = vadd.f32 0.0, %v1978
    %v1980 = vpop.f32.mrf.mxu0
    %v1981 = vadd.f32 0.0, %v1980
    %1982 = vmatmul.bf16.gmra.mxu0 %v1740
    %v1983 = vpop.f32.mrf.mxu0
    %v1984 = vadd.f32 0.0, %v1983
    %v1985 = vpop.f32.mrf.mxu0
    %v1986 = vadd.f32 0.0, %v1985
    %1987 = vmatmul.bf16.gmra.mxu0 %v1742
    %v1988 = vpop.f32.mrf.mxu0
    %v1989 = vadd.f32 0.0, %v1988
    %v1990 = vpop.f32.mrf.mxu0
    %v1991 = vadd.f32 0.0, %v1990
    %1992 = vdwg.mxu0
    %1993 = vmatpush.bf16.msra.mxu0 %v1887
    %1994 = vmatpush.bf16.msra.mxu0 %v1886
    %1995 = vmatpush.bf16.msra.mxu0 %v1885
    %1996 = vmatpush.bf16.msra.mxu0 %v1884
    %1997 = vmatpush.bf16.msra.mxu0 %v1883
    %1998 = vmatpush.bf16.msra.mxu0 %v1882
    %1999 = vmatpush.bf16.msra.mxu0 %v1881
    %2000 = vmatpush.bf16.msra.mxu0 %v1880
    %2001 = vmatmul.bf16.gmra.mxu0 %v1713
    %v2002 = vpop.f32.mrf.mxu0
    %v2003 = vadd.f32 %v1914, %v2002
    %v2004 = vpop.f32.mrf.mxu0
    %v2005 = vadd.f32 %v1916, %v2004
    %2006 = vmatmul.bf16.gmra.mxu0 %v1715
    %v2007 = vpop.f32.mrf.mxu0
    %v2008 = vadd.f32 %v1919, %v2007
    %v2009 = vpop.f32.mrf.mxu0
    %v2010 = vadd.f32 %v1921, %v2009
    %2011 = vmatmul.bf16.gmra.mxu0 %v1717
    %v2012 = vpop.f32.mrf.mxu0
    %v2013 = vadd.f32 %v1924, %v2012
    %v2014 = vpop.f32.mrf.mxu0
    %v2015 = vadd.f32 %v1926, %v2014
    %2016 = vmatmul.bf16.gmra.mxu0 %v1719
    %v2017 = vpop.f32.mrf.mxu0
    %v2018 = vadd.f32 %v1929, %v2017
    %v2019 = vpop.f32.mrf.mxu0
    %v2020 = vadd.f32 %v1931, %v2019
    %2021 = vmatmul.bf16.gmra.mxu0 %v1721
    %v2022 = vpop.f32.mrf.mxu0
    %v2023 = vadd.f32 %v1934, %v2022
    %v2024 = vpop.f32.mrf.mxu0
    %v2025 = vadd.f32 %v1936, %v2024
    %2026 = vmatmul.bf16.gmra.mxu0 %v1723
    %v2027 = vpop.f32.mrf.mxu0
    %v2028 = vadd.f32 %v1939, %v2027
    %v2029 = vpop.f32.mrf.mxu0
    %v2030 = vadd.f32 %v1941, %v2029
    %2031 = vmatmul.bf16.gmra.mxu0 %v1725
    %v2032 = vpop.f32.mrf.mxu0
    %v2033 = vadd.f32 %v1944, %v2032
    %v2034 = vpop.f32.mrf.mxu0
    %v2035 = vadd.f32 %v1946, %v2034
    %2036 = vmatmul.bf16.gmra.mxu0 %v1727
    %v2037 = vpop.f32.mrf.mxu0
    %v2038 = vadd.f32 %v1949, %v2037
    %v2039 = vpop.f32.mrf.mxu0
    %v2040 = vadd.f32 %v1951, %v2039
    %2041 = vmatmul.bf16.gmra.mxu0 %v1729
    %v2042 = vpop.f32.mrf.mxu0
    %v2043 = vadd.f32 %v1954, %v2042
    %v2044 = vpop.f32.mrf.mxu0
    %v2045 = vadd.f32 %v1956, %v2044
    %2046 = vmatmul.bf16.gmra.mxu0 %v1731
    %v2047 = vpop.f32.mrf.mxu0
    %v2048 = vadd.f32 %v1959, %v2047
    %v2049 = vpop.f32.mrf.mxu0
    %v2050 = vadd.f32 %v1961, %v2049
    %2051 = vmatmul.bf16.gmra.mxu0 %v1733
    %v2052 = vpop.f32.mrf.mxu0
    %v2053 = vadd.f32 %v1964, %v2052
    %v2054 = vpop.f32.mrf.mxu0
    %v2055 = vadd.f32 %v1966, %v2054
    %2056 = vmatmul.bf16.gmra.mxu0 %v1735
    %v2057 = vpop.f32.mrf.mxu0
    %v2058 = vadd.f32 %v1969, %v2057
    %v2059 = vpop.f32.mrf.mxu0
    %v2060 = vadd.f32 %v1971, %v2059
    %2061 = vmatmul.bf16.gmra.mxu0 %v1737
    %v2062 = vpop.f32.mrf.mxu0
    %v2063 = vadd.f32 %v1974, %v2062
    %v2064 = vpop.f32.mrf.mxu0
    %v2065 = vadd.f32 %v1976, %v2064
    %2066 = vmatmul.bf16.gmra.mxu0 %v1739
    %v2067 = vpop.f32.mrf.mxu0
    %v2068 = vadd.f32 %v1979, %v2067
    %v2069 = vpop.f32.mrf.mxu0
    %v2070 = vadd.f32 %v1981, %v2069
    %2071 = vmatmul.bf16.gmra.mxu0 %v1741
    %v2072 = vpop.f32.mrf.mxu0
    %v2073 = vadd.f32 %v1984, %v2072
    %v2074 = vpop.f32.mrf.mxu0
    %v2075 = vadd.f32 %v1986, %v2074
    %2076 = vmatmul.bf16.gmra.mxu0 %v1743
    %v2077 = vpop.f32.mrf.mxu0
    %v2078 = vadd.f32 %v1989, %v2077
    %v2079 = vpop.f32.mrf.mxu0
    %v2080 = vadd.f32 %v1991, %v2079
    %2081 = vdwg.mxu0
    %v2082 = vadd.f32 %v1744, %v2003
    %v2083 = vadd.f32 %v1745, %v2005
    %v2084 = vadd.f32 %v1746, %v2008
    %v2085 = vadd.f32 %v1747, %v2010
    %v2086 = vadd.f32 %v1748, %v2013
    %v2087 = vadd.f32 %v1749, %v2015
    %v2088 = vadd.f32 %v1750, %v2018
    %v2089 = vadd.f32 %v1751, %v2020
    %v2090 = vadd.f32 %v1752, %v2023
    %v2091 = vadd.f32 %v1753, %v2025
    %v2092 = vadd.f32 %v1754, %v2028
    %v2093 = vadd.f32 %v1755, %v2030
    %v2094 = vadd.f32 %v1756, %v2033
    %v2095 = vadd.f32 %v1757, %v2035
    %v2096 = vadd.f32 %v1758, %v2038
    %v2097 = vadd.f32 %v1759, %v2040
    %v2098 = vadd.f32 %v1760, %v2043
    %v2099 = vadd.f32 %v1761, %v2045
    %v2100 = vadd.f32 %v1762, %v2048
    %v2101 = vadd.f32 %v1763, %v2050
    %v2102 = vadd.f32 %v1764, %v2053
    %v2103 = vadd.f32 %v1765, %v2055
    %v2104 = vadd.f32 %v1766, %v2058
    %v2105 = vadd.f32 %v1767, %v2060
    %v2106 = vadd.f32 %v1768, %v2063
    %v2107 = vadd.f32 %v1769, %v2065
    %v2108 = vadd.f32 %v1770, %v2068
    %v2109 = vadd.f32 %v1771, %v2070
    %v2110 = vadd.f32 %v1772, %v2073
    %v2111 = vadd.f32 %v1773, %v2075
    %v2112 = vadd.f32 %v1774, %v2078
    %v2113 = vadd.f32 %v1775, %v2080
    %2114 = vst [vmem:[#allocation3] sm:$0xff] %v2082
    %2115 = vst [vmem:[#allocation3 + $0x8] sm:$0xff] %v2083
    %2116 = vst [vmem:[#allocation3 + $0x10] sm:$0xff] %v2084
    %2117 = vst [vmem:[#allocation3 + $0x18] sm:$0xff] %v2085
    %2118 = vst [vmem:[#allocation3 + $0x20] sm:$0xff] %v2086
    %2119 = vst [vmem:[#allocation3 + $0x28] sm:$0xff] %v2087
    %2120 = vst [vmem:[#allocation3 + $0x30] sm:$0xff] %v2088
    %2121 = vst [vmem:[#allocation3 + $0x38] sm:$0xff] %v2089
    %2122 = vst [vmem:[#allocation3 + $0x40] sm:$0xff] %v2090
    %2123 = vst [vmem:[#allocation3 + $0x48] sm:$0xff] %v2091
    %2124 = vst [vmem:[#allocation3 + $0x50] sm:$0xff] %v2092
    %2125 = vst [vmem:[#allocation3 + $0x58] sm:$0xff] %v2093
    %2126 = vst [vmem:[#allocation3 + $0x60] sm:$0xff] %v2094
    %2127 = vst [vmem:[#allocation3 + $0x68] sm:$0xff] %v2095
    %2128 = vst [vmem:[#allocation3 + $0x70] sm:$0xff] %v2096
    %2129 = vst [vmem:[#allocation3 + $0x78] sm:$0xff] %v2097
    %2130 = vst [vmem:[#allocation3 + $0x80] sm:$0xff] %v2098
    %2131 = vst [vmem:[#allocation3 + $0x88] sm:$0xff] %v2099
    %2132 = vst [vmem:[#allocation3 + $0x90] sm:$0xff] %v2100
    %2133 = vst [vmem:[#allocation3 + $0x98] sm:$0xff] %v2101
    %2134 = vst [vmem:[#allocation3 + $0xa0] sm:$0xff] %v2102
    %2135 = vst [vmem:[#allocation3 + $0xa8] sm:$0xff] %v2103
    %2136 = vst [vmem:[#allocation3 + $0xb0] sm:$0xff] %v2104
    %2137 = vst [vmem:[#allocation3 + $0xb8] sm:$0xff] %v2105
    %2138 = vst [vmem:[#allocation3 + $0xc0] sm:$0xff] %v2106
    %2139 = vst [vmem:[#allocation3 + $0xc8] sm:$0xff] %v2107
    %2140 = vst [vmem:[#allocation3 + $0xd0] sm:$0xff] %v2108
    %2141 = vst [vmem:[#allocation3 + $0xd8] sm:$0xff] %v2109
    %2142 = vst [vmem:[#allocation3 + $0xe0] sm:$0xff] %v2110
    %2143 = vst [vmem:[#allocation3 + $0xe8] sm:$0xff] %v2111
    %2144 = vst [vmem:[#allocation3 + $0xf0] sm:$0xff] %v2112
    %2145 = vst [vmem:[#allocation3 + $0xf8] sm:$0xff] %v2113
    // Predicated region
    $region66: #{tpu_custom_call.1} parent=1 // pred_check
      %p2146 = pneg %p125
    $region67: #{tpu_custom_call.1} parent=1 // pred_check_branch
      %2148 = sbr.rel (%p2146) target = $region69
    $region68: #{tpu_custom_call.1} parent=1 // pred_region
      %v2149 = vld [vmem:[#allocation3] sm:$0xff]
      %v2150 = vld [vmem:[#allocation3 + $0x8] sm:$0xff]
      %v2151 = vld [vmem:[#allocation3 + $0x10] sm:$0xff]
      %v2152 = vld [vmem:[#allocation3 + $0x18] sm:$0xff]
      %v2153 = vld [vmem:[#allocation3 + $0x20] sm:$0xff]
      %v2154 = vld [vmem:[#allocation3 + $0x28] sm:$0xff]
      %v2155 = vld [vmem:[#allocation3 + $0x30] sm:$0xff]
      %v2156 = vld [vmem:[#allocation3 + $0x38] sm:$0xff]
      %v2157 = vld [vmem:[#allocation3 + $0x40] sm:$0xff]
      %v2158 = vld [vmem:[#allocation3 + $0x48] sm:$0xff]
      %v2159 = vld [vmem:[#allocation3 + $0x50] sm:$0xff]
      %v2160 = vld [vmem:[#allocation3 + $0x58] sm:$0xff]
      %v2161 = vld [vmem:[#allocation3 + $0x60] sm:$0xff]
      %v2162 = vld [vmem:[#allocation3 + $0x68] sm:$0xff]
      %v2163 = vld [vmem:[#allocation3 + $0x70] sm:$0xff]
      %v2164 = vld [vmem:[#allocation3 + $0x78] sm:$0xff]
      %v2165 = vld [vmem:[#allocation3 + $0x80] sm:$0xff]
      %v2166 = vld [vmem:[#allocation3 + $0x88] sm:$0xff]
      %v2167 = vld [vmem:[#allocation3 + $0x90] sm:$0xff]
      %v2168 = vld [vmem:[#allocation3 + $0x98] sm:$0xff]
      %v2169 = vld [vmem:[#allocation3 + $0xa0] sm:$0xff]
      %v2170 = vld [vmem:[#allocation3 + $0xa8] sm:$0xff]
      %v2171 = vld [vmem:[#allocation3 + $0xb0] sm:$0xff]
      %v2172 = vld [vmem:[#allocation3 + $0xb8] sm:$0xff]
      %v2173 = vld [vmem:[#allocation3 + $0xc0] sm:$0xff]
      %v2174 = vld [vmem:[#allocation3 + $0xc8] sm:$0xff]
      %v2175 = vld [vmem:[#allocation3 + $0xd0] sm:$0xff]
      %v2176 = vld [vmem:[#allocation3 + $0xd8] sm:$0xff]
      %v2177 = vld [vmem:[#allocation3 + $0xe0] sm:$0xff]
      %v2178 = vld [vmem:[#allocation3 + $0xe8] sm:$0xff]
      %v2179 = vld [vmem:[#allocation3 + $0xf0] sm:$0xff]
      %v2180 = vld [vmem:[#allocation3 + $0xf8] sm:$0xff]
      %v2181 = vld [vmem:[%s8] sm:$0x1]
      %v2183 = vperm.slane %v2181, 0
      %v2185 = vadd.f32 %v2149, %v2183
      %v2186 = vadd.f32 %v2150, %v2183
      %v2187 = vadd.f32 %v2151, %v2183
      %v2188 = vadd.f32 %v2152, %v2183
      %v2189 = vadd.f32 %v2153, %v2183
      %v2190 = vadd.f32 %v2154, %v2183
      %v2191 = vadd.f32 %v2155, %v2183
      %v2192 = vadd.f32 %v2156, %v2183
      %v2193 = vadd.f32 %v2157, %v2183
      %v2194 = vadd.f32 %v2158, %v2183
      %v2195 = vadd.f32 %v2159, %v2183
      %v2196 = vadd.f32 %v2160, %v2183
      %v2197 = vadd.f32 %v2161, %v2183
      %v2198 = vadd.f32 %v2162, %v2183
      %v2199 = vadd.f32 %v2163, %v2183
      %v2200 = vadd.f32 %v2164, %v2183
      %v2201 = vadd.f32 %v2165, %v2183
      %v2202 = vadd.f32 %v2166, %v2183
      %v2203 = vadd.f32 %v2167, %v2183
      %v2204 = vadd.f32 %v2168, %v2183
      %v2205 = vadd.f32 %v2169, %v2183
      %v2206 = vadd.f32 %v2170, %v2183
      %v2207 = vadd.f32 %v2171, %v2183
      %v2208 = vadd.f32 %v2172, %v2183
      %v2209 = vadd.f32 %v2173, %v2183
      %v2210 = vadd.f32 %v2174, %v2183
      %v2211 = vadd.f32 %v2175, %v2183
      %v2212 = vadd.f32 %v2176, %v2183
      %v2213 = vadd.f32 %v2177, %v2183
      %v2214 = vadd.f32 %v2178, %v2183
      %v2215 = vadd.f32 %v2179, %v2183
      %v2216 = vadd.f32 %v2180, %v2183
      %v2217 = vpack.c.bf16 %v2185, %v2185
      %v2218 = vpack.c.bf16 %v2186, %v2186
      %v2219 = vpack.c.bf16 %v2187, %v2187
      %v2220 = vpack.c.bf16 %v2188, %v2188
      %v2221 = vpack.c.bf16 %v2189, %v2189
      %v2222 = vpack.c.bf16 %v2190, %v2190
      %v2223 = vpack.c.bf16 %v2191, %v2191
      %v2224 = vpack.c.bf16 %v2192, %v2192
      %v2225 = vpack.c.bf16 %v2193, %v2193
      %v2226 = vpack.c.bf16 %v2194, %v2194
      %v2227 = vpack.c.bf16 %v2195, %v2195
      %v2228 = vpack.c.bf16 %v2196, %v2196
      %v2229 = vpack.c.bf16 %v2197, %v2197
      %v2230 = vpack.c.bf16 %v2198, %v2198
      %v2231 = vpack.c.bf16 %v2199, %v2199
      %v2232 = vpack.c.bf16 %v2200, %v2200
      %v2233 = vpack.c.bf16 %v2201, %v2201
      %v2234 = vpack.c.bf16 %v2202, %v2202
      %v2235 = vpack.c.bf16 %v2203, %v2203
      %v2236 = vpack.c.bf16 %v2204, %v2204
      %v2237 = vpack.c.bf16 %v2205, %v2205
      %v2238 = vpack.c.bf16 %v2206, %v2206
      %v2239 = vpack.c.bf16 %v2207, %v2207
      %v2240 = vpack.c.bf16 %v2208, %v2208
      %v2241 = vpack.c.bf16 %v2209, %v2209
      %v2242 = vpack.c.bf16 %v2210, %v2210
      %v2243 = vpack.c.bf16 %v2211, %v2211
      %v2244 = vpack.c.bf16 %v2212, %v2212
      %v2245 = vpack.c.bf16 %v2213, %v2213
      %v2246 = vpack.c.bf16 %v2214, %v2214
      %v2247 = vpack.c.bf16 %v2215, %v2215
      %v2248 = vpack.c.bf16 %v2216, %v2216
      %2249 = vst [vmem:[#allocation15] sm:$0xf] %v2217
      %2250 = vst [vmem:[#allocation15 + $0x4] sm:$0xf] %v2218
      %2251 = vst [vmem:[#allocation15 + $0x8] sm:$0xf] %v2219
      %2252 = vst [vmem:[#allocation15 + $0xc] sm:$0xf] %v2220
      %2253 = vst [vmem:[#allocation15 + $0x10] sm:$0xf] %v2221
      %2254 = vst [vmem:[#allocation15 + $0x14] sm:$0xf] %v2222
      %2255 = vst [vmem:[#allocation15 + $0x18] sm:$0xf] %v2223
      %2256 = vst [vmem:[#allocation15 + $0x1c] sm:$0xf] %v2224
      %2257 = vst [vmem:[#allocation15 + $0x20] sm:$0xf] %v2225
      %2258 = vst [vmem:[#allocation15 + $0x24] sm:$0xf] %v2226
      %2259 = vst [vmem:[#allocation15 + $0x28] sm:$0xf] %v2227
      %2260 = vst [vmem:[#allocation15 + $0x2c] sm:$0xf] %v2228
      %2261 = vst [vmem:[#allocation15 + $0x30] sm:$0xf] %v2229
      %2262 = vst [vmem:[#allocation15 + $0x34] sm:$0xf] %v2230
      %2263 = vst [vmem:[#allocation15 + $0x38] sm:$0xf] %v2231
      %2264 = vst [vmem:[#allocation15 + $0x3c] sm:$0xf] %v2232
      %2265 = vst [vmem:[#allocation15 + $0x40] sm:$0xf] %v2233
      %2266 = vst [vmem:[#allocation15 + $0x44] sm:$0xf] %v2234
      %2267 = vst [vmem:[#allocation15 + $0x48] sm:$0xf] %v2235
      %2268 = vst [vmem:[#allocation15 + $0x4c] sm:$0xf] %v2236
      %2269 = vst [vmem:[#allocation15 + $0x50] sm:$0xf] %v2237
      %2270 = vst [vmem:[#allocation15 + $0x54] sm:$0xf] %v2238
      %2271 = vst [vmem:[#allocation15 + $0x58] sm:$0xf] %v2239
      %2272 = vst [vmem:[#allocation15 + $0x5c] sm:$0xf] %v2240
      %2273 = vst [vmem:[#allocation15 + $0x60] sm:$0xf] %v2241
      %2274 = vst [vmem:[#allocation15 + $0x64] sm:$0xf] %v2242
      %2275 = vst [vmem:[#allocation15 + $0x68] sm:$0xf] %v2243
      %2276 = vst [vmem:[#allocation15 + $0x6c] sm:$0xf] %v2244
      %2277 = vst [vmem:[#allocation15 + $0x70] sm:$0xf] %v2245
      %2278 = vst [vmem:[#allocation15 + $0x74] sm:$0xf] %v2246
      %2279 = vst [vmem:[#allocation15 + $0x78] sm:$0xf] %v2247
      %2280 = vst [vmem:[#allocation15 + $0x7c] sm:$0xf] %v2248
    $region69: #{tpu_custom_call.1} parent=1 // pred_fallthru
      _
    // Predicated region
    $region70: #{tpu_custom_call.1} parent=1 // pred_check
      _
    $region71: #{tpu_custom_call.1} parent=1 // pred_check_branch
      %2282 = sbr.rel (0) target = $region73
    $region72: #{tpu_custom_call.1} parent=1 // pred_region
      %2284 = vsyncadd [#allocation6], 0
      %s2285 = sshll.u32 [#allocation15], 4
      %s2286 = int_to_ptr.vmem [resolvable:$true] %s2285
      %s2287 = sshll.u32 %s9, 4
      %s2288 = int_to_ptr.hbm [resolvable:$true] %s2287
      %2293 = dma.vmem_to_hbm [thread:$0]  %s2286, 2048, %s2288, [#allocation6], 64, 64, 4
    $region73: #{tpu_custom_call.1} parent=1 // pred_fallthru
      _
    // Predicated region
    $region74: #{tpu_custom_call.1} parent=1 // pred_check
      _
    $region75: #{tpu_custom_call.1} parent=1 // pred_check_branch
      %2295 = sbr.rel (0) target = $region77
    $region76: #{tpu_custom_call.1} parent=1 // pred_region
      %2297 = dma.done [#allocation6], 2048
    $region77: #{tpu_custom_call.1} parent=1 // pred_fallthru
      _
    %2298 = vsyncpa [#allocation5], 1
    %2299 = vsyncpa [#allocation8], 1
    %2300 = vsyncpa [#allocation11], 1
    %2301 = vsyncpa [#allocation14], 1
    %2302 = vsyncpa [#allocation6], 1

// kernel: tpu_custom_call.1
$region0: #{tpu_custom_call.1}
  #allocation0 [shape = 'u32[]', space=smem, size = 0x4, offset = 0x4, fixed_abs, tag = 'smem constant byte address 0x4 - core index']
  #allocation1 [shape = 'u32[72,128]{1,0:T(1,128)}', space=vmem, size = 0x9000, scoped, tag = 'internal scratch']
  #allocation2 [shape = 'bf16[256,256]{1,0:T(8,128)(2,1)}', space=vmem, size = 0x20000, scoped, tag = 'scratch operand']
  #allocation3 [shape = 'f32[256,128]{1,0:T(8,128)}', space=vmem, size = 0x20000, scoped, tag = 'scratch operand']
  %s0 = inlined_call_operand.hbm [shape: bf16[256,128], index: 0, kind: input, shape index: {}]
  %s1 = inlined_call_operand.hbm [shape: bf16[128,128], index: 1, kind: input, shape index: {}]
  %s2 = inlined_call_operand.hbm [shape: f32[1,128], index: 2, kind: input, shape index: {}]
  %s3 = inlined_call_operand.hbm [shape: bf16[128,256], index: 3, kind: input, shape index: {}]
  %s4 = inlined_call_operand.vmem [shape: f32[1,256], index: 4, kind: input, shape index: {}]
  %s5 = inlined_call_operand.hbm [shape: bf16[256,256], index: 5, kind: input, shape index: {}]
  %s6 = inlined_call_operand.vmem [shape: f32[1,256], index: 6, kind: input, shape index: {}]
  %s7 = inlined_call_operand.hbm [shape: bf16[256,128], index: 7, kind: input, shape index: {}]
  %s8 = inlined_call_operand.vmem [shape: f32[1,128], index: 8, kind: input, shape index: {}]
  %s9 = inlined_call_operand.hbm [shape: bf16[256,128], index: 9, kind: output, shape index: {}]
  %s10 = sld [smem:[#allocation0]]
  $region78: #{tpu_custom_call.1} parent=0
    _
  %s12 = ssub.s32 1, %s10
  %s13 = scalar_select 0, %s12, %s10
  $region1: #{tpu_custom_call.1} parent=0
    #allocation4 [shape = 'u8[65536]{0}', space=vmem, size = 0x10000, scoped, tag = 'input window, operand 0, single buffered']
    #allocation5 [shape = 's32[1]{0}', space=sflag, size = 0x4, scoped, tag = 'scoped memory for tpu_custom_call.1']
    #allocation6 [shape = 's32[1]{0}', space=sflag, size = 0x4, scoped, tag = 'scoped memory for tpu_custom_call.1']
    #allocation7 [shape = 'u8[32768]{0}', space=vmem, size = 0x8000, scoped, tag = 'input window, operand 1, single buffered']
    #allocation8 [shape = 's32[1]{0}', space=sflag, size = 0x4, scoped, tag = 'scoped memory for tpu_custom_call.1']
    #allocation9 [shape = 'u8[512]{0}', space=vmem, size = 0x400, scoped, tag = 'input window, operand 2, single buffered']
    #allocation10 [shape = 'u8[65536]{0}', space=vmem, size = 0x10000, scoped, tag = 'input window, operand 3, single buffered']
    #allocation11 [shape = 's32[1]{0}', space=sflag, size = 0x4, scoped, tag = 'scoped memory for tpu_custom_call.1']
    #allocation12 [shape = 'u8[131072]{0}', space=vmem, size = 0x20000, scoped, tag = 'input window, operand 5, single buffered']
    #allocation13 [shape = 'u8[65536]{0}', space=vmem, size = 0x10000, scoped, tag = 'input window, operand 7, single buffered']
    #allocation14 [shape = 's32[1]{0}', space=sflag, size = 0x4, scoped, tag = 'scoped memory for tpu_custom_call.1']
    #allocation15 [shape = 'u8[65536]{0}', space=vmem, size = 0x10000, scoped, tag = 'output window, operand 0, single buffered']
    %14 = vsyncpa [#allocation5], 0
    %15 = vsyncpa [#allocation8], 0
    %16 = vsyncpa [#allocation11], 0
    %17 = vsyncpa [#allocation14], 0
    %18 = vsyncpa [#allocation6], 0
    // Predicated region
    $region2: #{tpu_custom_call.1} parent=1 // pred_check
      _
    $region3: #{tpu_custom_call.1} parent=1 // pred_check_branch
      %20 = sbr.rel (0) target = $region5
    $region4: #{tpu_custom_call.1} parent=1 // pred_region
      %22 = vsyncadd [#allocation5], 0
      %s23 = sshll.u32 %s0, 4
      %s24 = int_to_ptr.hbm [resolvable:$true] %s23
      %s25 = sshll.u32 [#allocation4], 4
      %s26 = int_to_ptr.vmem [resolvable:$true] %s25
      %31 = dma.hbm_to_vmem [thread:$0]  %s24, 2048, %s26, [#allocation5], 64, 64, 4
    $region5: #{tpu_custom_call.1} parent=1 // pred_fallthru
      _
    // Predicated region
    $region6: #{tpu_custom_call.1} parent=1 // pred_check
      _
    $region7: #{tpu_custom_call.1} parent=1 // pred_check_branch
      %33 = sbr.rel (0) target = $region9
    $region8: #{tpu_custom_call.1} parent=1 // pred_region
      %35 = vsyncadd [#allocation8], 0
      %s36 = sshll.u32 %s1, 4
      %s37 = int_to_ptr.hbm [resolvable:$true] %s36
      %s38 = sshll.u32 [#allocation7], 4
      %s39 = int_to_ptr.vmem [resolvable:$true] %s38
      %44 = dma.hbm_to_vmem [thread:$0]  %s37, 1024, %s39, [#allocation8], 64, 64, 4
    $region9: #{tpu_custom_call.1} parent=1 // pred_fallthru
      _
    // Predicated region
    $region10: #{tpu_custom_call.1} parent=1 // pred_check
      _
    $region11: #{tpu_custom_call.1} parent=1 // pred_check_branch
      %46 = sbr.rel (0) target = $region13
    $region12: #{tpu_custom_call.1} parent=1 // pred_region
      %48 = vsyncadd [#allocation8], 0
      %s50 = sshll.u32 %s2, 4
      %s51 = int_to_ptr.hbm [resolvable:$true] %s50
      %s52 = sshll.u32 [#allocation9], 4
      %s53 = int_to_ptr.vmem [resolvable:$true] %s52
      %55 = dma.hbm_to_vmem [thread:$0]  %s51, 16, %s53, [#allocation8]
    $region13: #{tpu_custom_call.1} parent=1 // pred_fallthru
      _
    // Predicated region
    $region14: #{tpu_custom_call.1} parent=1 // pred_check
      _
    $region15: #{tpu_custom_call.1} parent=1 // pred_check_branch
      %57 = sbr.rel (0) target = $region17
    $region16: #{tpu_custom_call.1} parent=1 // pred_region
      %59 = vsyncadd [#allocation11], 0
      %s60 = sshll.u32 %s3, 4
      %s61 = int_to_ptr.hbm [resolvable:$true] %s60
      %s62 = sshll.u32 [#allocation10], 4
      %s63 = int_to_ptr.vmem [resolvable:$true] %s62
      %68 = dma.hbm_to_vmem [thread:$0]  %s61, 2048, %s63, [#allocation11], 128, 128, 8
    $region17: #{tpu_custom_call.1} parent=1 // pred_fallthru
      _
    // Predicated region
    $region18: #{tpu_custom_call.1} parent=1 // pred_check
      _
    $region19: #{tpu_custom_call.1} parent=1 // pred_check_branch
      %70 = sbr.rel (0) target = $region21
    $region20: #{tpu_custom_call.1} parent=1 // pred_region
      _
    $region21: #{tpu_custom_call.1} parent=1 // pred_fallthru
      _
    // Predicated region
    $region22: #{tpu_custom_call.1} parent=1 // pred_check
      _
    $region23: #{tpu_custom_call.1} parent=1 // pred_check_branch
      %72 = sbr.rel (0) target = $region25
    $region24: #{tpu_custom_call.1} parent=1 // pred_region
      %74 = vsyncadd [#allocation11], 0
      %s75 = sshll.u32 %s5, 4
      %s76 = int_to_ptr.hbm [resolvable:$true] %s75
      %s77 = sshll.u32 [#allocation12], 4
      %s78 = int_to_ptr.vmem [resolvable:$true] %s77
      %83 = dma.hbm_to_vmem [thread:$0]  %s76, 4096, %s78, [#allocation11], 128, 128, 8
    $region25: #{tpu_custom_call.1} parent=1 // pred_fallthru
      _
    // Predicated region
    $region26: #{tpu_custom_call.1} parent=1 // pred_check
      _
    $region27: #{tpu_custom_call.1} parent=1 // pred_check_branch
      %85 = sbr.rel (0) target = $region29
    $region28: #{tpu_custom_call.1} parent=1 // pred_region
      _
    $region29: #{tpu_custom_call.1} parent=1 // pred_fallthru
      _
    // Predicated region
    $region30: #{tpu_custom_call.1} parent=1 // pred_check
      _
    $region31: #{tpu_custom_call.1} parent=1 // pred_check_branch
      %87 = sbr.rel (0) target = $region33
    $region32: #{tpu_custom_call.1} parent=1 // pred_region
      %89 = vsyncadd [#allocation14], 0
      %s90 = sshll.u32 %s7, 4
      %s91 = int_to_ptr.hbm [resolvable:$true] %s90
      %s92 = sshll.u32 [#allocation13], 4
      %s93 = int_to_ptr.vmem [resolvable:$true] %s92
      %98 = dma.hbm_to_vmem [thread:$0]  %s91, 2048, %s93, [#allocation14], 64, 64, 4
    $region33: #{tpu_custom_call.1} parent=1 // pred_fallthru
      _
    // Predicated region
    $region34: #{tpu_custom_call.1} parent=1 // pred_check
      _
    $region35: #{tpu_custom_call.1} parent=1 // pred_check_branch
      %100 = sbr.rel (0) target = $region37
    $region36: #{tpu_custom_call.1} parent=1 // pred_region
      _
    $region37: #{tpu_custom_call.1} parent=1 // pred_fallthru
      _
    // Predicated region
    $region38: #{tpu_custom_call.1} parent=1 // pred_check
      _
    $region39: #{tpu_custom_call.1} parent=1 // pred_check_branch
      %102 = sbr.rel (0) target = $region41
    $region40: #{tpu_custom_call.1} parent=1 // pred_region
      %104 = dma.done [#allocation5], 2048
    $region41: #{tpu_custom_call.1} parent=1 // pred_fallthru
      _
    // Predicated region
    $region42: #{tpu_custom_call.1} parent=1 // pred_check
      _
    $region43: #{tpu_custom_call.1} parent=1 // pred_check_branch
      %106 = sbr.rel (0) target = $region45
    $region44: #{tpu_custom_call.1} parent=1 // pred_region
      %108 = dma.done [#allocation8], 1024
    $region45: #{tpu_custom_call.1} parent=1 // pred_fallthru
      _
    // Predicated region
    $region46: #{tpu_custom_call.1} parent=1 // pred_check
      _
    $region47: #{tpu_custom_call.1} parent=1 // pred_check_branch
      %110 = sbr.rel (0) target = $region49
    $region48: #{tpu_custom_call.1} parent=1 // pred_region
      %112 = dma.done [#allocation8], 16
    $region49: #{tpu_custom_call.1} parent=1 // pred_fallthru
      _
    // Predicated region
    $region50: #{tpu_custom_call.1} parent=1 // pred_check
      _
    $region51: #{tpu_custom_call.1} parent=1 // pred_check_branch
      %114 = sbr.rel (0) target = $region53
    $region52: #{tpu_custom_call.1} parent=1 // pred_region
      %116 = dma.done [#allocation11], 2048
    $region53: #{tpu_custom_call.1} parent=1 // pred_fallthru
      _
    // Predicated region
    $region54: #{tpu_custom_call.1} parent=1 // pred_check
      _
    $region55: #{tpu_custom_call.1} parent=1 // pred_check_branch
      %118 = sbr.rel (0) target = $region57
    $region56: #{tpu_custom_call.1} parent=1 // pred_region
      %120 = dma.done [#allocation11], 4096
    $region57: #{tpu_custom_call.1} parent=1 // pred_fallthru
      _
    // Predicated region
    $region58: #{tpu_custom_call.1} parent=1 // pred_check
      _
    $region59: #{tpu_custom_call.1} parent=1 // pred_check_branch
      %122 = sbr.rel (0) target = $region61
    $region60: #{tpu_custom_call.1} parent=1 // pred_region
      %124 = dma.done [#allocation14], 2048
    $region61: #{tpu_custom_call.1} parent=1 // pred_fallthru
      _
    %p125 = scmp.eq.s32.totalorder 0, 0
    // Predicated region
    $region62: #{tpu_custom_call.1} parent=1 // pred_check
      %p126 = pneg %p125
    $region63: #{tpu_custom_call.1} parent=1 // pred_check_branch
      %128 = sbr.rel (%p126) target = $region65
    $region64: #{tpu_custom_call.1} parent=1 // pred_region
      %v129 = vld [vmem:[#allocation4] sm:$0xf]
      %v130 = vld [vmem:[#allocation4 + $0x4] sm:$0xf]
      %v131 = vld [vmem:[#allocation4 + $0x8] sm:$0xf]
      %v132 = vld [vmem:[#allocation4 + $0xc] sm:$0xf]
      %v133 = vld [vmem:[#allocation4 + $0x10] sm:$0xf]
      %v134 = vld [vmem:[#allocation4 + $0x14] sm:$0xf]
      %v135 = vld [vmem:[#allocation4 + $0x18] sm:$0xf]
      %v136 = vld [vmem:[#allocation4 + $0x1c] sm:$0xf]
      %v137 = vld [vmem:[#allocation4 + $0x20] sm:$0xf]
      %v138 = vld [vmem:[#allocation4 + $0x24] sm:$0xf]
      %v139 = vld [vmem:[#allocation4 + $0x28] sm:$0xf]
      %v140 = vld [vmem:[#allocation4 + $0x2c] sm:$0xf]
      %v141 = vld [vmem:[#allocation4 + $0x30] sm:$0xf]
      %v142 = vld [vmem:[#allocation4 + $0x34] sm:$0xf]
      %v143 = vld [vmem:[#allocation4 + $0x38] sm:$0xf]
      %v144 = vld [vmem:[#allocation4 + $0x3c] sm:$0xf]
      %v145 = vld [vmem:[#allocation4 + $0x40] sm:$0xf]
      %v146 = vld [vmem:[#allocation4 + $0x44] sm:$0xf]
      %v147 = vld [vmem:[#allocation4 + $0x48] sm:$0xf]
      %v148 = vld [vmem:[#allocation4 + $0x4c] sm:$0xf]
      %v149 = vld [vmem:[#allocation4 + $0x50] sm:$0xf]
      %v150 = vld [vmem:[#allocation4 + $0x54] sm:$0xf]
      %v151 = vld [vmem:[#allocation4 + $0x58] sm:$0xf]
      %v152 = vld [vmem:[#allocation4 + $0x5c] sm:$0xf]
      %v153 = vld [vmem:[#allocation4 + $0x60] sm:$0xf]
      %v154 = vld [vmem:[#allocation4 + $0x64] sm:$0xf]
      %v155 = vld [vmem:[#allocation4 + $0x68] sm:$0xf]
      %v156 = vld [vmem:[#allocation4 + $0x6c] sm:$0xf]
      %v157 = vld [vmem:[#allocation4 + $0x70] sm:$0xf]
      %v158 = vld [vmem:[#allocation4 + $0x74] sm:$0xf]
      %v159 = vld [vmem:[#allocation4 + $0x78] sm:$0xf]
      %v160 = vld [vmem:[#allocation4 + $0x7c] sm:$0xf]
      %v161 = vld [vmem:[#allocation7] sm:$0xf]
      %v162 = vld [vmem:[#allocation7 + $0x4] sm:$0xf]
      %v163 = vld [vmem:[#allocation7 + $0x8] sm:$0xf]
      %v164 = vld [vmem:[#allocation7 + $0xc] sm:$0xf]
      %v165 = vld [vmem:[#allocation7 + $0x10] sm:$0xf]
      %v166 = vld [vmem:[#allocation7 + $0x14] sm:$0xf]
      %v167 = vld [vmem:[#allocation7 + $0x18] sm:$0xf]
      %v168 = vld [vmem:[#allocation7 + $0x1c] sm:$0xf]
      %v169 = vld [vmem:[#allocation7 + $0x20] sm:$0xf]
      %v170 = vld [vmem:[#allocation7 + $0x24] sm:$0xf]
      %v171 = vld [vmem:[#allocation7 + $0x28] sm:$0xf]
      %v172 = vld [vmem:[#allocation7 + $0x2c] sm:$0xf]
      %v173 = vld [vmem:[#allocation7 + $0x30] sm:$0xf]
      %v174 = vld [vmem:[#allocation7 + $0x34] sm:$0xf]
      %v175 = vld [vmem:[#allocation7 + $0x38] sm:$0xf]
      %v176 = vld [vmem:[#allocation7 + $0x3c] sm:$0xf]
      %v177 = vld [vmem:[#allocation9] sm:$0x1]
      %v179 = vperm.slane %v177, 0
      %v213 = vunpack.c.l.b16 %v129
      %v214 = vunpack.c.l.b16 %v130
      %v215 = vunpack.c.l.b16 %v131
      %v216 = vunpack.c.l.b16 %v132
      %v217 = vunpack.c.l.b16 %v133
      %v218 = vunpack.c.l.b16 %v134
      %v219 = vunpack.c.l.b16 %v135
      %v220 = vunpack.c.l.b16 %v136
      %v221 = vunpack.c.l.b16 %v137
      %v222 = vunpack.c.l.b16 %v138
      %v223 = vunpack.c.l.b16 %v139
      %v224 = vunpack.c.l.b16 %v140
      %v225 = vunpack.c.l.b16 %v141
      %v226 = vunpack.c.l.b16 %v142
      %v227 = vunpack.c.l.b16 %v143
      %v228 = vunpack.c.l.b16 %v144
      %v229 = vunpack.c.l.b16 %v145
      %v230 = vunpack.c.l.b16 %v146
      %v231 = vunpack.c.l.b16 %v147
      %v232 = vunpack.c.l.b16 %v148
      %v233 = vunpack.c.l.b16 %v149
      %v234 = vunpack.c.l.b16 %v150
      %v235 = vunpack.c.l.b16 %v151
      %v236 = vunpack.c.l.b16 %v152
      %v237 = vunpack.c.l.b16 %v153
      %v238 = vunpack.c.l.b16 %v154
      %v239 = vunpack.c.l.b16 %v155
      %v240 = vunpack.c.l.b16 %v156
      %v241 = vunpack.c.l.b16 %v157
      %v242 = vunpack.c.l.b16 %v158
      %v243 = vunpack.c.l.b16 %v159
      %v244 = vunpack.c.l.b16 %v160
      %v245 = vpack.c.b16 %v214, %v213
      %v246 = vpack.c.b16 %v216, %v215
      %v247 = vpack.c.b16 %v218, %v217
      %v248 = vpack.c.b16 %v220, %v219
      %v249 = vpack.c.b16 %v222, %v221
      %v250 = vpack.c.b16 %v224, %v223
      %v251 = vpack.c.b16 %v226, %v225
      %v252 = vpack.c.b16 %v228, %v227
      %v253 = vpack.c.b16 %v230, %v229
      %v254 = vpack.c.b16 %v232, %v231
      %v255 = vpack.c.b16 %v234, %v233
      %v256 = vpack.c.b16 %v236, %v235
      %v257 = vpack.c.b16 %v238, %v237
      %v258 = vpack.c.b16 %v240, %v239
      %v259 = vpack.c.b16 %v242, %v241
      %v260 = vpack.c.b16 %v244, %v243
      %v293 = vunpack.c.l.b16 %v161
      %v294 = vunpack.c.l.b16 %v162
      %v295 = vunpack.c.l.b16 %v163
      %v296 = vunpack.c.l.b16 %v164
      %v297 = vunpack.c.l.b16 %v165
      %v298 = vunpack.c.l.b16 %v166
      %v299 = vunpack.c.l.b16 %v167
      %v300 = vunpack.c.l.b16 %v168
      %v301 = vunpack.c.l.b16 %v169
      %v302 = vunpack.c.l.b16 %v170
      %v303 = vunpack.c.l.b16 %v171
      %v304 = vunpack.c.l.b16 %v172
      %v305 = vunpack.c.l.b16 %v173
      %v306 = vunpack.c.l.b16 %v174
      %v307 = vunpack.c.l.b16 %v175
      %v308 = vunpack.c.l.b16 %v176
      %v309 = vpack.c.b16 %v294, %v293
      %v310 = vpack.c.b16 %v296, %v295
      %v311 = vpack.c.b16 %v298, %v297
      %v312 = vpack.c.b16 %v300, %v299
      %v313 = vpack.c.b16 %v302, %v301
      %v314 = vpack.c.b16 %v304, %v303
      %v315 = vpack.c.b16 %v306, %v305
      %v316 = vpack.c.b16 %v308, %v307
      %325 = vmatpush.bf16.msra.mxu0 %v316
      %326 = vmatpush.bf16.msra.mxu0 %v315
      %327 = vmatpush.bf16.msra.mxu0 %v314
      %328 = vmatpush.bf16.msra.mxu0 %v313
      %329 = vmatpush.bf16.msra.mxu0 %v312
      %330 = vmatpush.bf16.msra.mxu0 %v311
      %331 = vmatpush.bf16.msra.mxu0 %v310
      %332 = vmatpush.bf16.msra.mxu0 %v309
      %333 = vmatmul.bf16.gmra.mxu0 %v245
      %v334 = vpop.f32.mrf.mxu0
      %v335 = vadd.f32 %v179, %v334
      %v336 = vpop.f32.mrf.mxu0
      %v337 = vadd.f32 %v179, %v336
      %338 = vmatmul.bf16.gmra.mxu0 %v246
      %v339 = vpop.f32.mrf.mxu0
      %v340 = vadd.f32 %v179, %v339
      %v341 = vpop.f32.mrf.mxu0
      %v342 = vadd.f32 %v179, %v341
      %343 = vmatmul.bf16.gmra.mxu0 %v247
      %v344 = vpop.f32.mrf.mxu0
      %v345 = vadd.f32 %v179, %v344
      %v346 = vpop.f32.mrf.mxu0
      %v347 = vadd.f32 %v179, %v346
      %348 = vmatmul.bf16.gmra.mxu0 %v248
      %v349 = vpop.f32.mrf.mxu0
      %v350 = vadd.f32 %v179, %v349
      %v351 = vpop.f32.mrf.mxu0
      %v352 = vadd.f32 %v179, %v351
      %353 = vmatmul.bf16.gmra.mxu0 %v249
      %v354 = vpop.f32.mrf.mxu0
      %v355 = vadd.f32 %v179, %v354
      %v356 = vpop.f32.mrf.mxu0
      %v357 = vadd.f32 %v179, %v356
      %358 = vmatmul.bf16.gmra.mxu0 %v250
      %v359 = vpop.f32.mrf.mxu0
      %v360 = vadd.f32 %v179, %v359
      %v361 = vpop.f32.mrf.mxu0
      %v362 = vadd.f32 %v179, %v361
      %363 = vmatmul.bf16.gmra.mxu0 %v251
      %v364 = vpop.f32.mrf.mxu0
      %v365 = vadd.f32 %v179, %v364
      %v366 = vpop.f32.mrf.mxu0
      %v367 = vadd.f32 %v179, %v366
      %368 = vmatmul.bf16.gmra.mxu0 %v252
      %v369 = vpop.f32.mrf.mxu0
      %v370 = vadd.f32 %v179, %v369
      %v371 = vpop.f32.mrf.mxu0
      %v372 = vadd.f32 %v179, %v371
      %373 = vmatmul.bf16.gmra.mxu0 %v253
      %v374 = vpop.f32.mrf.mxu0
      %v375 = vadd.f32 %v179, %v374
      %v376 = vpop.f32.mrf.mxu0
      %v377 = vadd.f32 %v179, %v376
      %378 = vmatmul.bf16.gmra.mxu0 %v254
      %v379 = vpop.f32.mrf.mxu0
      %v380 = vadd.f32 %v179, %v379
      %v381 = vpop.f32.mrf.mxu0
      %v382 = vadd.f32 %v179, %v381
      %383 = vmatmul.bf16.gmra.mxu0 %v255
      %v384 = vpop.f32.mrf.mxu0
      %v385 = vadd.f32 %v179, %v384
      %v386 = vpop.f32.mrf.mxu0
      %v387 = vadd.f32 %v179, %v386
      %388 = vmatmul.bf16.gmra.mxu0 %v256
      %v389 = vpop.f32.mrf.mxu0
      %v390 = vadd.f32 %v179, %v389
      %v391 = vpop.f32.mrf.mxu0
      %v392 = vadd.f32 %v179, %v391
      %393 = vmatmul.bf16.gmra.mxu0 %v257
      %v394 = vpop.f32.mrf.mxu0
      %v395 = vadd.f32 %v179, %v394
      %v396 = vpop.f32.mrf.mxu0
      %v397 = vadd.f32 %v179, %v396
      %398 = vmatmul.bf16.gmra.mxu0 %v258
      %v399 = vpop.f32.mrf.mxu0
      %v400 = vadd.f32 %v179, %v399
      %v401 = vpop.f32.mrf.mxu0
      %v402 = vadd.f32 %v179, %v401
      %403 = vmatmul.bf16.gmra.mxu0 %v259
      %v404 = vpop.f32.mrf.mxu0
      %v405 = vadd.f32 %v179, %v404
      %v406 = vpop.f32.mrf.mxu0
      %v407 = vadd.f32 %v179, %v406
      %408 = vmatmul.bf16.gmra.mxu0 %v260
      %v409 = vpop.f32.mrf.mxu0
      %v410 = vadd.f32 %v179, %v409
      %v411 = vpop.f32.mrf.mxu0
      %v412 = vadd.f32 %v179, %v411
      %413 = vdwg.mxu0
      %v414 = vmax.f32 %v335, 0.0
      %v415 = vmax.f32 %v337, 0.0
      %v416 = vmax.f32 %v340, 0.0
      %v417 = vmax.f32 %v342, 0.0
      %v418 = vmax.f32 %v345, 0.0
      %v419 = vmax.f32 %v347, 0.0
      %v420 = vmax.f32 %v350, 0.0
      %v421 = vmax.f32 %v352, 0.0
      %v422 = vmax.f32 %v355, 0.0
      %v423 = vmax.f32 %v357, 0.0
      %v424 = vmax.f32 %v360, 0.0
      %v425 = vmax.f32 %v362, 0.0
      %v426 = vmax.f32 %v365, 0.0
      %v427 = vmax.f32 %v367, 0.0
      %v428 = vmax.f32 %v370, 0.0
      %v429 = vmax.f32 %v372, 0.0
      %v430 = vmax.f32 %v375, 0.0
      %v431 = vmax.f32 %v377, 0.0
      %v432 = vmax.f32 %v380, 0.0
      %v433 = vmax.f32 %v382, 0.0
      %v434 = vmax.f32 %v385, 0.0
      %v435 = vmax.f32 %v387, 0.0
      %v436 = vmax.f32 %v390, 0.0
      %v437 = vmax.f32 %v392, 0.0
      %v438 = vmax.f32 %v395, 0.0
      %v439 = vmax.f32 %v397, 0.0
      %v440 = vmax.f32 %v400, 0.0
      %v441 = vmax.f32 %v402, 0.0
      %v442 = vmax.f32 %v405, 0.0
      %v443 = vmax.f32 %v407, 0.0
      %v444 = vmax.f32 %v410, 0.0
      %v445 = vmax.f32 %v412, 0.0
      %v446 = vpack.c.bf16 %v415, %v414
      %v447 = vpack.c.bf16 %v417, %v416
      %v448 = vpack.c.bf16 %v419, %v418
      %v449 = vpack.c.bf16 %v421, %v420
      %v450 = vpack.c.bf16 %v423, %v422
      %v451 = vpack.c.bf16 %v425, %v424
      %v452 = vpack.c.bf16 %v427, %v426
      %v453 = vpack.c.bf16 %v429, %v428
      %v454 = vpack.c.bf16 %v431, %v430
      %v455 = vpack.c.bf16 %v433, %v432
      %v456 = vpack.c.bf16 %v435, %v434
      %v457 = vpack.c.bf16 %v437, %v436
      %v458 = vpack.c.bf16 %v439, %v438
      %v459 = vpack.c.bf16 %v441, %v440
      %v460 = vpack.c.bf16 %v443, %v442
      %v461 = vpack.c.bf16 %v445, %v444
      %v462 = vld [vmem:[#allocation10] sm:$0xff]
      %v463 = vld [vmem:[#allocation10 + $0x8] sm:$0xff]
      %v464 = vld [vmem:[#allocation10 + $0x10] sm:$0xff]
      %v465 = vld [vmem:[#allocation10 + $0x18] sm:$0xff]
      %v466 = vld [vmem:[#allocation10 + $0x20] sm:$0xff]
      %v467 = vld [vmem:[#allocation10 + $0x28] sm:$0xff]
      %v468 = vld [vmem:[#allocation10 + $0x30] sm:$0xff]
      %v469 = vld [vmem:[#allocation10 + $0x38] sm:$0xff]
      %v470 = vld [vmem:[#allocation10 + $0x40] sm:$0xff]
      %v471 = vld [vmem:[#allocation10 + $0x48] sm:$0xff]
      %v472 = vld [vmem:[#allocation10 + $0x50] sm:$0xff]
      %v473 = vld [vmem:[#allocation10 + $0x58] sm:$0xff]
      %v474 = vld [vmem:[#allocation10 + $0x60] sm:$0xff]
      %v475 = vld [vmem:[#allocation10 + $0x68] sm:$0xff]
      %v476 = vld [vmem:[#allocation10 + $0x70] sm:$0xff]
      %v477 = vld [vmem:[#allocation10 + $0x78] sm:$0xff]
      %v478 = vld [vmem:[%s4] sm:$0x3]
      %v480 = vperm.slane %v478, 0
      %v481 = vperm.slane %v478, 1
      %v500 = vunpack.c.l.b16 %v462
      %v501 = vunpack.c.h.b16 %v462
      %v502 = vunpack.c.l.b16 %v463
      %v503 = vunpack.c.h.b16 %v463
      %v504 = vunpack.c.l.b16 %v464
      %v505 = vunpack.c.h.b16 %v464
      %v506 = vunpack.c.l.b16 %v465
      %v507 = vunpack.c.h.b16 %v465
      %v508 = vunpack.c.l.b16 %v466
      %v509 = vunpack.c.h.b16 %v466
      %v510 = vunpack.c.l.b16 %v467
      %v511 = vunpack.c.h.b16 %v467
      %v512 = vunpack.c.l.b16 %v468
      %v513 = vunpack.c.h.b16 %v468
      %v514 = vunpack.c.l.b16 %v469
      %v515 = vunpack.c.h.b16 %v469
      %v516 = vunpack.c.l.b16 %v470
      %v517 = vunpack.c.h.b16 %v470
      %v518 = vunpack.c.l.b16 %v471
      %v519 = vunpack.c.h.b16 %v471
      %v520 = vunpack.c.l.b16 %v472
      %v521 = vunpack.c.h.b16 %v472
      %v522 = vunpack.c.l.b16 %v473
      %v523 = vunpack.c.h.b16 %v473
      %v524 = vunpack.c.l.b16 %v474
      %v525 = vunpack.c.h.b16 %v474
      %v526 = vunpack.c.l.b16 %v475
      %v527 = vunpack.c.h.b16 %v475
      %v528 = vunpack.c.l.b16 %v476
      %v529 = vunpack.c.h.b16 %v476
      %v530 = vunpack.c.l.b16 %v477
      %v531 = vunpack.c.h.b16 %v477
      %v532 = vpack.c.b16 %v502, %v500
      %v533 = vpack.c.b16 %v503, %v501
      %v534 = vpack.c.b16 %v506, %v504
      %v535 = vpack.c.b16 %v507, %v505
      %v536 = vpack.c.b16 %v510, %v508
      %v537 = vpack.c.b16 %v511, %v509
      %v538 = vpack.c.b16 %v514, %v512
      %v539 = vpack.c.b16 %v515, %v513
      %v540 = vpack.c.b16 %v518, %v516
      %v541 = vpack.c.b16 %v519, %v517
      %v542 = vpack.c.b16 %v522, %v520
      %v543 = vpack.c.b16 %v523, %v521
      %v544 = vpack.c.b16 %v526, %v524
      %v545 = vpack.c.b16 %v527, %v525
      %v546 = vpack.c.b16 %v530, %v528
      %v547 = vpack.c.b16 %v531, %v529
      %564 = vmatpush.bf16.msra.mxu0 %v546
      %565 = vmatpush.bf16.msra.mxu0 %v544
      %566 = vmatpush.bf16.msra.mxu0 %v542
      %567 = vmatpush.bf16.msra.mxu0 %v540
      %568 = vmatpush.bf16.msra.mxu0 %v538
      %569 = vmatpush.bf16.msra.mxu0 %v536
      %570 = vmatpush.bf16.msra.mxu0 %v534
      %571 = vmatpush.bf16.msra.mxu0 %v532
      %572 = vmatmul.bf16.gmra.mxu0 %v446
      %v573 = vpop.f32.mrf.mxu0
      %v574 = vadd.f32 %v480, %v573
      %v575 = vpop.f32.mrf.mxu0
      %v576 = vadd.f32 %v480, %v575
      %577 = vmatmul.bf16.gmra.mxu0 %v447
      %v578 = vpop.f32.mrf.mxu0
      %v579 = vadd.f32 %v480, %v578
      %v580 = vpop.f32.mrf.mxu0
      %v581 = vadd.f32 %v480, %v580
      %582 = vmatmul.bf16.gmra.mxu0 %v448
      %v583 = vpop.f32.mrf.mxu0
      %v584 = vadd.f32 %v480, %v583
      %v585 = vpop.f32.mrf.mxu0
      %v586 = vadd.f32 %v480, %v585
      %587 = vmatmul.bf16.gmra.mxu0 %v449
      %v588 = vpop.f32.mrf.mxu0
      %v589 = vadd.f32 %v480, %v588
      %v590 = vpop.f32.mrf.mxu0
      %v591 = vadd.f32 %v480, %v590
      %592 = vmatmul.bf16.gmra.mxu0 %v450
      %v593 = vpop.f32.mrf.mxu0
      %v594 = vadd.f32 %v480, %v593
      %v595 = vpop.f32.mrf.mxu0
      %v596 = vadd.f32 %v480, %v595
      %597 = vmatmul.bf16.gmra.mxu0 %v451
      %v598 = vpop.f32.mrf.mxu0
      %v599 = vadd.f32 %v480, %v598
      %v600 = vpop.f32.mrf.mxu0
      %v601 = vadd.f32 %v480, %v600
      %602 = vmatmul.bf16.gmra.mxu0 %v452
      %v603 = vpop.f32.mrf.mxu0
      %v604 = vadd.f32 %v480, %v603
      %v605 = vpop.f32.mrf.mxu0
      %v606 = vadd.f32 %v480, %v605
      %607 = vmatmul.bf16.gmra.mxu0 %v453
      %v608 = vpop.f32.mrf.mxu0
      %v609 = vadd.f32 %v480, %v608
      %v610 = vpop.f32.mrf.mxu0
      %v611 = vadd.f32 %v480, %v610
      %612 = vmatmul.bf16.gmra.mxu0 %v454
      %v613 = vpop.f32.mrf.mxu0
      %v614 = vadd.f32 %v480, %v613
      %v615 = vpop.f32.mrf.mxu0
      %v616 = vadd.f32 %v480, %v615
      %617 = vmatmul.bf16.gmra.mxu0 %v455
      %v618 = vpop.f32.mrf.mxu0
      %v619 = vadd.f32 %v480, %v618
      %v620 = vpop.f32.mrf.mxu0
      %v621 = vadd.f32 %v480, %v620
      %622 = vmatmul.bf16.gmra.mxu0 %v456
      %v623 = vpop.f32.mrf.mxu0
      %v624 = vadd.f32 %v480, %v623
      %v625 = vpop.f32.mrf.mxu0
      %v626 = vadd.f32 %v480, %v625
      %627 = vmatmul.bf16.gmra.mxu0 %v457
      %v628 = vpop.f32.mrf.mxu0
      %v629 = vadd.f32 %v480, %v628
      %v630 = vpop.f32.mrf.mxu0
      %v631 = vadd.f32 %v480, %v630
      %632 = vmatmul.bf16.gmra.mxu0 %v458
      %v633 = vpop.f32.mrf.mxu0
      %v634 = vadd.f32 %v480, %v633
      %v635 = vpop.f32.mrf.mxu0
      %v636 = vadd.f32 %v480, %v635
      %637 = vmatmul.bf16.gmra.mxu0 %v459
      %v638 = vpop.f32.mrf.mxu0
      %v639 = vadd.f32 %v480, %v638
      %v640 = vpop.f32.mrf.mxu0
      %v641 = vadd.f32 %v480, %v640
      %642 = vmatmul.bf16.gmra.mxu0 %v460
      %v643 = vpop.f32.mrf.mxu0
      %v644 = vadd.f32 %v480, %v643
      %v645 = vpop.f32.mrf.mxu0
      %v646 = vadd.f32 %v480, %v645
      %647 = vmatmul.bf16.gmra.mxu0 %v461
      %v648 = vpop.f32.mrf.mxu0
      %v649 = vadd.f32 %v480, %v648
      %v650 = vpop.f32.mrf.mxu0
      %v651 = vadd.f32 %v480, %v650
      %652 = vdwg.mxu0
      %653 = vmatpush.bf16.msra.mxu0 %v547
      %654 = vmatpush.bf16.msra.mxu0 %v545
      %655 = vmatpush.bf16.msra.mxu0 %v543
      %656 = vmatpush.bf16.msra.mxu0 %v541
      %657 = vmatpush.bf16.msra.mxu0 %v539
      %658 = vmatpush.bf16.msra.mxu0 %v537
      %659 = vmatpush.bf16.msra.mxu0 %v535
      %660 = vmatpush.bf16.msra.mxu0 %v533
      %661 = vmatmul.bf16.gmra.mxu0 %v446
      %v662 = vpop.f32.mrf.mxu0
      %v663 = vadd.f32 %v481, %v662
      %v664 = vpop.f32.mrf.mxu0
      %v665 = vadd.f32 %v481, %v664
      %666 = vmatmul.bf16.gmra.mxu0 %v447
      %v667 = vpop.f32.mrf.mxu0
      %v668 = vadd.f32 %v481, %v667
      %v669 = vpop.f32.mrf.mxu0
      %v670 = vadd.f32 %v481, %v669
      %671 = vmatmul.bf16.gmra.mxu0 %v448
      %v672 = vpop.f32.mrf.mxu0
      %v673 = vadd.f32 %v481, %v672
      %v674 = vpop.f32.mrf.mxu0
      %v675 = vadd.f32 %v481, %v674
      %676 = vmatmul.bf16.gmra.mxu0 %v449
      %v677 = vpop.f32.mrf.mxu0
      %v678 = vadd.f32 %v481, %v677
      %v679 = vpop.f32.mrf.mxu0
      %v680 = vadd.f32 %v481, %v679
      %681 = vmatmul.bf16.gmra.mxu0 %v450
      %v682 = vpop.f32.mrf.mxu0
      %v683 = vadd.f32 %v481, %v682
      %v684 = vpop.f32.mrf.mxu0
      %v685 = vadd.f32 %v481, %v684
      %686 = vmatmul.bf16.gmra.mxu0 %v451
      %v687 = vpop.f32.mrf.mxu0
      %v688 = vadd.f32 %v481, %v687
      %v689 = vpop.f32.mrf.mxu0
      %v690 = vadd.f32 %v481, %v689
      %691 = vmatmul.bf16.gmra.mxu0 %v452
      %v692 = vpop.f32.mrf.mxu0
      %v693 = vadd.f32 %v481, %v692
      %v694 = vpop.f32.mrf.mxu0
      %v695 = vadd.f32 %v481, %v694
      %696 = vmatmul.bf16.gmra.mxu0 %v453
      %v697 = vpop.f32.mrf.mxu0
      %v698 = vadd.f32 %v481, %v697
      %v699 = vpop.f32.mrf.mxu0
      %v700 = vadd.f32 %v481, %v699
      %701 = vmatmul.bf16.gmra.mxu0 %v454
      %v702 = vpop.f32.mrf.mxu0
      %v703 = vadd.f32 %v481, %v702
      %v704 = vpop.f32.mrf.mxu0
      %v705 = vadd.f32 %v481, %v704
      %706 = vmatmul.bf16.gmra.mxu0 %v455
      %v707 = vpop.f32.mrf.mxu0
      %v708 = vadd.f32 %v481, %v707
      %v709 = vpop.f32.mrf.mxu0
      %v710 = vadd.f32 %v481, %v709
      %711 = vmatmul.bf16.gmra.mxu0 %v456
      %v712 = vpop.f32.mrf.mxu0
      %v713 = vadd.f32 %v481, %v712
      %v714 = vpop.f32.mrf.mxu0
      %v715 = vadd.f32 %v481, %v714
      %716 = vmatmul.bf16.gmra.mxu0 %v457
      %v717 = vpop.f32.mrf.mxu0
      %v718 = vadd.f32 %v481, %v717
      %v719 = vpop.f32.mrf.mxu0
      %v720 = vadd.f32 %v481, %v719
      %721 = vmatmul.bf16.gmra.mxu0 %v458
      %v722 = vpop.f32.mrf.mxu0
      %v723 = vadd.f32 %v481, %v722
      %v724 = vpop.f32.mrf.mxu0
      %v725 = vadd.f32 %v481, %v724
      %726 = vmatmul.bf16.gmra.mxu0 %v459
      %v727 = vpop.f32.mrf.mxu0
      %v728 = vadd.f32 %v481, %v727
      %v729 = vpop.f32.mrf.mxu0
      %v730 = vadd.f32 %v481, %v729
      %731 = vmatmul.bf16.gmra.mxu0 %v460
      %v732 = vpop.f32.mrf.mxu0
      %v733 = vadd.f32 %v481, %v732
      %v734 = vpop.f32.mrf.mxu0
      %v735 = vadd.f32 %v481, %v734
      %736 = vmatmul.bf16.gmra.mxu0 %v461
      %v737 = vpop.f32.mrf.mxu0
      %v738 = vadd.f32 %v481, %v737
      %v739 = vpop.f32.mrf.mxu0
      %v740 = vadd.f32 %v481, %v739
      %741 = vdwg.mxu0
      %v742 = vmax.f32 %v574, 0.0
      %v743 = vmax.f32 %v663, 0.0
      %v744 = vmax.f32 %v576, 0.0
      %v745 = vmax.f32 %v665, 0.0
      %v746 = vmax.f32 %v579, 0.0
      %v747 = vmax.f32 %v668, 0.0
      %v748 = vmax.f32 %v581, 0.0
      %v749 = vmax.f32 %v670, 0.0
      %v750 = vmax.f32 %v584, 0.0
      %v751 = vmax.f32 %v673, 0.0
      %v752 = vmax.f32 %v586, 0.0
      %v753 = vmax.f32 %v675, 0.0
      %v754 = vmax.f32 %v589, 0.0
      %v755 = vmax.f32 %v678, 0.0
      %v756 = vmax.f32 %v591, 0.0
      %v757 = vmax.f32 %v680, 0.0
      %v758 = vmax.f32 %v594, 0.0
      %v759 = vmax.f32 %v683, 0.0
      %v760 = vmax.f32 %v596, 0.0
      %v761 = vmax.f32 %v685, 0.0
      %v762 = vmax.f32 %v599, 0.0
      %v763 = vmax.f32 %v688, 0.0
      %v764 = vmax.f32 %v601, 0.0
      %v765 = vmax.f32 %v690, 0.0
      %v766 = vmax.f32 %v604, 0.0
      %v767 = vmax.f32 %v693, 0.0
      %v768 = vmax.f32 %v606, 0.0
      %v769 = vmax.f32 %v695, 0.0
      %v770 = vmax.f32 %v609, 0.0
      %v771 = vmax.f32 %v698, 0.0
      %v772 = vmax.f32 %v611, 0.0
      %v773 = vmax.f32 %v700, 0.0
      %v774 = vmax.f32 %v614, 0.0
      %v775 = vmax.f32 %v703, 0.0
      %v776 = vmax.f32 %v616, 0.0
      %v777 = vmax.f32 %v705, 0.0
      %v778 = vmax.f32 %v619, 0.0
      %v779 = vmax.f32 %v708, 0.0
      %v780 = vmax.f32 %v621, 0.0
      %v781 = vmax.f32 %v710, 0.0
      %v782 = vmax.f32 %v624, 0.0
      %v783 = vmax.f32 %v713, 0.0
      %v784 = vmax.f32 %v626, 0.0
      %v785 = vmax.f32 %v715, 0.0
      %v786 = vmax.f32 %v629, 0.0
      %v787 = vmax.f32 %v718, 0.0
      %v788 = vmax.f32 %v631, 0.0
      %v789 = vmax.f32 %v720, 0.0
      %v790 = vmax.f32 %v634, 0.0
      %v791 = vmax.f32 %v723, 0.0
      %v792 = vmax.f32 %v636, 0.0
      %v793 = vmax.f32 %v725, 0.0
      %v794 = vmax.f32 %v639, 0.0
      %v795 = vmax.f32 %v728, 0.0
      %v796 = vmax.f32 %v641, 0.0
      %v797 = vmax.f32 %v730, 0.0
      %v798 = vmax.f32 %v644, 0.0
      %v799 = vmax.f32 %v733, 0.0
      %v800 = vmax.f32 %v646, 0.0
      %v801 = vmax.f32 %v735, 0.0
      %v802 = vmax.f32 %v649, 0.0
      %v803 = vmax.f32 %v738, 0.0
      %v804 = vmax.f32 %v651, 0.0
      %v805 = vmax.f32 %v740, 0.0
      %v806 = vpack.c.bf16 %v743, %v742
      %v807 = vpack.c.bf16 %v745, %v744
      %v808 = vpack.c.bf16 %v747, %v746
      %v809 = vpack.c.bf16 %v749, %v748
      %v810 = vpack.c.bf16 %v751, %v750
      %v811 = vpack.c.bf16 %v753, %v752
      %v812 = vpack.c.bf16 %v755, %v754
      %v813 = vpack.c.bf16 %v757, %v756
      %v814 = vpack.c.bf16 %v759, %v758
      %v815 = vpack.c.bf16 %v761, %v760
      %v816 = vpack.c.bf16 %v763, %v762
      %v817 = vpack.c.bf16 %v765, %v764
      %v818 = vpack.c.bf16 %v767, %v766
      %v819 = vpack.c.bf16 %v769, %v768
      %v820 = vpack.c.bf16 %v771, %v770
      %v821 = vpack.c.bf16 %v773, %v772
      %v822 = vpack.c.bf16 %v775, %v774
      %v823 = vpack.c.bf16 %v777, %v776
      %v824 = vpack.c.bf16 %v779, %v778
      %v825 = vpack.c.bf16 %v781, %v780
      %v826 = vpack.c.bf16 %v783, %v782
      %v827 = vpack.c.bf16 %v785, %v784
      %v828 = vpack.c.bf16 %v787, %v786
      %v829 = vpack.c.bf16 %v789, %v788
      %v830 = vpack.c.bf16 %v791, %v790
      %v831 = vpack.c.bf16 %v793, %v792
      %v832 = vpack.c.bf16 %v795, %v794
      %v833 = vpack.c.bf16 %v797, %v796
      %v834 = vpack.c.bf16 %v799, %v798
      %v835 = vpack.c.bf16 %v801, %v800
      %v836 = vpack.c.bf16 %v803, %v802
      %v837 = vpack.c.bf16 %v805, %v804
      %838 = vst [vmem:[#allocation2] sm:$0xff] %v806
      %839 = vst [vmem:[#allocation2 + $0x8] sm:$0xff] %v807
      %840 = vst [vmem:[#allocation2 + $0x10] sm:$0xff] %v808
      %841 = vst [vmem:[#allocation2 + $0x18] sm:$0xff] %v809
      %842 = vst [vmem:[#allocation2 + $0x20] sm:$0xff] %v810
      %843 = vst [vmem:[#allocation2 + $0x28] sm:$0xff] %v811
      %844 = vst [vmem:[#allocation2 + $0x30] sm:$0xff] %v812
      %845 = vst [vmem:[#allocation2 + $0x38] sm:$0xff] %v813
      %846 = vst [vmem:[#allocation2 + $0x40] sm:$0xff] %v814
      %847 = vst [vmem:[#allocation2 + $0x48] sm:$0xff] %v815
      %848 = vst [vmem:[#allocation2 + $0x50] sm:$0xff] %v816
      %849 = vst [vmem:[#allocation2 + $0x58] sm:$0xff] %v817
      %850 = vst [vmem:[#allocation2 + $0x60] sm:$0xff] %v818
      %851 = vst [vmem:[#allocation2 + $0x68] sm:$0xff] %v819
      %852 = vst [vmem:[#allocation2 + $0x70] sm:$0xff] %v820
      %853 = vst [vmem:[#allocation2 + $0x78] sm:$0xff] %v821
      %854 = vst [vmem:[#allocation2 + $0x80] sm:$0xff] %v822
      %855 = vst [vmem:[#allocation2 + $0x88] sm:$0xff] %v823
      %856 = vst [vmem:[#allocation2 + $0x90] sm:$0xff] %v824
      %857 = vst [vmem:[#allocation2 + $0x98] sm:$0xff] %v825
      %858 = vst [vmem:[#allocation2 + $0xa0] sm:$0xff] %v826
      %859 = vst [vmem:[#allocation2 + $0xa8] sm:$0xff] %v827
      %860 = vst [vmem:[#allocation2 + $0xb0] sm:$0xff] %v828
      %861 = vst [vmem:[#allocation2 + $0xb8] sm:$0xff] %v829
      %862 = vst [vmem:[#allocation2 + $0xc0] sm:$0xff] %v830
      %863 = vst [vmem:[#allocation2 + $0xc8] sm:$0xff] %v831
      %864 = vst [vmem:[#allocation2 + $0xd0] sm:$0xff] %v832
      %865 = vst [vmem:[#allocation2 + $0xd8] sm:$0xff] %v833
      %866 = vst [vmem:[#allocation2 + $0xe0] sm:$0xff] %v834
      %867 = vst [vmem:[#allocation2 + $0xe8] sm:$0xff] %v835
      %868 = vst [vmem:[#allocation2 + $0xf0] sm:$0xff] %v836
      %869 = vst [vmem:[#allocation2 + $0xf8] sm:$0xff] %v837
      %870 = vst [vmem:[#allocation3] sm:$0xff] 0.0
      %871 = vst [vmem:[#allocation3 + $0x8] sm:$0xff] 0.0
      %872 = vst [vmem:[#allocation3 + $0x10] sm:$0xff] 0.0
      %873 = vst [vmem:[#allocation3 + $0x18] sm:$0xff] 0.0
      %874 = vst [vmem:[#allocation3 + $0x20] sm:$0xff] 0.0
      %875 = vst [vmem:[#allocation3 + $0x28] sm:$0xff] 0.0
      %876 = vst [vmem:[#allocation3 + $0x30] sm:$0xff] 0.0
      %877 = vst [vmem:[#allocation3 + $0x38] sm:$0xff] 0.0
      %878 = vst [vmem:[#allocation3 + $0x40] sm:$0xff] 0.0
      %879 = vst [vmem:[#allocation3 + $0x48] sm:$0xff] 0.0
      %880 = vst [vmem:[#allocation3 + $0x50] sm:$0xff] 0.0
      %881 = vst [vmem:[#allocation3 + $0x58] sm:$0xff] 0.0
      %882 = vst [vmem:[#allocation3 + $0x60] sm:$0xff] 0.0
      %883 = vst [vmem:[#allocation3 + $0x68] sm:$0xff] 0.0
      %884 = vst [vmem:[#allocation3 + $0x70] sm:$0xff] 0.0
      %885 = vst [vmem:[#allocation3 + $0x78] sm:$0xff] 0.0
      %886 = vst [vmem:[#allocation3 + $0x80] sm:$0xff] 0.0
      %887 = vst [vmem:[#allocation3 + $0x88] sm:$0xff] 0.0
      %888 = vst [vmem:[#allocation3 + $0x90] sm:$0xff] 0.0
      %889 = vst [vmem:[#allocation3 + $0x98] sm:$0xff] 0.0
      %890 = vst [vmem:[#allocation3 + $0xa0] sm:$0xff] 0.0
      %891 = vst [vmem:[#allocation3 + $0xa8] sm:$0xff] 0.0
      %892 = vst [vmem:[#allocation3 + $0xb0] sm:$0xff] 0.0
      %893 = vst [vmem:[#allocation3 + $0xb8] sm:$0xff] 0.0
      %894 = vst [vmem:[#allocation3 + $0xc0] sm:$0xff] 0.0
      %895 = vst [vmem:[#allocation3 + $0xc8] sm:$0xff] 0.0
      %896 = vst [vmem:[#allocation3 + $0xd0] sm:$0xff] 0.0
      %897 = vst [vmem:[#allocation3 + $0xd8] sm:$0xff] 0.0
      %898 = vst [vmem:[#allocation3 + $0xe0] sm:$0xff] 0.0
      %899 = vst [vmem:[#allocation3 + $0xe8] sm:$0xff] 0.0
      %900 = vst [vmem:[#allocation3 + $0xf0] sm:$0xff] 0.0
      %901 = vst [vmem:[#allocation3 + $0xf8] sm:$0xff] 0.0
    $region65: #{tpu_custom_call.1} parent=1 // pred_fallthru
      _
    %v902 = vld [vmem:[#allocation2] sm:$0xff]
    %v903 = vld [vmem:[#allocation2 + $0x8] sm:$0xff]
    %v904 = vld [vmem:[#allocation2 + $0x10] sm:$0xff]
    %v905 = vld [vmem:[#allocation2 + $0x18] sm:$0xff]
    %v906 = vld [vmem:[#allocation2 + $0x20] sm:$0xff]
    %v907 = vld [vmem:[#allocation2 + $0x28] sm:$0xff]
    %v908 = vld [vmem:[#allocation2 + $0x30] sm:$0xff]
    %v909 = vld [vmem:[#allocation2 + $0x38] sm:$0xff]
    %v910 = vld [vmem:[#allocation2 + $0x40] sm:$0xff]
    %v911 = vld [vmem:[#allocation2 + $0x48] sm:$0xff]
    %v912 = vld [vmem:[#allocation2 + $0x50] sm:$0xff]
    %v913 = vld [vmem:[#allocation2 + $0x58] sm:$0xff]
    %v914 = vld [vmem:[#allocation2 + $0x60] sm:$0xff]
    %v915 = vld [vmem:[#allocation2 + $0x68] sm:$0xff]
    %v916 = vld [vmem:[#allocation2 + $0x70] sm:$0xff]
    %v917 = vld [vmem:[#allocation2 + $0x78] sm:$0xff]
    %v918 = vld [vmem:[#allocation2 + $0x80] sm:$0xff]
    %v919 = vld [vmem:[#allocation2 + $0x88] sm:$0xff]
    %v920 = vld [vmem:[#allocation2 + $0x90] sm:$0xff]
    %v921 = vld [vmem:[#allocation2 + $0x98] sm:$0xff]
    %v922 = vld [vmem:[#allocation2 + $0xa0] sm:$0xff]
    %v923 = vld [vmem:[#allocation2 + $0xa8] sm:$0xff]
    %v924 = vld [vmem:[#allocation2 + $0xb0] sm:$0xff]
    %v925 = vld [vmem:[#allocation2 + $0xb8] sm:$0xff]
    %v926 = vld [vmem:[#allocation2 + $0xc0] sm:$0xff]
    %v927 = vld [vmem:[#allocation2 + $0xc8] sm:$0xff]
    %v928 = vld [vmem:[#allocation2 + $0xd0] sm:$0xff]
    %v929 = vld [vmem:[#allocation2 + $0xd8] sm:$0xff]
    %v930 = vld [vmem:[#allocation2 + $0xe0] sm:$0xff]
    %v931 = vld [vmem:[#allocation2 + $0xe8] sm:$0xff]
    %v932 = vld [vmem:[#allocation2 + $0xf0] sm:$0xff]
    %v933 = vld [vmem:[#allocation2 + $0xf8] sm:$0xff]
    %v934 = vld [vmem:[#allocation12] sm:$0xff]
    %v935 = vld [vmem:[#allocation12 + $0x8] sm:$0xff]
    %v936 = vld [vmem:[#allocation12 + $0x10] sm:$0xff]
    %v937 = vld [vmem:[#allocation12 + $0x18] sm:$0xff]
    %v938 = vld [vmem:[#allocation12 + $0x20] sm:$0xff]
    %v939 = vld [vmem:[#allocation12 + $0x28] sm:$0xff]
    %v940 = vld [vmem:[#allocation12 + $0x30] sm:$0xff]
    %v941 = vld [vmem:[#allocation12 + $0x38] sm:$0xff]
    %v942 = vld [vmem:[#allocation12 + $0x40] sm:$0xff]
    %v943 = vld [vmem:[#allocation12 + $0x48] sm:$0xff]
    %v944 = vld [vmem:[#allocation12 + $0x50] sm:$0xff]
    %v945 = vld [vmem:[#allocation12 + $0x58] sm:$0xff]
    %v946 = vld [vmem:[#allocation12 + $0x60] sm:$0xff]
    %v947 = vld [vmem:[#allocation12 + $0x68] sm:$0xff]
    %v948 = vld [vmem:[#allocation12 + $0x70] sm:$0xff]
    %v949 = vld [vmem:[#allocation12 + $0x78] sm:$0xff]
    %v950 = vld [vmem:[#allocation12 + $0x80] sm:$0xff]
    %v951 = vld [vmem:[#allocation12 + $0x88] sm:$0xff]
    %v952 = vld [vmem:[#allocation12 + $0x90] sm:$0xff]
    %v953 = vld [vmem:[#allocation12 + $0x98] sm:$0xff]
    %v954 = vld [vmem:[#allocation12 + $0xa0] sm:$0xff]
    %v955 = vld [vmem:[#allocation12 + $0xa8] sm:$0xff]
    %v956 = vld [vmem:[#allocation12 + $0xb0] sm:$0xff]
    %v957 = vld [vmem:[#allocation12 + $0xb8] sm:$0xff]
    %v958 = vld [vmem:[#allocation12 + $0xc0] sm:$0xff]
    %v959 = vld [vmem:[#allocation12 + $0xc8] sm:$0xff]
    %v960 = vld [vmem:[#allocation12 + $0xd0] sm:$0xff]
    %v961 = vld [vmem:[#allocation12 + $0xd8] sm:$0xff]
    %v962 = vld [vmem:[#allocation12 + $0xe0] sm:$0xff]
    %v963 = vld [vmem:[#allocation12 + $0xe8] sm:$0xff]
    %v964 = vld [vmem:[#allocation12 + $0xf0] sm:$0xff]
    %v965 = vld [vmem:[#allocation12 + $0xf8] sm:$0xff]
    %v966 = vld [vmem:[%s6] sm:$0x3]
    %v968 = vperm.slane %v966, 0
    %v969 = vperm.slane %v966, 1
    %v1004 = vunpack.c.l.b16 %v902
    %v1005 = vunpack.c.h.b16 %v902
    %v1006 = vunpack.c.l.b16 %v903
    %v1007 = vunpack.c.h.b16 %v903
    %v1008 = vunpack.c.l.b16 %v904
    %v1009 = vunpack.c.h.b16 %v904
    %v1010 = vunpack.c.l.b16 %v905
    %v1011 = vunpack.c.h.b16 %v905
    %v1012 = vunpack.c.l.b16 %v906
    %v1013 = vunpack.c.h.b16 %v906
    %v1014 = vunpack.c.l.b16 %v907
    %v1015 = vunpack.c.h.b16 %v907
    %v1016 = vunpack.c.l.b16 %v908
    %v1017 = vunpack.c.h.b16 %v908
    %v1018 = vunpack.c.l.b16 %v909
    %v1019 = vunpack.c.h.b16 %v909
    %v1020 = vunpack.c.l.b16 %v910
    %v1021 = vunpack.c.h.b16 %v910
    %v1022 = vunpack.c.l.b16 %v911
    %v1023 = vunpack.c.h.b16 %v911
    %v1024 = vunpack.c.l.b16 %v912
    %v1025 = vunpack.c.h.b16 %v912
    %v1026 = vunpack.c.l.b16 %v913
    %v1027 = vunpack.c.h.b16 %v913
    %v1028 = vunpack.c.l.b16 %v914
    %v1029 = vunpack.c.h.b16 %v914
    %v1030 = vunpack.c.l.b16 %v915
    %v1031 = vunpack.c.h.b16 %v915
    %v1032 = vunpack.c.l.b16 %v916
    %v1033 = vunpack.c.h.b16 %v916
    %v1034 = vunpack.c.l.b16 %v917
    %v1035 = vunpack.c.h.b16 %v917
    %v1036 = vunpack.c.l.b16 %v918
    %v1037 = vunpack.c.h.b16 %v918
    %v1038 = vunpack.c.l.b16 %v919
    %v1039 = vunpack.c.h.b16 %v919
    %v1040 = vunpack.c.l.b16 %v920
    %v1041 = vunpack.c.h.b16 %v920
    %v1042 = vunpack.c.l.b16 %v921
    %v1043 = vunpack.c.h.b16 %v921
    %v1044 = vunpack.c.l.b16 %v922
    %v1045 = vunpack.c.h.b16 %v922
    %v1046 = vunpack.c.l.b16 %v923
    %v1047 = vunpack.c.h.b16 %v923
    %v1048 = vunpack.c.l.b16 %v924
    %v1049 = vunpack.c.h.b16 %v924
    %v1050 = vunpack.c.l.b16 %v925
    %v1051 = vunpack.c.h.b16 %v925
    %v1052 = vunpack.c.l.b16 %v926
    %v1053 = vunpack.c.h.b16 %v926
    %v1054 = vunpack.c.l.b16 %v927
    %v1055 = vunpack.c.h.b16 %v927
    %v1056 = vunpack.c.l.b16 %v928
    %v1057 = vunpack.c.h.b16 %v928
    %v1058 = vunpack.c.l.b16 %v929
    %v1059 = vunpack.c.h.b16 %v929
    %v1060 = vunpack.c.l.b16 %v930
    %v1061 = vunpack.c.h.b16 %v930
    %v1062 = vunpack.c.l.b16 %v931
    %v1063 = vunpack.c.h.b16 %v931
    %v1064 = vunpack.c.l.b16 %v932
    %v1065 = vunpack.c.h.b16 %v932
    %v1066 = vunpack.c.l.b16 %v933
    %v1067 = vunpack.c.h.b16 %v933
    %v1068 = vpack.c.b16 %v1006, %v1004
    %v1069 = vpack.c.b16 %v1007, %v1005
    %v1070 = vpack.c.b16 %v1010, %v1008
    %v1071 = vpack.c.b16 %v1011, %v1009
    %v1072 = vpack.c.b16 %v1014, %v1012
    %v1073 = vpack.c.b16 %v1015, %v1013
    %v1074 = vpack.c.b16 %v1018, %v1016
    %v1075 = vpack.c.b16 %v1019, %v1017
    %v1076 = vpack.c.b16 %v1022, %v1020
    %v1077 = vpack.c.b16 %v1023, %v1021
    %v1078 = vpack.c.b16 %v1026, %v1024
    %v1079 = vpack.c.b16 %v1027, %v1025
    %v1080 = vpack.c.b16 %v1030, %v1028
    %v1081 = vpack.c.b16 %v1031, %v1029
    %v1082 = vpack.c.b16 %v1034, %v1032
    %v1083 = vpack.c.b16 %v1035, %v1033
    %v1084 = vpack.c.b16 %v1038, %v1036
    %v1085 = vpack.c.b16 %v1039, %v1037
    %v1086 = vpack.c.b16 %v1042, %v1040
    %v1087 = vpack.c.b16 %v1043, %v1041
    %v1088 = vpack.c.b16 %v1046, %v1044
    %v1089 = vpack.c.b16 %v1047, %v1045
    %v1090 = vpack.c.b16 %v1050, %v1048
    %v1091 = vpack.c.b16 %v1051, %v1049
    %v1092 = vpack.c.b16 %v1054, %v1052
    %v1093 = vpack.c.b16 %v1055, %v1053
    %v1094 = vpack.c.b16 %v1058, %v1056
    %v1095 = vpack.c.b16 %v1059, %v1057
    %v1096 = vpack.c.b16 %v1062, %v1060
    %v1097 = vpack.c.b16 %v1063, %v1061
    %v1098 = vpack.c.b16 %v1066, %v1064
    %v1099 = vpack.c.b16 %v1067, %v1065
    %v1164 = vunpack.c.l.b16 %v934
    %v1165 = vunpack.c.h.b16 %v934
    %v1166 = vunpack.c.l.b16 %v935
    %v1167 = vunpack.c.h.b16 %v935
    %v1168 = vunpack.c.l.b16 %v936
    %v1169 = vunpack.c.h.b16 %v936
    %v1170 = vunpack.c.l.b16 %v937
    %v1171 = vunpack.c.h.b16 %v937
    %v1172 = vunpack.c.l.b16 %v938
    %v1173 = vunpack.c.h.b16 %v938
    %v1174 = vunpack.c.l.b16 %v939
    %v1175 = vunpack.c.h.b16 %v939
    %v1176 = vunpack.c.l.b16 %v940
    %v1177 = vunpack.c.h.b16 %v940
    %v1178 = vunpack.c.l.b16 %v941
    %v1179 = vunpack.c.h.b16 %v941
    %v1180 = vunpack.c.l.b16 %v942
    %v1181 = vunpack.c.h.b16 %v942
    %v1182 = vunpack.c.l.b16 %v943
    %v1183 = vunpack.c.h.b16 %v943
    %v1184 = vunpack.c.l.b16 %v944
    %v1185 = vunpack.c.h.b16 %v944
    %v1186 = vunpack.c.l.b16 %v945
    %v1187 = vunpack.c.h.b16 %v945
    %v1188 = vunpack.c.l.b16 %v946
    %v1189 = vunpack.c.h.b16 %v946
    %v1190 = vunpack.c.l.b16 %v947
    %v1191 = vunpack.c.h.b16 %v947
    %v1192 = vunpack.c.l.b16 %v948
    %v1193 = vunpack.c.h.b16 %v948
    %v1194 = vunpack.c.l.b16 %v949
    %v1195 = vunpack.c.h.b16 %v949
    %v1196 = vunpack.c.l.b16 %v950
    %v1197 = vunpack.c.h.b16 %v950
    %v1198 = vunpack.c.l.b16 %v951
    %v1199 = vunpack.c.h.b16 %v951
    %v1200 = vunpack.c.l.b16 %v952
    %v1201 = vunpack.c.h.b16 %v952
    %v1202 = vunpack.c.l.b16 %v953
    %v1203 = vunpack.c.h.b16 %v953
    %v1204 = vunpack.c.l.b16 %v954
    %v1205 = vunpack.c.h.b16 %v954
    %v1206 = vunpack.c.l.b16 %v955
    %v1207 = vunpack.c.h.b16 %v955
    %v1208 = vunpack.c.l.b16 %v956
    %v1209 = vunpack.c.h.b16 %v956
    %v1210 = vunpack.c.l.b16 %v957
    %v1211 = vunpack.c.h.b16 %v957
    %v1212 = vunpack.c.l.b16 %v958
    %v1213 = vunpack.c.h.b16 %v958
    %v1214 = vunpack.c.l.b16 %v959
    %v1215 = vunpack.c.h.b16 %v959
    %v1216 = vunpack.c.l.b16 %v960
    %v1217 = vunpack.c.h.b16 %v960
    %v1218 = vunpack.c.l.b16 %v961
    %v1219 = vunpack.c.h.b16 %v961
    %v1220 = vunpack.c.l.b16 %v962
    %v1221 = vunpack.c.h.b16 %v962
    %v1222 = vunpack.c.l.b16 %v963
    %v1223 = vunpack.c.h.b16 %v963
    %v1224 = vunpack.c.l.b16 %v964
    %v1225 = vunpack.c.h.b16 %v964
    %v1226 = vunpack.c.l.b16 %v965
    %v1227 = vunpack.c.h.b16 %v965
    %v1228 = vpack.c.b16 %v1166, %v1164
    %v1229 = vpack.c.b16 %v1167, %v1165
    %v1230 = vpack.c.b16 %v1170, %v1168
    %v1231 = vpack.c.b16 %v1171, %v1169
    %v1232 = vpack.c.b16 %v1174, %v1172
    %v1233 = vpack.c.b16 %v1175, %v1173
    %v1234 = vpack.c.b16 %v1178, %v1176
    %v1235 = vpack.c.b16 %v1179, %v1177
    %v1236 = vpack.c.b16 %v1182, %v1180
    %v1237 = vpack.c.b16 %v1183, %v1181
    %v1238 = vpack.c.b16 %v1186, %v1184
    %v1239 = vpack.c.b16 %v1187, %v1185
    %v1240 = vpack.c.b16 %v1190, %v1188
    %v1241 = vpack.c.b16 %v1191, %v1189
    %v1242 = vpack.c.b16 %v1194, %v1192
    %v1243 = vpack.c.b16 %v1195, %v1193
    %v1244 = vpack.c.b16 %v1198, %v1196
    %v1245 = vpack.c.b16 %v1199, %v1197
    %v1246 = vpack.c.b16 %v1202, %v1200
    %v1247 = vpack.c.b16 %v1203, %v1201
    %v1248 = vpack.c.b16 %v1206, %v1204
    %v1249 = vpack.c.b16 %v1207, %v1205
    %v1250 = vpack.c.b16 %v1210, %v1208
    %v1251 = vpack.c.b16 %v1211, %v1209
    %v1252 = vpack.c.b16 %v1214, %v1212
    %v1253 = vpack.c.b16 %v1215, %v1213
    %v1254 = vpack.c.b16 %v1218, %v1216
    %v1255 = vpack.c.b16 %v1219, %v1217
    %v1256 = vpack.c.b16 %v1222, %v1220
    %v1257 = vpack.c.b16 %v1223, %v1221
    %v1258 = vpack.c.b16 %v1226, %v1224
    %v1259 = vpack.c.b16 %v1227, %v1225
    %1292 = vmatpush.bf16.msra.mxu0 %v1242
    %1293 = vmatpush.bf16.msra.mxu0 %v1240
    %1294 = vmatpush.bf16.msra.mxu0 %v1238
    %1295 = vmatpush.bf16.msra.mxu0 %v1236
    %1296 = vmatpush.bf16.msra.mxu0 %v1234
    %1297 = vmatpush.bf16.msra.mxu0 %v1232
    %1298 = vmatpush.bf16.msra.mxu0 %v1230
    %1299 = vmatpush.bf16.msra.mxu0 %v1228
    %1300 = vmatmul.bf16.gmra.mxu0 %v1068
    %v1301 = vpop.f32.mrf.mxu0
    %v1302 = vadd.f32 %v968, %v1301
    %v1303 = vpop.f32.mrf.mxu0
    %v1304 = vadd.f32 %v968, %v1303
    %1305 = vmatmul.bf16.gmra.mxu0 %v1070
    %v1306 = vpop.f32.mrf.mxu0
    %v1307 = vadd.f32 %v968, %v1306
    %v1308 = vpop.f32.mrf.mxu0
    %v1309 = vadd.f32 %v968, %v1308
    %1310 = vmatmul.bf16.gmra.mxu0 %v1072
    %v1311 = vpop.f32.mrf.mxu0
    %v1312 = vadd.f32 %v968, %v1311
    %v1313 = vpop.f32.mrf.mxu0
    %v1314 = vadd.f32 %v968, %v1313
    %1315 = vmatmul.bf16.gmra.mxu0 %v1074
    %v1316 = vpop.f32.mrf.mxu0
    %v1317 = vadd.f32 %v968, %v1316
    %v1318 = vpop.f32.mrf.mxu0
    %v1319 = vadd.f32 %v968, %v1318
    %1320 = vmatmul.bf16.gmra.mxu0 %v1076
    %v1321 = vpop.f32.mrf.mxu0
    %v1322 = vadd.f32 %v968, %v1321
    %v1323 = vpop.f32.mrf.mxu0
    %v1324 = vadd.f32 %v968, %v1323
    %1325 = vmatmul.bf16.gmra.mxu0 %v1078
    %v1326 = vpop.f32.mrf.mxu0
    %v1327 = vadd.f32 %v968, %v1326
    %v1328 = vpop.f32.mrf.mxu0
    %v1329 = vadd.f32 %v968, %v1328
    %1330 = vmatmul.bf16.gmra.mxu0 %v1080
    %v1331 = vpop.f32.mrf.mxu0
    %v1332 = vadd.f32 %v968, %v1331
    %v1333 = vpop.f32.mrf.mxu0
    %v1334 = vadd.f32 %v968, %v1333
    %1335 = vmatmul.bf16.gmra.mxu0 %v1082
    %v1336 = vpop.f32.mrf.mxu0
    %v1337 = vadd.f32 %v968, %v1336
    %v1338 = vpop.f32.mrf.mxu0
    %v1339 = vadd.f32 %v968, %v1338
    %1340 = vmatmul.bf16.gmra.mxu0 %v1084
    %v1341 = vpop.f32.mrf.mxu0
    %v1342 = vadd.f32 %v968, %v1341
    %v1343 = vpop.f32.mrf.mxu0
    %v1344 = vadd.f32 %v968, %v1343
    %1345 = vmatmul.bf16.gmra.mxu0 %v1086
    %v1346 = vpop.f32.mrf.mxu0
    %v1347 = vadd.f32 %v968, %v1346
    %v1348 = vpop.f32.mrf.mxu0
    %v1349 = vadd.f32 %v968, %v1348
    %1350 = vmatmul.bf16.gmra.mxu0 %v1088
    %v1351 = vpop.f32.mrf.mxu0
    %v1352 = vadd.f32 %v968, %v1351
    %v1353 = vpop.f32.mrf.mxu0
    %v1354 = vadd.f32 %v968, %v1353
    %1355 = vmatmul.bf16.gmra.mxu0 %v1090
    %v1356 = vpop.f32.mrf.mxu0
    %v1357 = vadd.f32 %v968, %v1356
    %v1358 = vpop.f32.mrf.mxu0
    %v1359 = vadd.f32 %v968, %v1358
    %1360 = vmatmul.bf16.gmra.mxu0 %v1092
    %v1361 = vpop.f32.mrf.mxu0
    %v1362 = vadd.f32 %v968, %v1361
    %v1363 = vpop.f32.mrf.mxu0
    %v1364 = vadd.f32 %v968, %v1363
    %1365 = vmatmul.bf16.gmra.mxu0 %v1094
    %v1366 = vpop.f32.mrf.mxu0
    %v1367 = vadd.f32 %v968, %v1366
    %v1368 = vpop.f32.mrf.mxu0
    %v1369 = vadd.f32 %v968, %v1368
    %1370 = vmatmul.bf16.gmra.mxu0 %v1096
    %v1371 = vpop.f32.mrf.mxu0
    %v1372 = vadd.f32 %v968, %v1371
    %v1373 = vpop.f32.mrf.mxu0
    %v1374 = vadd.f32 %v968, %v1373
    %1375 = vmatmul.bf16.gmra.mxu0 %v1098
    %v1376 = vpop.f32.mrf.mxu0
    %v1377 = vadd.f32 %v968, %v1376
    %v1378 = vpop.f32.mrf.mxu0
    %v1379 = vadd.f32 %v968, %v1378
    %1380 = vdwg.mxu0
    %1381 = vmatpush.bf16.msra.mxu0 %v1258
    %1382 = vmatpush.bf16.msra.mxu0 %v1256
    %1383 = vmatpush.bf16.msra.mxu0 %v1254
    %1384 = vmatpush.bf16.msra.mxu0 %v1252
    %1385 = vmatpush.bf16.msra.mxu0 %v1250
    %1386 = vmatpush.bf16.msra.mxu0 %v1248
    %1387 = vmatpush.bf16.msra.mxu0 %v1246
    %1388 = vmatpush.bf16.msra.mxu0 %v1244
    %1389 = vmatmul.bf16.gmra.mxu0 %v1069
    %v1390 = vpop.f32.mrf.mxu0
    %v1391 = vadd.f32 %v1302, %v1390
    %v1392 = vpop.f32.mrf.mxu0
    %v1393 = vadd.f32 %v1304, %v1392
    %1394 = vmatmul.bf16.gmra.mxu0 %v1071
    %v1395 = vpop.f32.mrf.mxu0
    %v1396 = vadd.f32 %v1307, %v1395
    %v1397 = vpop.f32.mrf.mxu0
    %v1398 = vadd.f32 %v1309, %v1397
    %1399 = vmatmul.bf16.gmra.mxu0 %v1073
    %v1400 = vpop.f32.mrf.mxu0
    %v1401 = vadd.f32 %v1312, %v1400
    %v1402 = vpop.f32.mrf.mxu0
    %v1403 = vadd.f32 %v1314, %v1402
    %1404 = vmatmul.bf16.gmra.mxu0 %v1075
    %v1405 = vpop.f32.mrf.mxu0
    %v1406 = vadd.f32 %v1317, %v1405
    %v1407 = vpop.f32.mrf.mxu0
    %v1408 = vadd.f32 %v1319, %v1407
    %1409 = vmatmul.bf16.gmra.mxu0 %v1077
    %v1410 = vpop.f32.mrf.mxu0
    %v1411 = vadd.f32 %v1322, %v1410
    %v1412 = vpop.f32.mrf.mxu0
    %v1413 = vadd.f32 %v1324, %v1412
    %1414 = vmatmul.bf16.gmra.mxu0 %v1079
    %v1415 = vpop.f32.mrf.mxu0
    %v1416 = vadd.f32 %v1327, %v1415
    %v1417 = vpop.f32.mrf.mxu0
    %v1418 = vadd.f32 %v1329, %v1417
    %1419 = vmatmul.bf16.gmra.mxu0 %v1081
    %v1420 = vpop.f32.mrf.mxu0
    %v1421 = vadd.f32 %v1332, %v1420
    %v1422 = vpop.f32.mrf.mxu0
    %v1423 = vadd.f32 %v1334, %v1422
    %1424 = vmatmul.bf16.gmra.mxu0 %v1083
    %v1425 = vpop.f32.mrf.mxu0
    %v1426 = vadd.f32 %v1337, %v1425
    %v1427 = vpop.f32.mrf.mxu0
    %v1428 = vadd.f32 %v1339, %v1427
    %1429 = vmatmul.bf16.gmra.mxu0 %v1085
    %v1430 = vpop.f32.mrf.mxu0
    %v1431 = vadd.f32 %v1342, %v1430
    %v1432 = vpop.f32.mrf.mxu0
    %v1433 = vadd.f32 %v1344, %v1432
    %1434 = vmatmul.bf16.gmra.mxu0 %v1087
    %v1435 = vpop.f32.mrf.mxu0
    %v1436 = vadd.f32 %v1347, %v1435
    %v1437 = vpop.f32.mrf.mxu0
    %v1438 = vadd.f32 %v1349, %v1437
    %1439 = vmatmul.bf16.gmra.mxu0 %v1089
    %v1440 = vpop.f32.mrf.mxu0
    %v1441 = vadd.f32 %v1352, %v1440
    %v1442 = vpop.f32.mrf.mxu0
    %v1443 = vadd.f32 %v1354, %v1442
    %1444 = vmatmul.bf16.gmra.mxu0 %v1091
    %v1445 = vpop.f32.mrf.mxu0
    %v1446 = vadd.f32 %v1357, %v1445
    %v1447 = vpop.f32.mrf.mxu0
    %v1448 = vadd.f32 %v1359, %v1447
    %1449 = vmatmul.bf16.gmra.mxu0 %v1093
    %v1450 = vpop.f32.mrf.mxu0
    %v1451 = vadd.f32 %v1362, %v1450
    %v1452 = vpop.f32.mrf.mxu0
    %v1453 = vadd.f32 %v1364, %v1452
    %1454 = vmatmul.bf16.gmra.mxu0 %v1095
    %v1455 = vpop.f32.mrf.mxu0
    %v1456 = vadd.f32 %v1367, %v1455
    %v1457 = vpop.f32.mrf.mxu0
    %v1458 = vadd.f32 %v1369, %v1457
    %1459 = vmatmul.bf16.gmra.mxu0 %v1097
    %v1460 = vpop.f32.mrf.mxu0
    %v1461 = vadd.f32 %v1372, %v1460
    %v1462 = vpop.f32.mrf.mxu0
    %v1463 = vadd.f32 %v1374, %v1462
    %1464 = vmatmul.bf16.gmra.mxu0 %v1099
    %v1465 = vpop.f32.mrf.mxu0
    %v1466 = vadd.f32 %v1377, %v1465
    %v1467 = vpop.f32.mrf.mxu0
    %v1468 = vadd.f32 %v1379, %v1467
    %1469 = vdwg.mxu0
    %1470 = vmatpush.bf16.msra.mxu0 %v1243
    %1471 = vmatpush.bf16.msra.mxu0 %v1241
    %1472 = vmatpush.bf16.msra.mxu0 %v1239
    %1473 = vmatpush.bf16.msra.mxu0 %v1237
    %1474 = vmatpush.bf16.msra.mxu0 %v1235
    %1475 = vmatpush.bf16.msra.mxu0 %v1233
    %1476 = vmatpush.bf16.msra.mxu0 %v1231
    %1477 = vmatpush.bf16.msra.mxu0 %v1229
    %1478 = vmatmul.bf16.gmra.mxu0 %v1068
    %v1479 = vpop.f32.mrf.mxu0
    %v1480 = vadd.f32 %v969, %v1479
    %v1481 = vpop.f32.mrf.mxu0
    %v1482 = vadd.f32 %v969, %v1481
    %1483 = vmatmul.bf16.gmra.mxu0 %v1070
    %v1484 = vpop.f32.mrf.mxu0
    %v1485 = vadd.f32 %v969, %v1484
    %v1486 = vpop.f32.mrf.mxu0
    %v1487 = vadd.f32 %v969, %v1486
    %1488 = vmatmul.bf16.gmra.mxu0 %v1072
    %v1489 = vpop.f32.mrf.mxu0
    %v1490 = vadd.f32 %v969, %v1489
    %v1491 = vpop.f32.mrf.mxu0
    %v1492 = vadd.f32 %v969, %v1491
    %1493 = vmatmul.bf16.gmra.mxu0 %v1074
    %v1494 = vpop.f32.mrf.mxu0
    %v1495 = vadd.f32 %v969, %v1494
    %v1496 = vpop.f32.mrf.mxu0
    %v1497 = vadd.f32 %v969, %v1496
    %1498 = vmatmul.bf16.gmra.mxu0 %v1076
    %v1499 = vpop.f32.mrf.mxu0
    %v1500 = vadd.f32 %v969, %v1499
    %v1501 = vpop.f32.mrf.mxu0
    %v1502 = vadd.f32 %v969, %v1501
    %1503 = vmatmul.bf16.gmra.mxu0 %v1078
    %v1504 = vpop.f32.mrf.mxu0
    %v1505 = vadd.f32 %v969, %v1504
    %v1506 = vpop.f32.mrf.mxu0
    %v1507 = vadd.f32 %v969, %v1506
    %1508 = vmatmul.bf16.gmra.mxu0 %v1080
    %v1509 = vpop.f32.mrf.mxu0
    %v1510 = vadd.f32 %v969, %v1509
    %v1511 = vpop.f32.mrf.mxu0
    %v1512 = vadd.f32 %v969, %v1511
    %1513 = vmatmul.bf16.gmra.mxu0 %v1082
    %v1514 = vpop.f32.mrf.mxu0
    %v1515 = vadd.f32 %v969, %v1514
    %v1516 = vpop.f32.mrf.mxu0
    %v1517 = vadd.f32 %v969, %v1516
    %1518 = vmatmul.bf16.gmra.mxu0 %v1084
    %v1519 = vpop.f32.mrf.mxu0
    %v1520 = vadd.f32 %v969, %v1519
    %v1521 = vpop.f32.mrf.mxu0
    %v1522 = vadd.f32 %v969, %v1521
    %1523 = vmatmul.bf16.gmra.mxu0 %v1086
    %v1524 = vpop.f32.mrf.mxu0
    %v1525 = vadd.f32 %v969, %v1524
    %v1526 = vpop.f32.mrf.mxu0
    %v1527 = vadd.f32 %v969, %v1526
    %1528 = vmatmul.bf16.gmra.mxu0 %v1088
    %v1529 = vpop.f32.mrf.mxu0
    %v1530 = vadd.f32 %v969, %v1529
    %v1531 = vpop.f32.mrf.mxu0
    %v1532 = vadd.f32 %v969, %v1531
    %1533 = vmatmul.bf16.gmra.mxu0 %v1090
    %v1534 = vpop.f32.mrf.mxu0
    %v1535 = vadd.f32 %v969, %v1534
    %v1536 = vpop.f32.mrf.mxu0
    %v1537 = vadd.f32 %v969, %v1536
    %1538 = vmatmul.bf16.gmra.mxu0 %v1092
    %v1539 = vpop.f32.mrf.mxu0
    %v1540 = vadd.f32 %v969, %v1539
    %v1541 = vpop.f32.mrf.mxu0
    %v1542 = vadd.f32 %v969, %v1541
    %1543 = vmatmul.bf16.gmra.mxu0 %v1094
    %v1544 = vpop.f32.mrf.mxu0
    %v1545 = vadd.f32 %v969, %v1544
    %v1546 = vpop.f32.mrf.mxu0
    %v1547 = vadd.f32 %v969, %v1546
    %1548 = vmatmul.bf16.gmra.mxu0 %v1096
    %v1549 = vpop.f32.mrf.mxu0
    %v1550 = vadd.f32 %v969, %v1549
    %v1551 = vpop.f32.mrf.mxu0
    %v1552 = vadd.f32 %v969, %v1551
    %1553 = vmatmul.bf16.gmra.mxu0 %v1098
    %v1554 = vpop.f32.mrf.mxu0
    %v1555 = vadd.f32 %v969, %v1554
    %v1556 = vpop.f32.mrf.mxu0
    %v1557 = vadd.f32 %v969, %v1556
    %1558 = vdwg.mxu0
    %1559 = vmatpush.bf16.msra.mxu0 %v1259
    %1560 = vmatpush.bf16.msra.mxu0 %v1257
    %1561 = vmatpush.bf16.msra.mxu0 %v1255
    %1562 = vmatpush.bf16.msra.mxu0 %v1253
    %1563 = vmatpush.bf16.msra.mxu0 %v1251
    %1564 = vmatpush.bf16.msra.mxu0 %v1249
    %1565 = vmatpush.bf16.msra.mxu0 %v1247
    %1566 = vmatpush.bf16.msra.mxu0 %v1245
    %1567 = vmatmul.bf16.gmra.mxu0 %v1069
    %v1568 = vpop.f32.mrf.mxu0
    %v1569 = vadd.f32 %v1480, %v1568
    %v1570 = vpop.f32.mrf.mxu0
    %v1571 = vadd.f32 %v1482, %v1570
    %1572 = vmatmul.bf16.gmra.mxu0 %v1071
    %v1573 = vpop.f32.mrf.mxu0
    %v1574 = vadd.f32 %v1485, %v1573
    %v1575 = vpop.f32.mrf.mxu0
    %v1576 = vadd.f32 %v1487, %v1575
    %1577 = vmatmul.bf16.gmra.mxu0 %v1073
    %v1578 = vpop.f32.mrf.mxu0
    %v1579 = vadd.f32 %v1490, %v1578
    %v1580 = vpop.f32.mrf.mxu0
    %v1581 = vadd.f32 %v1492, %v1580
    %1582 = vmatmul.bf16.gmra.mxu0 %v1075
    %v1583 = vpop.f32.mrf.mxu0
    %v1584 = vadd.f32 %v1495, %v1583
    %v1585 = vpop.f32.mrf.mxu0
    %v1586 = vadd.f32 %v1497, %v1585
    %1587 = vmatmul.bf16.gmra.mxu0 %v1077
    %v1588 = vpop.f32.mrf.mxu0
    %v1589 = vadd.f32 %v1500, %v1588
    %v1590 = vpop.f32.mrf.mxu0
    %v1591 = vadd.f32 %v1502, %v1590
    %1592 = vmatmul.bf16.gmra.mxu0 %v1079
    %v1593 = vpop.f32.mrf.mxu0
    %v1594 = vadd.f32 %v1505, %v1593
    %v1595 = vpop.f32.mrf.mxu0
    %v1596 = vadd.f32 %v1507, %v1595
    %1597 = vmatmul.bf16.gmra.mxu0 %v1081
    %v1598 = vpop.f32.mrf.mxu0
    %v1599 = vadd.f32 %v1510, %v1598
    %v1600 = vpop.f32.mrf.mxu0
    %v1601 = vadd.f32 %v1512, %v1600
    %1602 = vmatmul.bf16.gmra.mxu0 %v1083
    %v1603 = vpop.f32.mrf.mxu0
    %v1604 = vadd.f32 %v1515, %v1603
    %v1605 = vpop.f32.mrf.mxu0
    %v1606 = vadd.f32 %v1517, %v1605
    %1607 = vmatmul.bf16.gmra.mxu0 %v1085
    %v1608 = vpop.f32.mrf.mxu0
    %v1609 = vadd.f32 %v1520, %v1608
    %v1610 = vpop.f32.mrf.mxu0
    %v1611 = vadd.f32 %v1522, %v1610
    %1612 = vmatmul.bf16.gmra.mxu0 %v1087
    %v1613 = vpop.f32.mrf.mxu0
    %v1614 = vadd.f32 %v1525, %v1613
    %v1615 = vpop.f32.mrf.mxu0
    %v1616 = vadd.f32 %v1527, %v1615
    %1617 = vmatmul.bf16.gmra.mxu0 %v1089
    %v1618 = vpop.f32.mrf.mxu0
    %v1619 = vadd.f32 %v1530, %v1618
    %v1620 = vpop.f32.mrf.mxu0
    %v1621 = vadd.f32 %v1532, %v1620
    %1622 = vmatmul.bf16.gmra.mxu0 %v1091
    %v1623 = vpop.f32.mrf.mxu0
    %v1624 = vadd.f32 %v1535, %v1623
    %v1625 = vpop.f32.mrf.mxu0
    %v1626 = vadd.f32 %v1537, %v1625
    %1627 = vmatmul.bf16.gmra.mxu0 %v1093
    %v1628 = vpop.f32.mrf.mxu0
    %v1629 = vadd.f32 %v1540, %v1628
    %v1630 = vpop.f32.mrf.mxu0
    %v1631 = vadd.f32 %v1542, %v1630
    %1632 = vmatmul.bf16.gmra.mxu0 %v1095
    %v1633 = vpop.f32.mrf.mxu0
    %v1634 = vadd.f32 %v1545, %v1633
    %v1635 = vpop.f32.mrf.mxu0
    %v1636 = vadd.f32 %v1547, %v1635
    %1637 = vmatmul.bf16.gmra.mxu0 %v1097
    %v1638 = vpop.f32.mrf.mxu0
    %v1639 = vadd.f32 %v1550, %v1638
    %v1640 = vpop.f32.mrf.mxu0
    %v1641 = vadd.f32 %v1552, %v1640
    %1642 = vmatmul.bf16.gmra.mxu0 %v1099
    %v1643 = vpop.f32.mrf.mxu0
    %v1644 = vadd.f32 %v1555, %v1643
    %v1645 = vpop.f32.mrf.mxu0
    %v1646 = vadd.f32 %v1557, %v1645
    %1647 = vdwg.mxu0
    %v1648 = vmax.f32 %v1391, 0.0
    %v1649 = vmax.f32 %v1569, 0.0
    %v1650 = vmax.f32 %v1393, 0.0
    %v1651 = vmax.f32 %v1571, 0.0
    %v1652 = vmax.f32 %v1396, 0.0
    %v1653 = vmax.f32 %v1574, 0.0
    %v1654 = vmax.f32 %v1398, 0.0
    %v1655 = vmax.f32 %v1576, 0.0
    %v1656 = vmax.f32 %v1401, 0.0
    %v1657 = vmax.f32 %v1579, 0.0
    %v1658 = vmax.f32 %v1403, 0.0
    %v1659 = vmax.f32 %v1581, 0.0
    %v1660 = vmax.f32 %v1406, 0.0
    %v1661 = vmax.f32 %v1584, 0.0
    %v1662 = vmax.f32 %v1408, 0.0
    %v1663 = vmax.f32 %v1586, 0.0
    %v1664 = vmax.f32 %v1411, 0.0
    %v1665 = vmax.f32 %v1589, 0.0
    %v1666 = vmax.f32 %v1413, 0.0
    %v1667 = vmax.f32 %v1591, 0.0
    %v1668 = vmax.f32 %v1416, 0.0
    %v1669 = vmax.f32 %v1594, 0.0
    %v1670 = vmax.f32 %v1418, 0.0
    %v1671 = vmax.f32 %v1596, 0.0
    %v1672 = vmax.f32 %v1421, 0.0
    %v1673 = vmax.f32 %v1599, 0.0
    %v1674 = vmax.f32 %v1423, 0.0
    %v1675 = vmax.f32 %v1601, 0.0
    %v1676 = vmax.f32 %v1426, 0.0
    %v1677 = vmax.f32 %v1604, 0.0
    %v1678 = vmax.f32 %v1428, 0.0
    %v1679 = vmax.f32 %v1606, 0.0
    %v1680 = vmax.f32 %v1431, 0.0
    %v1681 = vmax.f32 %v1609, 0.0
    %v1682 = vmax.f32 %v1433, 0.0
    %v1683 = vmax.f32 %v1611, 0.0
    %v1684 = vmax.f32 %v1436, 0.0
    %v1685 = vmax.f32 %v1614, 0.0
    %v1686 = vmax.f32 %v1438, 0.0
    %v1687 = vmax.f32 %v1616, 0.0
    %v1688 = vmax.f32 %v1441, 0.0
    %v1689 = vmax.f32 %v1619, 0.0
    %v1690 = vmax.f32 %v1443, 0.0
    %v1691 = vmax.f32 %v1621, 0.0
    %v1692 = vmax.f32 %v1446, 0.0
    %v1693 = vmax.f32 %v1624, 0.0
    %v1694 = vmax.f32 %v1448, 0.0
    %v1695 = vmax.f32 %v1626, 0.0
    %v1696 = vmax.f32 %v1451, 0.0
    %v1697 = vmax.f32 %v1629, 0.0
    %v1698 = vmax.f32 %v1453, 0.0
    %v1699 = vmax.f32 %v1631, 0.0
    %v1700 = vmax.f32 %v1456, 0.0
    %v1701 = vmax.f32 %v1634, 0.0
    %v1702 = vmax.f32 %v1458, 0.0
    %v1703 = vmax.f32 %v1636, 0.0
    %v1704 = vmax.f32 %v1461, 0.0
    %v1705 = vmax.f32 %v1639, 0.0
    %v1706 = vmax.f32 %v1463, 0.0
    %v1707 = vmax.f32 %v1641, 0.0
    %v1708 = vmax.f32 %v1466, 0.0
    %v1709 = vmax.f32 %v1644, 0.0
    %v1710 = vmax.f32 %v1468, 0.0
    %v1711 = vmax.f32 %v1646, 0.0
    %v1712 = vpack.c.bf16 %v1650, %v1648
    %v1713 = vpack.c.bf16 %v1651, %v1649
    %v1714 = vpack.c.bf16 %v1654, %v1652
    %v1715 = vpack.c.bf16 %v1655, %v1653
    %v1716 = vpack.c.bf16 %v1658, %v1656
    %v1717 = vpack.c.bf16 %v1659, %v1657
    %v1718 = vpack.c.bf16 %v1662, %v1660
    %v1719 = vpack.c.bf16 %v1663, %v1661
    %v1720 = vpack.c.bf16 %v1666, %v1664
    %v1721 = vpack.c.bf16 %v1667, %v1665
    %v1722 = vpack.c.bf16 %v1670, %v1668
    %v1723 = vpack.c.bf16 %v1671, %v1669
    %v1724 = vpack.c.bf16 %v1674, %v1672
    %v1725 = vpack.c.bf16 %v1675, %v1673
    %v1726 = vpack.c.bf16 %v1678, %v1676
    %v1727 = vpack.c.bf16 %v1679, %v1677
    %v1728 = vpack.c.bf16 %v1682, %v1680
    %v1729 = vpack.c.bf16 %v1683, %v1681
    %v1730 = vpack.c.bf16 %v1686, %v1684
    %v1731 = vpack.c.bf16 %v1687, %v1685
    %v1732 = vpack.c.bf16 %v1690, %v1688
    %v1733 = vpack.c.bf16 %v1691, %v1689
    %v1734 = vpack.c.bf16 %v1694, %v1692
    %v1735 = vpack.c.bf16 %v1695, %v1693
    %v1736 = vpack.c.bf16 %v1698, %v1696
    %v1737 = vpack.c.bf16 %v1699, %v1697
    %v1738 = vpack.c.bf16 %v1702, %v1700
    %v1739 = vpack.c.bf16 %v1703, %v1701
    %v1740 = vpack.c.bf16 %v1706, %v1704
    %v1741 = vpack.c.bf16 %v1707, %v1705
    %v1742 = vpack.c.bf16 %v1710, %v1708
    %v1743 = vpack.c.bf16 %v1711, %v1709
    %v1744 = vld [vmem:[#allocation3] sm:$0xff]
    %v1745 = vld [vmem:[#allocation3 + $0x8] sm:$0xff]
    %v1746 = vld [vmem:[#allocation3 + $0x10] sm:$0xff]
    %v1747 = vld [vmem:[#allocation3 + $0x18] sm:$0xff]
    %v1748 = vld [vmem:[#allocation3 + $0x20] sm:$0xff]
    %v1749 = vld [vmem:[#allocation3 + $0x28] sm:$0xff]
    %v1750 = vld [vmem:[#allocation3 + $0x30] sm:$0xff]
    %v1751 = vld [vmem:[#allocation3 + $0x38] sm:$0xff]
    %v1752 = vld [vmem:[#allocation3 + $0x40] sm:$0xff]
    %v1753 = vld [vmem:[#allocation3 + $0x48] sm:$0xff]
    %v1754 = vld [vmem:[#allocation3 + $0x50] sm:$0xff]
    %v1755 = vld [vmem:[#allocation3 + $0x58] sm:$0xff]
    %v1756 = vld [vmem:[#allocation3 + $0x60] sm:$0xff]
    %v1757 = vld [vmem:[#allocation3 + $0x68] sm:$0xff]
    %v1758 = vld [vmem:[#allocation3 + $0x70] sm:$0xff]
    %v1759 = vld [vmem:[#allocation3 + $0x78] sm:$0xff]
    %v1760 = vld [vmem:[#allocation3 + $0x80] sm:$0xff]
    %v1761 = vld [vmem:[#allocation3 + $0x88] sm:$0xff]
    %v1762 = vld [vmem:[#allocation3 + $0x90] sm:$0xff]
    %v1763 = vld [vmem:[#allocation3 + $0x98] sm:$0xff]
    %v1764 = vld [vmem:[#allocation3 + $0xa0] sm:$0xff]
    %v1765 = vld [vmem:[#allocation3 + $0xa8] sm:$0xff]
    %v1766 = vld [vmem:[#allocation3 + $0xb0] sm:$0xff]
    %v1767 = vld [vmem:[#allocation3 + $0xb8] sm:$0xff]
    %v1768 = vld [vmem:[#allocation3 + $0xc0] sm:$0xff]
    %v1769 = vld [vmem:[#allocation3 + $0xc8] sm:$0xff]
    %v1770 = vld [vmem:[#allocation3 + $0xd0] sm:$0xff]
    %v1771 = vld [vmem:[#allocation3 + $0xd8] sm:$0xff]
    %v1772 = vld [vmem:[#allocation3 + $0xe0] sm:$0xff]
    %v1773 = vld [vmem:[#allocation3 + $0xe8] sm:$0xff]
    %v1774 = vld [vmem:[#allocation3 + $0xf0] sm:$0xff]
    %v1775 = vld [vmem:[#allocation3 + $0xf8] sm:$0xff]
    %v1776 = vld [vmem:[#allocation13] sm:$0xf]
    %v1777 = vld [vmem:[#allocation13 + $0x4] sm:$0xf]
    %v1778 = vld [vmem:[#allocation13 + $0x8] sm:$0xf]
    %v1779 = vld [vmem:[#allocation13 + $0xc] sm:$0xf]
    %v1780 = vld [vmem:[#allocation13 + $0x10] sm:$0xf]
    %v1781 = vld [vmem:[#allocation13 + $0x14] sm:$0xf]
    %v1782 = vld [vmem:[#allocation13 + $0x18] sm:$0xf]
    %v1783 = vld [vmem:[#allocation13 + $0x1c] sm:$0xf]
    %v1784 = vld [vmem:[#allocation13 + $0x20] sm:$0xf]
    %v1785 = vld [vmem:[#allocation13 + $0x24] sm:$0xf]
    %v1786 = vld [vmem:[#allocation13 + $0x28] sm:$0xf]
    %v1787 = vld [vmem:[#allocation13 + $0x2c] sm:$0xf]
    %v1788 = vld [vmem:[#allocation13 + $0x30] sm:$0xf]
    %v1789 = vld [vmem:[#allocation13 + $0x34] sm:$0xf]
    %v1790 = vld [vmem:[#allocation13 + $0x38] sm:$0xf]
    %v1791 = vld [vmem:[#allocation13 + $0x3c] sm:$0xf]
    %v1792 = vld [vmem:[#allocation13 + $0x40] sm:$0xf]
    %v1793 = vld [vmem:[#allocation13 + $0x44] sm:$0xf]
    %v1794 = vld [vmem:[#allocation13 + $0x48] sm:$0xf]
    %v1795 = vld [vmem:[#allocation13 + $0x4c] sm:$0xf]
    %v1796 = vld [vmem:[#allocation13 + $0x50] sm:$0xf]
    %v1797 = vld [vmem:[#allocation13 + $0x54] sm:$0xf]
    %v1798 = vld [vmem:[#allocation13 + $0x58] sm:$0xf]
    %v1799 = vld [vmem:[#allocation13 + $0x5c] sm:$0xf]
    %v1800 = vld [vmem:[#allocation13 + $0x60] sm:$0xf]
    %v1801 = vld [vmem:[#allocation13 + $0x64] sm:$0xf]
    %v1802 = vld [vmem:[#allocation13 + $0x68] sm:$0xf]
    %v1803 = vld [vmem:[#allocation13 + $0x6c] sm:$0xf]
    %v1804 = vld [vmem:[#allocation13 + $0x70] sm:$0xf]
    %v1805 = vld [vmem:[#allocation13 + $0x74] sm:$0xf]
    %v1806 = vld [vmem:[#allocation13 + $0x78] sm:$0xf]
    %v1807 = vld [vmem:[#allocation13 + $0x7c] sm:$0xf]
    %v1840 = vunpack.c.l.b16 %v1776
    %v1841 = vunpack.c.l.b16 %v1777
    %v1842 = vunpack.c.l.b16 %v1778
    %v1843 = vunpack.c.l.b16 %v1779
    %v1844 = vunpack.c.l.b16 %v1780
    %v1845 = vunpack.c.l.b16 %v1781
    %v1846 = vunpack.c.l.b16 %v1782
    %v1847 = vunpack.c.l.b16 %v1783
    %v1848 = vunpack.c.l.b16 %v1784
    %v1849 = vunpack.c.l.b16 %v1785
    %v1850 = vunpack.c.l.b16 %v1786
    %v1851 = vunpack.c.l.b16 %v1787
    %v1852 = vunpack.c.l.b16 %v1788
    %v1853 = vunpack.c.l.b16 %v1789
    %v1854 = vunpack.c.l.b16 %v1790
    %v1855 = vunpack.c.l.b16 %v1791
    %v1856 = vunpack.c.l.b16 %v1792
    %v1857 = vunpack.c.l.b16 %v1793
    %v1858 = vunpack.c.l.b16 %v1794
    %v1859 = vunpack.c.l.b16 %v1795
    %v1860 = vunpack.c.l.b16 %v1796
    %v1861 = vunpack.c.l.b16 %v1797
    %v1862 = vunpack.c.l.b16 %v1798
    %v1863 = vunpack.c.l.b16 %v1799
    %v1864 = vunpack.c.l.b16 %v1800
    %v1865 = vunpack.c.l.b16 %v1801
    %v1866 = vunpack.c.l.b16 %v1802
    %v1867 = vunpack.c.l.b16 %v1803
    %v1868 = vunpack.c.l.b16 %v1804
    %v1869 = vunpack.c.l.b16 %v1805
    %v1870 = vunpack.c.l.b16 %v1806
    %v1871 = vunpack.c.l.b16 %v1807
    %v1872 = vpack.c.b16 %v1841, %v1840
    %v1873 = vpack.c.b16 %v1843, %v1842
    %v1874 = vpack.c.b16 %v1845, %v1844
    %v1875 = vpack.c.b16 %v1847, %v1846
    %v1876 = vpack.c.b16 %v1849, %v1848
    %v1877 = vpack.c.b16 %v1851, %v1850
    %v1878 = vpack.c.b16 %v1853, %v1852
    %v1879 = vpack.c.b16 %v1855, %v1854
    %v1880 = vpack.c.b16 %v1857, %v1856
    %v1881 = vpack.c.b16 %v1859, %v1858
    %v1882 = vpack.c.b16 %v1861, %v1860
    %v1883 = vpack.c.b16 %v1863, %v1862
    %v1884 = vpack.c.b16 %v1865, %v1864
    %v1885 = vpack.c.b16 %v1867, %v1866
    %v1886 = vpack.c.b16 %v1869, %v1868
    %v1887 = vpack.c.b16 %v1871, %v1870
    %1904 = vmatpush.bf16.msra.mxu0 %v1879
    %1905 = vmatpush.bf16.msra.mxu0 %v1878
    %1906 = vmatpush.bf16.msra.mxu0 %v1877
    %1907 = vmatpush.bf16.msra.mxu0 %v1876
    %1908 = vmatpush.bf16.msra.mxu0 %v1875
    %1909 = vmatpush.bf16.msra.mxu0 %v1874
    %1910 = vmatpush.bf16.msra.mxu0 %v1873
    %1911 = vmatpush.bf16.msra.mxu0 %v1872
    %1912 = vmatmul.bf16.gmra.mxu0 %v1712
    %v1913 = vpop.f32.mrf.mxu0
    %v1914 = vadd.f32 0.0, %v1913
    %v1915 = vpop.f32.mrf.mxu0
    %v1916 = vadd.f32 0.0, %v1915
    %1917 = vmatmul.bf16.gmra.mxu0 %v1714
    %v1918 = vpop.f32.mrf.mxu0
    %v1919 = vadd.f32 0.0, %v1918
    %v1920 = vpop.f32.mrf.mxu0
    %v1921 = vadd.f32 0.0, %v1920
    %1922 = vmatmul.bf16.gmra.mxu0 %v1716
    %v1923 = vpop.f32.mrf.mxu0
    %v1924 = vadd.f32 0.0, %v1923
    %v1925 = vpop.f32.mrf.mxu0
    %v1926 = vadd.f32 0.0, %v1925
    %1927 = vmatmul.bf16.gmra.mxu0 %v1718
    %v1928 = vpop.f32.mrf.mxu0
    %v1929 = vadd.f32 0.0, %v1928
    %v1930 = vpop.f32.mrf.mxu0
    %v1931 = vadd.f32 0.0, %v1930
    %1932 = vmatmul.bf16.gmra.mxu0 %v1720
    %v1933 = vpop.f32.mrf.mxu0
    %v1934 = vadd.f32 0.0, %v1933
    %v1935 = vpop.f32.mrf.mxu0
    %v1936 = vadd.f32 0.0, %v1935
    %1937 = vmatmul.bf16.gmra.mxu0 %v1722
    %v1938 = vpop.f32.mrf.mxu0
    %v1939 = vadd.f32 0.0, %v1938
    %v1940 = vpop.f32.mrf.mxu0
    %v1941 = vadd.f32 0.0, %v1940
    %1942 = vmatmul.bf16.gmra.mxu0 %v1724
    %v1943 = vpop.f32.mrf.mxu0
    %v1944 = vadd.f32 0.0, %v1943
    %v1945 = vpop.f32.mrf.mxu0
    %v1946 = vadd.f32 0.0, %v1945
    %1947 = vmatmul.bf16.gmra.mxu0 %v1726
    %v1948 = vpop.f32.mrf.mxu0
    %v1949 = vadd.f32 0.0, %v1948
    %v1950 = vpop.f32.mrf.mxu0
    %v1951 = vadd.f32 0.0, %v1950
    %1952 = vmatmul.bf16.gmra.mxu0 %v1728
    %v1953 = vpop.f32.mrf.mxu0
    %v1954 = vadd.f32 0.0, %v1953
    %v1955 = vpop.f32.mrf.mxu0
    %v1956 = vadd.f32 0.0, %v1955
    %1957 = vmatmul.bf16.gmra.mxu0 %v1730
    %v1958 = vpop.f32.mrf.mxu0
    %v1959 = vadd.f32 0.0, %v1958
    %v1960 = vpop.f32.mrf.mxu0
    %v1961 = vadd.f32 0.0, %v1960
    %1962 = vmatmul.bf16.gmra.mxu0 %v1732
    %v1963 = vpop.f32.mrf.mxu0
    %v1964 = vadd.f32 0.0, %v1963
    %v1965 = vpop.f32.mrf.mxu0
    %v1966 = vadd.f32 0.0, %v1965
    %1967 = vmatmul.bf16.gmra.mxu0 %v1734
    %v1968 = vpop.f32.mrf.mxu0
    %v1969 = vadd.f32 0.0, %v1968
    %v1970 = vpop.f32.mrf.mxu0
    %v1971 = vadd.f32 0.0, %v1970
    %1972 = vmatmul.bf16.gmra.mxu0 %v1736
    %v1973 = vpop.f32.mrf.mxu0
    %v1974 = vadd.f32 0.0, %v1973
    %v1975 = vpop.f32.mrf.mxu0
    %v1976 = vadd.f32 0.0, %v1975
    %1977 = vmatmul.bf16.gmra.mxu0 %v1738
    %v1978 = vpop.f32.mrf.mxu0
    %v1979 = vadd.f32 0.0, %v1978
    %v1980 = vpop.f32.mrf.mxu0
    %v1981 = vadd.f32 0.0, %v1980
    %1982 = vmatmul.bf16.gmra.mxu0 %v1740
    %v1983 = vpop.f32.mrf.mxu0
    %v1984 = vadd.f32 0.0, %v1983
    %v1985 = vpop.f32.mrf.mxu0
    %v1986 = vadd.f32 0.0, %v1985
    %1987 = vmatmul.bf16.gmra.mxu0 %v1742
    %v1988 = vpop.f32.mrf.mxu0
    %v1989 = vadd.f32 0.0, %v1988
    %v1990 = vpop.f32.mrf.mxu0
    %v1991 = vadd.f32 0.0, %v1990
    %1992 = vdwg.mxu0
    %1993 = vmatpush.bf16.msra.mxu0 %v1887
    %1994 = vmatpush.bf16.msra.mxu0 %v1886
    %1995 = vmatpush.bf16.msra.mxu0 %v1885
    %1996 = vmatpush.bf16.msra.mxu0 %v1884
    %1997 = vmatpush.bf16.msra.mxu0 %v1883
    %1998 = vmatpush.bf16.msra.mxu0 %v1882
    %1999 = vmatpush.bf16.msra.mxu0 %v1881
    %2000 = vmatpush.bf16.msra.mxu0 %v1880
    %2001 = vmatmul.bf16.gmra.mxu0 %v1713
    %v2002 = vpop.f32.mrf.mxu0
    %v2003 = vadd.f32 %v1914, %v2002
    %v2004 = vpop.f32.mrf.mxu0
    %v2005 = vadd.f32 %v1916, %v2004
    %2006 = vmatmul.bf16.gmra.mxu0 %v1715
    %v2007 = vpop.f32.mrf.mxu0
    %v2008 = vadd.f32 %v1919, %v2007
    %v2009 = vpop.f32.mrf.mxu0
    %v2010 = vadd.f32 %v1921, %v2009
    %2011 = vmatmul.bf16.gmra.mxu0 %v1717
    %v2012 = vpop.f32.mrf.mxu0
    %v2013 = vadd.f32 %v1924, %v2012
    %v2014 = vpop.f32.mrf.mxu0
    %v2015 = vadd.f32 %v1926, %v2014
    %2016 = vmatmul.bf16.gmra.mxu0 %v1719
    %v2017 = vpop.f32.mrf.mxu0
    %v2018 = vadd.f32 %v1929, %v2017
    %v2019 = vpop.f32.mrf.mxu0
    %v2020 = vadd.f32 %v1931, %v2019
    %2021 = vmatmul.bf16.gmra.mxu0 %v1721
    %v2022 = vpop.f32.mrf.mxu0
    %v2023 = vadd.f32 %v1934, %v2022
    %v2024 = vpop.f32.mrf.mxu0
    %v2025 = vadd.f32 %v1936, %v2024
    %2026 = vmatmul.bf16.gmra.mxu0 %v1723
    %v2027 = vpop.f32.mrf.mxu0
    %v2028 = vadd.f32 %v1939, %v2027
    %v2029 = vpop.f32.mrf.mxu0
    %v2030 = vadd.f32 %v1941, %v2029
    %2031 = vmatmul.bf16.gmra.mxu0 %v1725
    %v2032 = vpop.f32.mrf.mxu0
    %v2033 = vadd.f32 %v1944, %v2032
    %v2034 = vpop.f32.mrf.mxu0
    %v2035 = vadd.f32 %v1946, %v2034
    %2036 = vmatmul.bf16.gmra.mxu0 %v1727
    %v2037 = vpop.f32.mrf.mxu0
    %v2038 = vadd.f32 %v1949, %v2037
    %v2039 = vpop.f32.mrf.mxu0
    %v2040 = vadd.f32 %v1951, %v2039
    %2041 = vmatmul.bf16.gmra.mxu0 %v1729
    %v2042 = vpop.f32.mrf.mxu0
    %v2043 = vadd.f32 %v1954, %v2042
    %v2044 = vpop.f32.mrf.mxu0
    %v2045 = vadd.f32 %v1956, %v2044
    %2046 = vmatmul.bf16.gmra.mxu0 %v1731
    %v2047 = vpop.f32.mrf.mxu0
    %v2048 = vadd.f32 %v1959, %v2047
    %v2049 = vpop.f32.mrf.mxu0
    %v2050 = vadd.f32 %v1961, %v2049
    %2051 = vmatmul.bf16.gmra.mxu0 %v1733
    %v2052 = vpop.f32.mrf.mxu0
    %v2053 = vadd.f32 %v1964, %v2052
    %v2054 = vpop.f32.mrf.mxu0
    %v2055 = vadd.f32 %v1966, %v2054
    %2056 = vmatmul.bf16.gmra.mxu0 %v1735
    %v2057 = vpop.f32.mrf.mxu0
    %v2058 = vadd.f32 %v1969, %v2057
    %v2059 = vpop.f32.mrf.mxu0
    %v2060 = vadd.f32 %v1971, %v2059
    %2061 = vmatmul.bf16.gmra.mxu0 %v1737
    %v2062 = vpop.f32.mrf.mxu0
    %v2063 = vadd.f32 %v1974, %v2062
    %v2064 = vpop.f32.mrf.mxu0
    %v2065 = vadd.f32 %v1976, %v2064
    %2066 = vmatmul.bf16.gmra.mxu0 %v1739
    %v2067 = vpop.f32.mrf.mxu0
    %v2068 = vadd.f32 %v1979, %v2067
    %v2069 = vpop.f32.mrf.mxu0
    %v2070 = vadd.f32 %v1981, %v2069
    %2071 = vmatmul.bf16.gmra.mxu0 %v1741
    %v2072 = vpop.f32.mrf.mxu0
    %v2073 = vadd.f32 %v1984, %v2072
    %v2074 = vpop.f32.mrf.mxu0
    %v2075 = vadd.f32 %v1986, %v2074
    %2076 = vmatmul.bf16.gmra.mxu0 %v1743
    %v2077 = vpop.f32.mrf.mxu0
    %v2078 = vadd.f32 %v1989, %v2077
    %v2079 = vpop.f32.mrf.mxu0
    %v2080 = vadd.f32 %v1991, %v2079
    %2081 = vdwg.mxu0
    %v2082 = vadd.f32 %v1744, %v2003
    %v2083 = vadd.f32 %v1745, %v2005
    %v2084 = vadd.f32 %v1746, %v2008
    %v2085 = vadd.f32 %v1747, %v2010
    %v2086 = vadd.f32 %v1748, %v2013
    %v2087 = vadd.f32 %v1749, %v2015
    %v2088 = vadd.f32 %v1750, %v2018
    %v2089 = vadd.f32 %v1751, %v2020
    %v2090 = vadd.f32 %v1752, %v2023
    %v2091 = vadd.f32 %v1753, %v2025
    %v2092 = vadd.f32 %v1754, %v2028
    %v2093 = vadd.f32 %v1755, %v2030
    %v2094 = vadd.f32 %v1756, %v2033
    %v2095 = vadd.f32 %v1757, %v2035
    %v2096 = vadd.f32 %v1758, %v2038
    %v2097 = vadd.f32 %v1759, %v2040
    %v2098 = vadd.f32 %v1760, %v2043
    %v2099 = vadd.f32 %v1761, %v2045
    %v2100 = vadd.f32 %v1762, %v2048
    %v2101 = vadd.f32 %v1763, %v2050
    %v2102 = vadd.f32 %v1764, %v2053
    %v2103 = vadd.f32 %v1765, %v2055
    %v2104 = vadd.f32 %v1766, %v2058
    %v2105 = vadd.f32 %v1767, %v2060
    %v2106 = vadd.f32 %v1768, %v2063
    %v2107 = vadd.f32 %v1769, %v2065
    %v2108 = vadd.f32 %v1770, %v2068
    %v2109 = vadd.f32 %v1771, %v2070
    %v2110 = vadd.f32 %v1772, %v2073
    %v2111 = vadd.f32 %v1773, %v2075
    %v2112 = vadd.f32 %v1774, %v2078
    %v2113 = vadd.f32 %v1775, %v2080
    %2114 = vst [vmem:[#allocation3] sm:$0xff] %v2082
    %2115 = vst [vmem:[#allocation3 + $0x8] sm:$0xff] %v2083
    %2116 = vst [vmem:[#allocation3 + $0x10] sm:$0xff] %v2084
    %2117 = vst [vmem:[#allocation3 + $0x18] sm:$0xff] %v2085
    %2118 = vst [vmem:[#allocation3 + $0x20] sm:$0xff] %v2086
    %2119 = vst [vmem:[#allocation3 + $0x28] sm:$0xff] %v2087
    %2120 = vst [vmem:[#allocation3 + $0x30] sm:$0xff] %v2088
    %2121 = vst [vmem:[#allocation3 + $0x38] sm:$0xff] %v2089
    %2122 = vst [vmem:[#allocation3 + $0x40] sm:$0xff] %v2090
    %2123 = vst [vmem:[#allocation3 + $0x48] sm:$0xff] %v2091
    %2124 = vst [vmem:[#allocation3 + $0x50] sm:$0xff] %v2092
    %2125 = vst [vmem:[#allocation3 + $0x58] sm:$0xff] %v2093
    %2126 = vst [vmem:[#allocation3 + $0x60] sm:$0xff] %v2094
    %2127 = vst [vmem:[#allocation3 + $0x68] sm:$0xff] %v2095
    %2128 = vst [vmem:[#allocation3 + $0x70] sm:$0xff] %v2096
    %2129 = vst [vmem:[#allocation3 + $0x78] sm:$0xff] %v2097
    %2130 = vst [vmem:[#allocation3 + $0x80] sm:$0xff] %v2098
    %2131 = vst [vmem:[#allocation3 + $0x88] sm:$0xff] %v2099
    %2132 = vst [vmem:[#allocation3 + $0x90] sm:$0xff] %v2100
    %2133 = vst [vmem:[#allocation3 + $0x98] sm:$0xff] %v2101
    %2134 = vst [vmem:[#allocation3 + $0xa0] sm:$0xff] %v2102
    %2135 = vst [vmem:[#allocation3 + $0xa8] sm:$0xff] %v2103
    %2136 = vst [vmem:[#allocation3 + $0xb0] sm:$0xff] %v2104
    %2137 = vst [vmem:[#allocation3 + $0xb8] sm:$0xff] %v2105
    %2138 = vst [vmem:[#allocation3 + $0xc0] sm:$0xff] %v2106
    %2139 = vst [vmem:[#allocation3 + $0xc8] sm:$0xff] %v2107
    %2140 = vst [vmem:[#allocation3 + $0xd0] sm:$0xff] %v2108
    %2141 = vst [vmem:[#allocation3 + $0xd8] sm:$0xff] %v2109
    %2142 = vst [vmem:[#allocation3 + $0xe0] sm:$0xff] %v2110
    %2143 = vst [vmem:[#allocation3 + $0xe8] sm:$0xff] %v2111
    %2144 = vst [vmem:[#allocation3 + $0xf0] sm:$0xff] %v2112
    %2145 = vst [vmem:[#allocation3 + $0xf8] sm:$0xff] %v2113
    // Predicated region
    $region66: #{tpu_custom_call.1} parent=1 // pred_check
      %p2146 = pneg %p125
    $region67: #{tpu_custom_call.1} parent=1 // pred_check_branch
      %2148 = sbr.rel (%p2146) target = $region69
    $region68: #{tpu_custom_call.1} parent=1 // pred_region
      %v2149 = vld [vmem:[#allocation3] sm:$0xff]
      %v2150 = vld [vmem:[#allocation3 + $0x8] sm:$0xff]
      %v2151 = vld [vmem:[#allocation3 + $0x10] sm:$0xff]
      %v2152 = vld [vmem:[#allocation3 + $0x18] sm:$0xff]
      %v2153 = vld [vmem:[#allocation3 + $0x20] sm:$0xff]
      %v2154 = vld [vmem:[#allocation3 + $0x28] sm:$0xff]
      %v2155 = vld [vmem:[#allocation3 + $0x30] sm:$0xff]
      %v2156 = vld [vmem:[#allocation3 + $0x38] sm:$0xff]
      %v2157 = vld [vmem:[#allocation3 + $0x40] sm:$0xff]
      %v2158 = vld [vmem:[#allocation3 + $0x48] sm:$0xff]
      %v2159 = vld [vmem:[#allocation3 + $0x50] sm:$0xff]
      %v2160 = vld [vmem:[#allocation3 + $0x58] sm:$0xff]
      %v2161 = vld [vmem:[#allocation3 + $0x60] sm:$0xff]
      %v2162 = vld [vmem:[#allocation3 + $0x68] sm:$0xff]
      %v2163 = vld [vmem:[#allocation3 + $0x70] sm:$0xff]
      %v2164 = vld [vmem:[#allocation3 + $0x78] sm:$0xff]
      %v2165 = vld [vmem:[#allocation3 + $0x80] sm:$0xff]
      %v2166 = vld [vmem:[#allocation3 + $0x88] sm:$0xff]
      %v2167 = vld [vmem:[#allocation3 + $0x90] sm:$0xff]
      %v2168 = vld [vmem:[#allocation3 + $0x98] sm:$0xff]
      %v2169 = vld [vmem:[#allocation3 + $0xa0] sm:$0xff]
      %v2170 = vld [vmem:[#allocation3 + $0xa8] sm:$0xff]
      %v2171 = vld [vmem:[#allocation3 + $0xb0] sm:$0xff]
      %v2172 = vld [vmem:[#allocation3 + $0xb8] sm:$0xff]
      %v2173 = vld [vmem:[#allocation3 + $0xc0] sm:$0xff]
      %v2174 = vld [vmem:[#allocation3 + $0xc8] sm:$0xff]
      %v2175 = vld [vmem:[#allocation3 + $0xd0] sm:$0xff]
      %v2176 = vld [vmem:[#allocation3 + $0xd8] sm:$0xff]
      %v2177 = vld [vmem:[#allocation3 + $0xe0] sm:$0xff]
      %v2178 = vld [vmem:[#allocation3 + $0xe8] sm:$0xff]
      %v2179 = vld [vmem:[#allocation3 + $0xf0] sm:$0xff]
      %v2180 = vld [vmem:[#allocation3 + $0xf8] sm:$0xff]
      %v2181 = vld [vmem:[%s8] sm:$0x1]
      %v2183 = vperm.slane %v2181, 0
      %v2185 = vadd.f32 %v2149, %v2183
      %v2186 = vadd.f32 %v2150, %v2183
      %v2187 = vadd.f32 %v2151, %v2183
      %v2188 = vadd.f32 %v2152, %v2183
      %v2189 = vadd.f32 %v2153, %v2183
      %v2190 = vadd.f32 %v2154, %v2183
      %v2191 = vadd.f32 %v2155, %v2183
      %v2192 = vadd.f32 %v2156, %v2183
      %v2193 = vadd.f32 %v2157, %v2183
      %v2194 = vadd.f32 %v2158, %v2183
      %v2195 = vadd.f32 %v2159, %v2183
      %v2196 = vadd.f32 %v2160, %v2183
      %v2197 = vadd.f32 %v2161, %v2183
      %v2198 = vadd.f32 %v2162, %v2183
      %v2199 = vadd.f32 %v2163, %v2183
      %v2200 = vadd.f32 %v2164, %v2183
      %v2201 = vadd.f32 %v2165, %v2183
      %v2202 = vadd.f32 %v2166, %v2183
      %v2203 = vadd.f32 %v2167, %v2183
      %v2204 = vadd.f32 %v2168, %v2183
      %v2205 = vadd.f32 %v2169, %v2183
      %v2206 = vadd.f32 %v2170, %v2183
      %v2207 = vadd.f32 %v2171, %v2183
      %v2208 = vadd.f32 %v2172, %v2183
      %v2209 = vadd.f32 %v2173, %v2183
      %v2210 = vadd.f32 %v2174, %v2183
      %v2211 = vadd.f32 %v2175, %v2183
      %v2212 = vadd.f32 %v2176, %v2183
      %v2213 = vadd.f32 %v2177, %v2183
      %v2214 = vadd.f32 %v2178, %v2183
      %v2215 = vadd.f32 %v2179, %v2183
      %v2216 = vadd.f32 %v2180, %v2183
      %v2217 = vpack.c.bf16 %v2185, %v2185
      %v2218 = vpack.c.bf16 %v2186, %v2186
      %v2219 = vpack.c.bf16 %v2187, %v2187
      %v2220 = vpack.c.bf16 %v2188, %v2188
      %v2221 = vpack.c.bf16 %v2189, %v2189
      %v2222 = vpack.c.bf16 %v2190, %v2190
      %v2223 = vpack.c.bf16 %v2191, %v2191
      %v2224 = vpack.c.bf16 %v2192, %v2192
      %v2225 = vpack.c.bf16 %v2193, %v2193
      %v2226 = vpack.c.bf16 %v2194, %v2194
      %v2227 = vpack.c.bf16 %v2195, %v2195
      %v2228 = vpack.c.bf16 %v2196, %v2196
      %v2229 = vpack.c.bf16 %v2197, %v2197
      %v2230 = vpack.c.bf16 %v2198, %v2198
      %v2231 = vpack.c.bf16 %v2199, %v2199
      %v2232 = vpack.c.bf16 %v2200, %v2200
      %v2233 = vpack.c.bf16 %v2201, %v2201
      %v2234 = vpack.c.bf16 %v2202, %v2202
      %v2235 = vpack.c.bf16 %v2203, %v2203
      %v2236 = vpack.c.bf16 %v2204, %v2204
      %v2237 = vpack.c.bf16 %v2205, %v2205
      %v2238 = vpack.c.bf16 %v2206, %v2206
      %v2239 = vpack.c.bf16 %v2207, %v2207
      %v2240 = vpack.c.bf16 %v2208, %v2208
      %v2241 = vpack.c.bf16 %v2209, %v2209
      %v2242 = vpack.c.bf16 %v2210, %v2210
      %v2243 = vpack.c.bf16 %v2211, %v2211
      %v2244 = vpack.c.bf16 %v2212, %v2212
      %v2245 = vpack.c.bf16 %v2213, %v2213
      %v2246 = vpack.c.bf16 %v2214, %v2214
      %v2247 = vpack.c.bf16 %v2215, %v2215
      %v2248 = vpack.c.bf16 %v2216, %v2216
      %2249 = vst [vmem:[#allocation15] sm:$0xf] %v2217
      %2250 = vst [vmem:[#allocation15 + $0x4] sm:$0xf] %v2218
      %2251 = vst [vmem:[#allocation15 + $0x8] sm:$0xf] %v2219
      %2252 = vst [vmem:[#allocation15 + $0xc] sm:$0xf] %v2220
      %2253 = vst [vmem:[#allocation15 + $0x10] sm:$0xf] %v2221
      %2254 = vst [vmem:[#allocation15 + $0x14] sm:$0xf] %v2222
      %2255 = vst [vmem:[#allocation15 + $0x18] sm:$0xf] %v2223
      %2256 = vst [vmem:[#allocation15 + $0x1c] sm:$0xf] %v2224
      %2257 = vst [vmem:[#allocation15 + $0x20] sm:$0xf] %v2225
      %2258 = vst [vmem:[#allocation15 + $0x24] sm:$0xf] %v2226
      %2259 = vst [vmem:[#allocation15 + $0x28] sm:$0xf] %v2227
      %2260 = vst [vmem:[#allocation15 + $0x2c] sm:$0xf] %v2228
      %2261 = vst [vmem:[#allocation15 + $0x30] sm:$0xf] %v2229
      %2262 = vst [vmem:[#allocation15 + $0x34] sm:$0xf] %v2230
      %2263 = vst [vmem:[#allocation15 + $0x38] sm:$0xf] %v2231
      %2264 = vst [vmem:[#allocation15 + $0x3c] sm:$0xf] %v2232
      %2265 = vst [vmem:[#allocation15 + $0x40] sm:$0xf] %v2233
      %2266 = vst [vmem:[#allocation15 + $0x44] sm:$0xf] %v2234
      %2267 = vst [vmem:[#allocation15 + $0x48] sm:$0xf] %v2235
      %2268 = vst [vmem:[#allocation15 + $0x4c] sm:$0xf] %v2236
      %2269 = vst [vmem:[#allocation15 + $0x50] sm:$0xf] %v2237
      %2270 = vst [vmem:[#allocation15 + $0x54] sm:$0xf] %v2238
      %2271 = vst [vmem:[#allocation15 + $0x58] sm:$0xf] %v2239
      %2272 = vst [vmem:[#allocation15 + $0x5c] sm:$0xf] %v2240
      %2273 = vst [vmem:[#allocation15 + $0x60] sm:$0xf] %v2241
      %2274 = vst [vmem:[#allocation15 + $0x64] sm:$0xf] %v2242
      %2275 = vst [vmem:[#allocation15 + $0x68] sm:$0xf] %v2243
      %2276 = vst [vmem:[#allocation15 + $0x6c] sm:$0xf] %v2244
      %2277 = vst [vmem:[#allocation15 + $0x70] sm:$0xf] %v2245
      %2278 = vst [vmem:[#allocation15 + $0x74] sm:$0xf] %v2246
      %2279 = vst [vmem:[#allocation15 + $0x78] sm:$0xf] %v2247
      %2280 = vst [vmem:[#allocation15 + $0x7c] sm:$0xf] %v2248
    $region69: #{tpu_custom_call.1} parent=1 // pred_fallthru
      _
    // Predicated region
    $region70: #{tpu_custom_call.1} parent=1 // pred_check
      _
    $region71: #{tpu_custom_call.1} parent=1 // pred_check_branch
      %2282 = sbr.rel (0) target = $region73
    $region72: #{tpu_custom_call.1} parent=1 // pred_region
      %2284 = vsyncadd [#allocation6], 0
      %s2285 = sshll.u32 [#allocation15], 4
      %s2286 = int_to_ptr.vmem [resolvable:$true] %s2285
      %s2287 = sshll.u32 %s9, 4
      %s2288 = int_to_ptr.hbm [resolvable:$true] %s2287
      %2293 = dma.vmem_to_hbm [thread:$0]  %s2286, 2048, %s2288, [#allocation6], 64, 64, 4
    $region73: #{tpu_custom_call.1} parent=1 // pred_fallthru
      _
    // Predicated region
    $region74: #{tpu_custom_call.1} parent=1 // pred_check
      _
    $region75: #{tpu_custom_call.1} parent=1 // pred_check_branch
      %2295 = sbr.rel (0) target = $region77
    $region76: #{tpu_custom_call.1} parent=1 // pred_region
      %2297 = dma.done [#allocation6], 2048
    $region77: #{tpu_custom_call.1} parent=1 // pred_fallthru
      _
    %2298 = vsyncpa [#allocation5], 1
    %2299 = vsyncpa [#allocation8], 1
    %2300 = vsyncpa [#allocation11], 1
    %2301 = vsyncpa [#allocation14], 1
    %2302 = vsyncpa [#allocation6], 1

</llo_original>
